<compile_context>
chip_gen: v7x
topology: tpu7x:2x2x1
jax: 0.10.0
libtpu: 0.0.40
codegen_flags: <defaults>
</compile_context>

<pallas_src>
import functools
import math
from typing import NamedTuple

import jax
import jax.numpy as jnp
from jax.experimental import pallas as pl
from jax.experimental.pallas import tpu as pltpu


# --------------------------------------------------------------------------- #
# Kernel
# --------------------------------------------------------------------------- #
def _self_attention_kernel(*refs, head_dim, group_size, q_tile, has_mask,
                           approx_recip):
    # refs (in order): x, wq, wk, wv, bq, bk, bv, [mask], out, k_scr, v_scr, acc
    if has_mask:
        (x_ref, wq_ref, wk_ref, wv_ref, bq_ref, bk_ref, bv_ref, mask_ref,
         out_ref, k_scr, v_scr, acc_scr) = refs
    else:
        (x_ref, wq_ref, wk_ref, wv_ref, bq_ref, bk_ref, bv_ref,
         out_ref, k_scr, v_scr, acc_scr) = refs
        mask_ref = None

    g = pl.program_id(1)      # head group
    qi = pl.program_id(2)     # query tile
    d = head_dim

    # K/V projections for the whole sequence: once per (batch, head group),
    # kept in VMEM scratch and reused by every query tile (qi is the innermost
    # "arbitrary" grid axis, so this runs first for each (b, g)).
    @pl.when(qi == 0)
    def _():
        x_all = x_ref[0]                                   # [S, H]
        wk = wk_ref[g]                                     # [H, G*d]
        wv = wv_ref[g]
        bk = bk_ref[g]                                     # [1, G*d] (f32)
        bv = bv_ref[g]
        k = jnp.dot(x_all, wk, preferred_element_type=jnp.float32) + bk
        v = jnp.dot(x_all, wv, preferred_element_type=jnp.float32) + bv
        k_scr[...] = k.astype(k_scr.dtype)
        v_scr[...] = v.astype(v_scr.dtype)

    # Q projection for this query tile only. 1/sqrt(d) is pre-folded into
    # wq/bq at weight-prep time, so no in-kernel scale multiply.
    q_start = pl.multiple_of(qi * q_tile, q_tile)
    xq = x_ref[0, pl.ds(q_start, q_tile), :]               # [tq, H]
    wq = wq_ref[g]
    bq = bq_ref[g]
    q = jnp.dot(xq, wq, preferred_element_type=jnp.float32) + bq  # [tq, G*d]
    q = q.astype(k_scr.dtype)                              # compute dtype (MXU)

    k = k_scr[...]                                         # [S, G*d]
    v = v_scr[...]
    if has_mask:
        mask = mask_ref[0]                                 # [1, S] additive f32

    # Static unroll over heads in the group; each head's context is written
    # straight into its lane slice of the f32 accumulator (no concatenate, no
    # G live f32 parts at the end).
    for h in range(group_size):
        qh = q[:, h * d:(h + 1) * d]                       # [tq, d]
        kh = k[:, h * d:(h + 1) * d]                       # [S, d]
        vh = v[:, h * d:(h + 1) * d]                       # [S, d]

        # q @ k^T without materializing a transpose: contract on the d axis.
        s = jax.lax.dot_general(qh, kh, (((1,), (1,)), ((), ())),
                                preferred_element_type=jnp.float32)  # [tq, S]
        if has_mask:
            s = s + mask

        # Numerically stable softmax along the key axis (f32); reciprocal goes
        # to the EUP slot (approx on the bf16 fast path).
        m = jnp.max(s, axis=-1, keepdims=True)
        p = jnp.exp(s - m)
        denom = jnp.sum(p, axis=-1, keepdims=True)
        probs = (p * pl.reciprocal(denom, approx=approx_recip)).astype(vh.dtype)
        # TODO(synk): attention-prob dropout (training mode) not applied.

        acc_scr[:, h * d:(h + 1) * d] = jnp.dot(
            probs, vh, preferred_element_type=jnp.float32)

    out_ref[0] = acc_scr[...].astype(out_ref.dtype)        # single lane-dense store


# --------------------------------------------------------------------------- #
# One-time weight preparation (model-load time, NOT per forward call)
# --------------------------------------------------------------------------- #
class AttentionParams(NamedTuple):
    wq: jax.Array   # [NG, H, G*d], compute dtype, pre-scaled by 1/sqrt(d)
    wk: jax.Array   # [NG, H, G*d], compute dtype
    wv: jax.Array   # [NG, H, G*d], compute dtype
    bq: jax.Array   # [NG, 1, G*d], f32, pre-scaled by 1/sqrt(d)
    bk: jax.Array   # [NG, 1, G*d], f32
    bv: jax.Array   # [NG, 1, G*d], f32
    num_heads: int
    head_dim: int
    group_size: int


def _default_mxu_cols():
    """Target MXU column width: 128 on v5e, 256 on v6e/v7x (and by default)."""
    try:
        kind = jax.devices()[0].device_kind.lower()
    except Exception:
        return 256
    if "v5 lite" in kind or "v5e" in kind or "v5lite" in kind:
        return 128
    return 256


def _choose_group_size(num_heads, head_dim, target_cols):
    """Largest G dividing num_heads with G*head_dim <= target_cols."""
    g = max(1, min(num_heads, target_cols // max(1, head_dim)))
    while num_heads % g:
        g -= 1
    return g


def prepare_attention_params(wq, bq, wk, bk, wv, bv, num_heads, *,
                             compute_dtype=jnp.bfloat16, head_group_size=None,
                             mxu_cols=None):
    """w*: [H, H] arranged so y = x @ w + b matches torch nn.Linear (w = weight.T)."""
    H = wq.shape[0]
    if H % num_heads:
        raise ValueError(f"hidden size {H} not a multiple of num_heads {num_heads}")
    d = H // num_heads
    if mxu_cols is None:
        mxu_cols = _default_mxu_cols()
    G = head_group_size if head_group_size is not None else \
        _choose_group_size(num_heads, d, mxu_cols)
    if num_heads % G:
        raise ValueError("head_group_size must divide num_heads")
    Gd = G * d
    # Lane alignment: the output block's last dim is G*d; it must be a multiple
    # of 128 (or the full hidden size) to avoid masked vst.msk partial stores
    # or a (8,128)-rule lowering failure.
    if Gd % 128 != 0 and Gd != H:
        raise ValueError(
            f"head group width G*d={Gd} must be a multiple of 128 or equal "
            f"hidden_size={H}; adjust head_group_size")
    NG = num_heads // G
    scale = 1.0 / math.sqrt(d)

    def split_w(w, s=1.0):
        # [H, H] -> [NG, H, G*d]; global head h lands in group h//G at in-group
        # columns (h%G)*d:(h%G+1)*d, i.e. output columns h*d:(h+1)*d -- exactly
        # the torch permute(0,2,1,3)+view layout.
        return (w * s).reshape(H, NG, Gd).transpose(1, 0, 2).astype(compute_dtype)

    def split_b(b, s=1.0):
        return (b * s).reshape(NG, 1, Gd).astype(jnp.float32)

    return AttentionParams(split_w(wq, scale), split_w(wk), split_w(wv),
                           split_b(bq, scale), split_b(bk), split_b(bv),
                           num_heads, d, G)


# --------------------------------------------------------------------------- #
# Wrapper
# --------------------------------------------------------------------------- #
def _choose_q_tile(seq_len, target):
    """Largest query tile <= target dividing seq_len (multiple of 8), else S."""
    if target is None or seq_len <= target:
        return seq_len
    t = (min(target, seq_len) // 8) * 8
    while t >= 8:
        if seq_len % t == 0:
            return t
        t -= 8
    return seq_len


def _vmem_limit_bytes(S, H, Gd, NG, tq, c_bytes, o_bytes, has_mask,
                      single_buffer_weights):
    wb = 1 if single_buffer_weights else 2
    est = 2 * S * H * c_bytes                      # x window (double-buffered)
    est += wb * 3 * NG * H * Gd * c_bytes          # Q/K/V weights
    est += wb * 3 * NG * Gd * 4                    # biases (f32)
    est += 2 * tq * Gd * o_bytes                   # output window
    est += (2 * S * 4) if has_mask else 0          # mask window
    est += 2 * S * Gd * c_bytes                    # K/V scratch
    est += tq * Gd * 4                             # context accumulator scratch
    est += 4 * tq * S * 4                          # f32 score/softmax temporaries
    est = int(est * 1.5) + (4 << 20)               # pipelining / compiler slack
    return max(32 << 20, min(est, 128 << 20))


def bert_self_attention(hidden_states, attention_mask, params, *,
                        q_tile_target=256, single_buffer_weights=True):
    """hidden_states: [B, S, H]; attention_mask: additive per-key mask
    broadcastable to [B, 1, 1, S] (or None). Returns [B, S, H]."""
    B, S, H = hidden_states.shape
    d, G = params.head_dim, params.group_size
    Gd = G * d
    NG = params.wq.shape[0]
    assert NG * Gd == H, "prepared params do not match hidden size"

    compute_dtype = params.wq.dtype
    out_dtype = hidden_states.dtype
    x = hidden_states.astype(compute_dtype)

    has_mask = attention_mask is not None
    if has_mask:
        if (attention_mask.shape[-1] != S
                or math.prod(attention_mask.shape) != B * S):
            raise ValueError(
                "expected a per-key additive mask broadcastable to "
                f"[B, 1, 1, S]=({B},1,1,{S}); got {attention_mask.shape}")
        mask = attention_mask.reshape(B, 1, S).astype(jnp.float32)

    tq = _choose_q_tile(S, q_tile_target)
    nq = S // tq

    kernel = functools.partial(
        _self_attention_kernel, head_dim=d, group_size=G, q_tile=tq,
        has_mask=has_mask, approx_recip=(compute_dtype != jnp.float32))

    # Projections: 3 * 2*S*H*H ; scores + probs@V: 2 * 2*S*S*H   (per batch)
    flops = B * (6 * S * H * H + 4 * S * S * H)
    transcendentals = B * params.num_heads * S * S
    c_bytes = jnp.dtype(compute_dtype).itemsize
    o_bytes = jnp.dtype(out_dtype).itemsize
    bytes_accessed = (B * S * H * (c_bytes + o_bytes)
                      + 3 * H * H * c_bytes + 3 * H * 4
                      + (B * S * 4 if has_mask else 0))

    def run(weight_mode):
        def resident(shape):
            imap = lambda b, g, qi: (0, 0, 0)
            if weight_mode is None:
                return pl.BlockSpec(shape, imap)
            return pl.BlockSpec(shape, imap, pipeline_mode=weight_mode)

        in_specs = [
            pl.BlockSpec((1, S, H), lambda b, g, qi: (b, 0, 0)),   # x resident per batch
            resident((NG, H, Gd)), resident((NG, H, Gd)), resident((NG, H, Gd)),
            resident((NG, 1, Gd)), resident((NG, 1, Gd)), resident((NG, 1, Gd)),
        ]
        inputs = [x, params.wq, params.wk, params.wv,
                  params.bq, params.bk, params.bv]
        if has_mask:
            in_specs.append(pl.BlockSpec((1, 1, S), lambda b, g, qi: (b, 0, 0)))
            inputs.append(mask)

        out_spec = pl.BlockSpec((1, tq, Gd), lambda b, g, qi: (b, qi, g))

        return pl.pallas_call(
            kernel,
            out_shape=jax.ShapeDtypeStruct((B, S, H), out_dtype),
            grid_spec=pltpu.PrefetchScalarGridSpec(
                num_scalar_prefetch=0,
                grid=(B, NG, nq),
                in_specs=in_specs,
                out_specs=out_spec,
                scratch_shapes=[
                    pltpu.VMEM((S, Gd), compute_dtype),   # K for this (b, g)
                    pltpu.VMEM((S, Gd), compute_dtype),   # V for this (b, g)
                    pltpu.VMEM((tq, Gd), jnp.float32),    # context accumulator
                ]),
            compiler_params=pltpu.CompilerParams(
                dimension_semantics=("parallel", "parallel", "arbitrary"),
                vmem_limit_bytes=_vmem_limit_bytes(
                    S, H, Gd, NG, tq, c_bytes, o_bytes, has_mask,
                    weight_mode is not None)),
            cost_estimate=pl.CostEstimate(
                flops=flops, transcendentals=transcendentals,
                bytes_accessed=bytes_accessed),
        )(*inputs)

    if single_buffer_weights:
        try:
            # Constant-index_map weights/biases: single-buffer them (halves the
            # resident-weight VMEM footprint at BERT shapes).  Fall back if
            # this jax build rejects pipeline_mode on a pallas_call BlockSpec.
            return run(pl.Buffered(1))
        except Exception:
            pass
    return run(None)


# --------------------------------------------------------------------------- #
# Reference + self-test
# --------------------------------------------------------------------------- #
def _reference(hidden_states, attention_mask, wq, bq, wk, bk, wv, bv, num_heads):
    B, S, H = hidden_states.shape
    d = H // num_heads

    def split(t):  # [B,S,H] -> [B,nh,S,d]
        return t.reshape(B, S, num_heads, d).transpose(0, 2, 1, 3)

    q = split(hidden_states @ wq + bq)
    k = split(hidden_states @ wk + bk)
    v = split(hidden_states @ wv + bv)
    scores = jnp.einsum("bhqd,bhkd->bhqk", q, k) / math.sqrt(d)
    if attention_mask is not None:
        scores = scores + attention_mask   # [B,1,1,S] broadcasts
    probs = jax.nn.softmax(scores, axis=-1)
    ctx = jnp.einsum("bhqk,bhkd->bhqd", probs, v)
    return ctx.transpose(0, 2, 1, 3).reshape(B, S, H)


if __name__ == "__main__":
    B, S, H, NH = 2, 16, 32, 4
    key = jax.random.PRNGKey(0)
    ks = jax.random.split(key, 8)
    hidden = jax.random.normal(ks[0], (B, S, H), dtype=jnp.float32)
    # additive mask: 0 = attend, -10000 = masked (mask last 3 keys of batch 1)
    keep = jnp.ones((B, S), dtype=jnp.float32).at[1, -3:].set(0.0)
    attn_mask = (1.0 - keep)[:, None, None, :] * -10000.0      # [B,1,1,S]

    init = 1.0 / math.sqrt(H)
    wq = jax.random.uniform(ks[1], (H, H), jnp.float32, -init, init)
    wk = jax.random.uniform(ks[2], (H, H), jnp.float32, -init, init)
    wv = jax.random.uniform(ks[3], (H, H), jnp.float32, -init, init)
    bq = jax.random.uniform(ks[4], (H,), jnp.float32, -init, init)
    bk = jax.random.uniform(ks[5], (H,), jnp.float32, -init, init)
    bv = jax.random.uniform(ks[6], (H,), jnp.float32, -init, init)

    ref = _reference(hidden, attn_mask, wq, bq, wk, bk, wv, bv, NH)
    ref_nomask = _reference(hidden, None, wq, bq, wk, bk, wv, bv, NH)

    # One-time weight prep (model-load time).
    params_f32 = prepare_attention_params(wq, bq, wk, bk, wv, bv, NH,
                                          compute_dtype=jnp.float32)
    params_bf16 = prepare_attention_params(wq, bq, wk, bk, wv, bv, NH,
                                           compute_dtype=jnp.bfloat16)

    # 1) exact-semantics check: f32 compute, exact reciprocal, single q tile
    out_f32 = jax.block_until_ready(
        bert_self_attention(hidden, attn_mask, params_f32))
    assert out_f32.shape == (B, S, H)
    assert jnp.allclose(out_f32, ref, atol=1e-4, rtol=1e-4), "f32 mismatch"

    # 2) query-tiled path (tq=8 -> 2 tiles; exercises K/V VMEM-scratch reuse)
    out_tiled = jax.block_until_ready(
        bert_self_attention(hidden, attn_mask, params_f32, q_tile_target=8))
    assert jnp.allclose(out_tiled, ref, atol=1e-4, rtol=1e-4), "tiled mismatch"

    # 3) no-mask path (mask DMA + add statically removed)
    out_nomask = jax.block_until_ready(
        bert_self_attention(hidden, None, params_f32))
    assert jnp.allclose(out_nomask, ref_nomask, atol=1e-4, rtol=1e-4), \
        "no-mask mismatch"

    # 4) bf16 MXU fast path (f32 accumulation/softmax, approx reciprocal)
    out_bf16 = jax.block_until_ready(
        bert_self_attention(hidden, attn_mask, params_bf16))
    assert jnp.allclose(out_bf16.astype(jnp.float32), ref, atol=2e-2, rtol=2e-2), \
        "bf16 mismatch"

    print("KERNEL_OK")
</pallas_src>

<mosaic_0001>
module attributes {stable_mosaic.version = 11 : i64} {
  func.func @_self_attention_kernel(%arg0: i32, %arg1: i32, %arg2: i32, %arg3: memref<1x16x32xf32, #tpu.memory_space<vmem>>, %arg4: memref<1x32x32xf32, #tpu.memory_space<vmem>>, %arg5: memref<1x32x32xf32, #tpu.memory_space<vmem>>, %arg6: memref<1x32x32xf32, #tpu.memory_space<vmem>>, %arg7: memref<1x1x32xf32, #tpu.memory_space<vmem>>, %arg8: memref<1x1x32xf32, #tpu.memory_space<vmem>>, %arg9: memref<1x1x32xf32, #tpu.memory_space<vmem>>, %arg10: memref<1x1x16xf32, #tpu.memory_space<vmem>>, %arg11: memref<1x16x32xf32, #tpu.memory_space<vmem>>, %arg12: memref<16x32xf32, #tpu.memory_space<vmem>>, %arg13: memref<16x32xf32, #tpu.memory_space<vmem>>, %arg14: memref<16x32xf32, #tpu.memory_space<vmem>>) attributes {dimension_semantics = [#tpu.dimension_semantics<parallel>, #tpu.dimension_semantics<parallel>, #tpu.dimension_semantics<arbitrary>], iteration_bounds = array<i64: 2, 1, 1>, scalar_prefetch = 0 : i64, scratch_operands = 3 : i64, tpu.core_type = #tpu.core_type<tc>, window_params = [{transform_indices = @transform_0, window_bounds = array<i64: 1, 16, 32>}, {pipeline_mode = #tpu.pipeline_mode<synchronous>, transform_indices = @transform_1, window_bounds = array<i64: 1, 32, 32>}, {pipeline_mode = #tpu.pipeline_mode<synchronous>, transform_indices = @transform_2, window_bounds = array<i64: 1, 32, 32>}, {pipeline_mode = #tpu.pipeline_mode<synchronous>, transform_indices = @transform_3, window_bounds = array<i64: 1, 32, 32>}, {pipeline_mode = #tpu.pipeline_mode<synchronous>, transform_indices = @transform_4, window_bounds = array<i64: 1, 1, 32>}, {pipeline_mode = #tpu.pipeline_mode<synchronous>, transform_indices = @transform_5, window_bounds = array<i64: 1, 1, 32>}, {pipeline_mode = #tpu.pipeline_mode<synchronous>, transform_indices = @transform_6, window_bounds = array<i64: 1, 1, 32>}, {transform_indices = @transform_7, window_bounds = array<i64: 1, 1, 16>}, {transform_indices = @transform_8, window_bounds = array<i64: 1, 16, 32>}]} {
    %c0_i32 = arith.constant 0 : i32
    %0 = arith.cmpi eq, %arg2, %c0_i32 : i32
    %1 = arith.extui %0 : i1 to i32
    %c0_i32_0 = arith.constant 0 : i32
    %2 = arith.cmpi ne, %1, %c0_i32_0 : i32
    scf.if %2 {
      %c0_39 = arith.constant 0 : index
      %c0_40 = arith.constant 0 : index
      %c0_41 = arith.constant 0 : index
      %97 = vector.load %arg3[%c0_39, %c0_40, %c0_41] : memref<1x16x32xf32, #tpu.memory_space<vmem>>, vector<1x16x32xf32>
      %98 = vector.shape_cast %97 : vector<1x16x32xf32> to vector<16x32xf32>
      %99 = arith.index_cast %arg1 : i32 to index
      %c0_42 = arith.constant 0 : index
      %c0_43 = arith.constant 0 : index
      %100 = vector.load %arg5[%99, %c0_42, %c0_43] : memref<1x32x32xf32, #tpu.memory_space<vmem>>, vector<1x32x32xf32>
      %101 = vector.shape_cast %100 : vector<1x32x32xf32> to vector<32x32xf32>
      %102 = arith.index_cast %arg1 : i32 to index
      %c0_44 = arith.constant 0 : index
      %c0_45 = arith.constant 0 : index
      %103 = vector.load %arg6[%102, %c0_44, %c0_45] : memref<1x32x32xf32, #tpu.memory_space<vmem>>, vector<1x32x32xf32>
      %104 = vector.shape_cast %103 : vector<1x32x32xf32> to vector<32x32xf32>
      %105 = arith.index_cast %arg1 : i32 to index
      %c0_46 = arith.constant 0 : index
      %c0_47 = arith.constant 0 : index
      %106 = vector.load %arg8[%105, %c0_46, %c0_47] : memref<1x1x32xf32, #tpu.memory_space<vmem>>, vector<1x1x32xf32>
      %107 = vector.shape_cast %106 : vector<1x1x32xf32> to vector<1x32xf32>
      %108 = arith.index_cast %arg1 : i32 to index
      %c0_48 = arith.constant 0 : index
      %c0_49 = arith.constant 0 : index
      %109 = vector.load %arg9[%108, %c0_48, %c0_49] : memref<1x1x32xf32, #tpu.memory_space<vmem>>, vector<1x1x32xf32>
      %110 = vector.shape_cast %109 : vector<1x1x32xf32> to vector<1x32xf32>
      %cst_50 = arith.constant dense<0.000000e+00> : vector<16x32xf32>
      %111 = tpu.matmul %98, %101, %cst_50 {dimension_numbers = #tpu.dot_dimension_numbers<[1], [0], [0], [1], [0, 0, 1, 1], [], []>} : vector<16x32xf32>, vector<32x32xf32>, vector<16x32xf32> -> vector<16x32xf32>
      %112 = vector.broadcast %107 : vector<1x32xf32> to vector<16x32xf32>
      %113 = arith.addf %111, %112 : vector<16x32xf32>
      %cst_51 = arith.constant dense<0.000000e+00> : vector<16x32xf32>
      %114 = tpu.matmul %98, %104, %cst_51 {dimension_numbers = #tpu.dot_dimension_numbers<[1], [0], [0], [1], [0, 0, 1, 1], [], []>} : vector<16x32xf32>, vector<32x32xf32>, vector<16x32xf32> -> vector<16x32xf32>
      %115 = vector.broadcast %110 : vector<1x32xf32> to vector<16x32xf32>
      %116 = arith.addf %114, %115 : vector<16x32xf32>
      %c0_52 = arith.constant 0 : index
      %c0_53 = arith.constant 0 : index
      %117 = vector.load %arg12[%c0_52, %c0_53] : memref<16x32xf32, #tpu.memory_space<vmem>>, vector<16x32xf32>
      tpu.vector_store %arg12[%c0_52, %c0_53], %113 {strides = array<i32>} : memref<16x32xf32, #tpu.memory_space<vmem>>, vector<16x32xf32>,
      %c0_54 = arith.constant 0 : index
      %c0_55 = arith.constant 0 : index
      %118 = vector.load %arg13[%c0_54, %c0_55] : memref<16x32xf32, #tpu.memory_space<vmem>>, vector<16x32xf32>
      tpu.vector_store %arg13[%c0_54, %c0_55], %116 {strides = array<i32>} : memref<16x32xf32, #tpu.memory_space<vmem>>, vector<16x32xf32>,
    } else {
    }
    %c16_i32 = arith.constant 16 : i32
    %3 = arith.muli %arg2, %c16_i32 : i32
    %4 = tpu.assume_multiple %3, 16 : i32
    %c0 = arith.constant 0 : index
    %5 = arith.index_cast %4 : i32 to index
    %c0_1 = arith.constant 0 : index
    %6 = vector.load %arg3[%c0, %5, %c0_1] : memref<1x16x32xf32, #tpu.memory_space<vmem>>, vector<1x16x32xf32>
    %7 = vector.shape_cast %6 : vector<1x16x32xf32> to vector<16x32xf32>
    %8 = arith.index_cast %arg1 : i32 to index
    %c0_2 = arith.constant 0 : index
    %c0_3 = arith.constant 0 : index
    %9 = vector.load %arg4[%8, %c0_2, %c0_3] : memref<1x32x32xf32, #tpu.memory_space<vmem>>, vector<1x32x32xf32>
    %10 = vector.shape_cast %9 : vector<1x32x32xf32> to vector<32x32xf32>
    %11 = arith.index_cast %arg1 : i32 to index
    %c0_4 = arith.constant 0 : index
    %c0_5 = arith.constant 0 : index
    %12 = vector.load %arg7[%11, %c0_4, %c0_5] : memref<1x1x32xf32, #tpu.memory_space<vmem>>, vector<1x1x32xf32>
    %13 = vector.shape_cast %12 : vector<1x1x32xf32> to vector<1x32xf32>
    %cst = arith.constant dense<0.000000e+00> : vector<16x32xf32>
    %14 = tpu.matmul %7, %10, %cst {dimension_numbers = #tpu.dot_dimension_numbers<[1], [0], [0], [1], [0, 0, 1, 1], [], []>} : vector<16x32xf32>, vector<32x32xf32>, vector<16x32xf32> -> vector<16x32xf32>
    %15 = vector.broadcast %13 : vector<1x32xf32> to vector<16x32xf32>
    %16 = arith.addf %14, %15 : vector<16x32xf32>
    %c0_6 = arith.constant 0 : index
    %c0_7 = arith.constant 0 : index
    %17 = vector.load %arg12[%c0_6, %c0_7] : memref<16x32xf32, #tpu.memory_space<vmem>>, vector<16x32xf32>
    %c0_8 = arith.constant 0 : index
    %c0_9 = arith.constant 0 : index
    %18 = vector.load %arg13[%c0_8, %c0_9] : memref<16x32xf32, #tpu.memory_space<vmem>>, vector<16x32xf32>
    %c0_10 = arith.constant 0 : index
    %c0_11 = arith.constant 0 : index
    %c0_12 = arith.constant 0 : index
    %19 = vector.load %arg10[%c0_10, %c0_11, %c0_12] : memref<1x1x16xf32, #tpu.memory_space<vmem>>, vector<1x1x16xf32>
    %20 = vector.shape_cast %19 : vector<1x1x16xf32> to vector<1x16xf32>
    %21 = vector.extract_strided_slice %16 {offsets = [0, 0], sizes = [16, 8], strides = [1, 1]} : vector<16x32xf32> to vector<16x8xf32>
    %22 = vector.extract_strided_slice %17 {offsets = [0, 0], sizes = [16, 8], strides = [1, 1]} : vector<16x32xf32> to vector<16x8xf32>
    %23 = vector.extract_strided_slice %18 {offsets = [0, 0], sizes = [16, 8], strides = [1, 1]} : vector<16x32xf32> to vector<16x8xf32>
    %cst_13 = arith.constant dense<0.000000e+00> : vector<16x16xf32>
    %24 = tpu.matmul %21, %22, %cst_13 {dimension_numbers = #tpu.dot_dimension_numbers<[1], [1], [0], [0], [0, 0, 1, 0], [], []>} : vector<16x8xf32>, vector<16x8xf32>, vector<16x16xf32> -> vector<16x16xf32>
    %25 = vector.broadcast %20 : vector<1x16xf32> to vector<16x16xf32>
    %26 = arith.addf %24, %25 : vector<16x16xf32>
    %cst_14 = arith.constant dense<0xFF800000> : vector<16xf32>
    %27 = vector.multi_reduction <maximumf>, %26, %cst_14 [1] : vector<16x16xf32> to vector<16xf32>
    %28 = vector.shape_cast %27 : vector<16xf32> to vector<16x1xf32>
    %29 = vector.broadcast %28 : vector<16x1xf32> to vector<16x16xf32>
    %30 = arith.subf %26, %29 : vector<16x16xf32>
    %31 = math.exp %30 : vector<16x16xf32>
    %cst_15 = arith.constant dense<0.000000e+00> : vector<16xf32>
    %32 = vector.multi_reduction <add>, %31, %cst_15 [1] : vector<16x16xf32> to vector<16xf32>
    %33 = vector.shape_cast %32 : vector<16xf32> to vector<16x1xf32>
    %34 = tpu.reciprocal %33 : vector<16x1xf32> -> vector<16x1xf32>
    %35 = vector.broadcast %34 : vector<16x1xf32> to vector<16x16xf32>
    %36 = arith.mulf %31, %35 : vector<16x16xf32>
    %cst_16 = arith.constant dense<0.000000e+00> : vector<16x8xf32>
    %37 = tpu.matmul %36, %23, %cst_16 {dimension_numbers = #tpu.dot_dimension_numbers<[1], [0], [0], [1], [0, 0, 1, 1], [], []>} : vector<16x16xf32>, vector<16x8xf32>, vector<16x8xf32> -> vector<16x8xf32>
    %c0_17 = arith.constant 0 : index
    %c0_18 = arith.constant 0 : index
    %38 = vector.load %arg14[%c0_17, %c0_18] : memref<16x32xf32, #tpu.memory_space<vmem>>, vector<16x8xf32>
    tpu.vector_store %arg14[%c0_17, %c0_18], %37 {strides = array<i32>} : memref<16x32xf32, #tpu.memory_space<vmem>>, vector<16x8xf32>,
    %39 = vector.extract_strided_slice %16 {offsets = [0, 8], sizes = [16, 8], strides = [1, 1]} : vector<16x32xf32> to vector<16x8xf32>
    %40 = vector.extract_strided_slice %17 {offsets = [0, 8], sizes = [16, 8], strides = [1, 1]} : vector<16x32xf32> to vector<16x8xf32>
    %41 = vector.extract_strided_slice %18 {offsets = [0, 8], sizes = [16, 8], strides = [1, 1]} : vector<16x32xf32> to vector<16x8xf32>
    %cst_19 = arith.constant dense<0.000000e+00> : vector<16x16xf32>
    %42 = tpu.matmul %39, %40, %cst_19 {dimension_numbers = #tpu.dot_dimension_numbers<[1], [1], [0], [0], [0, 0, 1, 0], [], []>} : vector<16x8xf32>, vector<16x8xf32>, vector<16x16xf32> -> vector<16x16xf32>
    %43 = vector.broadcast %20 : vector<1x16xf32> to vector<16x16xf32>
    %44 = arith.addf %42, %43 : vector<16x16xf32>
    %cst_20 = arith.constant dense<0xFF800000> : vector<16xf32>
    %45 = vector.multi_reduction <maximumf>, %44, %cst_20 [1] : vector<16x16xf32> to vector<16xf32>
    %46 = vector.shape_cast %45 : vector<16xf32> to vector<16x1xf32>
    %47 = vector.broadcast %46 : vector<16x1xf32> to vector<16x16xf32>
    %48 = arith.subf %44, %47 : vector<16x16xf32>
    %49 = math.exp %48 : vector<16x16xf32>
    %cst_21 = arith.constant dense<0.000000e+00> : vector<16xf32>
    %50 = vector.multi_reduction <add>, %49, %cst_21 [1] : vector<16x16xf32> to vector<16xf32>
    %51 = vector.shape_cast %50 : vector<16xf32> to vector<16x1xf32>
    %52 = tpu.reciprocal %51 : vector<16x1xf32> -> vector<16x1xf32>
    %53 = vector.broadcast %52 : vector<16x1xf32> to vector<16x16xf32>
    %54 = arith.mulf %49, %53 : vector<16x16xf32>
    %cst_22 = arith.constant dense<0.000000e+00> : vector<16x8xf32>
    %55 = tpu.matmul %54, %41, %cst_22 {dimension_numbers = #tpu.dot_dimension_numbers<[1], [0], [0], [1], [0, 0, 1, 1], [], []>} : vector<16x16xf32>, vector<16x8xf32>, vector<16x8xf32> -> vector<16x8xf32>
    %c0_23 = arith.constant 0 : index
    %c8 = arith.constant 8 : index
    %56 = vector.load %arg14[%c0_23, %c8] : memref<16x32xf32, #tpu.memory_space<vmem>>, vector<16x8xf32>
    tpu.vector_store %arg14[%c0_23, %c8], %55 {strides = array<i32>} : memref<16x32xf32, #tpu.memory_space<vmem>>, vector<16x8xf32>,
    %57 = vector.extract_strided_slice %16 {offsets = [0, 16], sizes = [16, 8], strides = [1, 1]} : vector<16x32xf32> to vector<16x8xf32>
    %58 = vector.extract_strided_slice %17 {offsets = [0, 16], sizes = [16, 8], strides = [1, 1]} : vector<16x32xf32> to vector<16x8xf32>
    %59 = vector.extract_strided_slice %18 {offsets = [0, 16], sizes = [16, 8], strides = [1, 1]} : vector<16x32xf32> to vector<16x8xf32>
    %cst_24 = arith.constant dense<0.000000e+00> : vector<16x16xf32>
    %60 = tpu.matmul %57, %58, %cst_24 {dimension_numbers = #tpu.dot_dimension_numbers<[1], [1], [0], [0], [0, 0, 1, 0], [], []>} : vector<16x8xf32>, vector<16x8xf32>, vector<16x16xf32> -> vector<16x16xf32>
    %61 = vector.broadcast %20 : vector<1x16xf32> to vector<16x16xf32>
    %62 = arith.addf %60, %61 : vector<16x16xf32>
    %cst_25 = arith.constant dense<0xFF800000> : vector<16xf32>
    %63 = vector.multi_reduction <maximumf>, %62, %cst_25 [1] : vector<16x16xf32> to vector<16xf32>
    %64 = vector.shape_cast %63 : vector<16xf32> to vector<16x1xf32>
    %65 = vector.broadcast %64 : vector<16x1xf32> to vector<16x16xf32>
    %66 = arith.subf %62, %65 : vector<16x16xf32>
    %67 = math.exp %66 : vector<16x16xf32>
    %cst_26 = arith.constant dense<0.000000e+00> : vector<16xf32>
    %68 = vector.multi_reduction <add>, %67, %cst_26 [1] : vector<16x16xf32> to vector<16xf32>
    %69 = vector.shape_cast %68 : vector<16xf32> to vector<16x1xf32>
    %70 = tpu.reciprocal %69 : vector<16x1xf32> -> vector<16x1xf32>
    %71 = vector.broadcast %70 : vector<16x1xf32> to vector<16x16xf32>
    %72 = arith.mulf %67, %71 : vector<16x16xf32>
    %cst_27 = arith.constant dense<0.000000e+00> : vector<16x8xf32>
    %73 = tpu.matmul %72, %59, %cst_27 {dimension_numbers = #tpu.dot_dimension_numbers<[1], [0], [0], [1], [0, 0, 1, 1], [], []>} : vector<16x16xf32>, vector<16x8xf32>, vector<16x8xf32> -> vector<16x8xf32>
    %c0_28 = arith.constant 0 : index
    %c16 = arith.constant 16 : index
    %74 = vector.load %arg14[%c0_28, %c16] : memref<16x32xf32, #tpu.memory_space<vmem>>, vector<16x8xf32>
    tpu.vector_store %arg14[%c0_28, %c16], %73 {strides = array<i32>} : memref<16x32xf32, #tpu.memory_space<vmem>>, vector<16x8xf32>,
    %75 = vector.extract_strided_slice %16 {offsets = [0, 24], sizes = [16, 8], strides = [1, 1]} : vector<16x32xf32> to vector<16x8xf32>
    %76 = vector.extract_strided_slice %17 {offsets = [0, 24], sizes = [16, 8], strides = [1, 1]} : vector<16x32xf32> to vector<16x8xf32>
    %77 = vector.extract_strided_slice %18 {offsets = [0, 24], sizes = [16, 8], strides = [1, 1]} : vector<16x32xf32> to vector<16x8xf32>
    %cst_29 = arith.constant dense<0.000000e+00> : vector<16x16xf32>
    %78 = tpu.matmul %75, %76, %cst_29 {dimension_numbers = #tpu.dot_dimension_numbers<[1], [1], [0], [0], [0, 0, 1, 0], [], []>} : vector<16x8xf32>, vector<16x8xf32>, vector<16x16xf32> -> vector<16x16xf32>
    %79 = vector.broadcast %20 : vector<1x16xf32> to vector<16x16xf32>
    %80 = arith.addf %78, %79 : vector<16x16xf32>
    %cst_30 = arith.constant dense<0xFF800000> : vector<16xf32>
    %81 = vector.multi_reduction <maximumf>, %80, %cst_30 [1] : vector<16x16xf32> to vector<16xf32>
    %82 = vector.shape_cast %81 : vector<16xf32> to vector<16x1xf32>
    %83 = vector.broadcast %82 : vector<16x1xf32> to vector<16x16xf32>
    %84 = arith.subf %80, %83 : vector<16x16xf32>
    %85 = math.exp %84 : vector<16x16xf32>
    %cst_31 = arith.constant dense<0.000000e+00> : vector<16xf32>
    %86 = vector.multi_reduction <add>, %85, %cst_31 [1] : vector<16x16xf32> to vector<16xf32>
    %87 = vector.shape_cast %86 : vector<16xf32> to vector<16x1xf32>
    %88 = tpu.reciprocal %87 : vector<16x1xf32> -> vector<16x1xf32>
    %89 = vector.broadcast %88 : vector<16x1xf32> to vector<16x16xf32>
    %90 = arith.mulf %85, %89 : vector<16x16xf32>
    %cst_32 = arith.constant dense<0.000000e+00> : vector<16x8xf32>
    %91 = tpu.matmul %90, %77, %cst_32 {dimension_numbers = #tpu.dot_dimension_numbers<[1], [0], [0], [1], [0, 0, 1, 1], [], []>} : vector<16x16xf32>, vector<16x8xf32>, vector<16x8xf32> -> vector<16x8xf32>
    %c0_33 = arith.constant 0 : index
    %c24 = arith.constant 24 : index
    %92 = vector.load %arg14[%c0_33, %c24] : memref<16x32xf32, #tpu.memory_space<vmem>>, vector<16x8xf32>
    tpu.vector_store %arg14[%c0_33, %c24], %91 {strides = array<i32>} : memref<16x32xf32, #tpu.memory_space<vmem>>, vector<16x8xf32>,
    %c0_34 = arith.constant 0 : index
    %c0_35 = arith.constant 0 : index
    %93 = vector.load %arg14[%c0_34, %c0_35] : memref<16x32xf32, #tpu.memory_space<vmem>>, vector<16x32xf32>
    %c0_36 = arith.constant 0 : index
    %c0_37 = arith.constant 0 : index
    %c0_38 = arith.constant 0 : index
    %94 = vector.load %arg11[%c0_36, %c0_37, %c0_38] : memref<1x16x32xf32, #tpu.memory_space<vmem>>, vector<1x16x32xf32>
    %95 = vector.shape_cast %94 : vector<1x16x32xf32> to vector<16x32xf32>
    %96 = vector.shape_cast %93 : vector<16x32xf32> to vector<1x16x32xf32>
    tpu.vector_store %arg11[%c0_36, %c0_37, %c0_38], %96 {strides = array<i32>} : memref<1x16x32xf32, #tpu.memory_space<vmem>>, vector<1x16x32xf32>,
    return
  }
  func.func @transform_0(%arg0: i32, %arg1: i32, %arg2: i32) -> (i32, i32, i32) {
    %c0_i32 = arith.constant 0 : i32
    %c0_i32_0 = arith.constant 0 : i32
    %c0_i32_1 = arith.constant 0 : i32
    return %arg0, %c0_i32, %c0_i32_0 : i32, i32, i32
  }
  func.func @transform_1(%arg0: i32, %arg1: i32, %arg2: i32) -> (i32, i32, i32) {
    %c0_i32 = arith.constant 0 : i32
    %c0_i32_0 = arith.constant 0 : i32
    %c0_i32_1 = arith.constant 0 : i32
    %c0_i32_2 = arith.constant 0 : i32
    return %c0_i32, %c0_i32_0, %c0_i32_1 : i32, i32, i32
  }
  func.func @transform_2(%arg0: i32, %arg1: i32, %arg2: i32) -> (i32, i32, i32) {
    %c0_i32 = arith.constant 0 : i32
    %c0_i32_0 = arith.constant 0 : i32
    %c0_i32_1 = arith.constant 0 : i32
    %c0_i32_2 = arith.constant 0 : i32
    return %c0_i32, %c0_i32_0, %c0_i32_1 : i32, i32, i32
  }
  func.func @transform_3(%arg0: i32, %arg1: i32, %arg2: i32) -> (i32, i32, i32) {
    %c0_i32 = arith.constant 0 : i32
    %c0_i32_0 = arith.constant 0 : i32
    %c0_i32_1 = arith.constant 0 : i32
    %c0_i32_2 = arith.constant 0 : i32
    return %c0_i32, %c0_i32_0, %c0_i32_1 : i32, i32, i32
  }
  func.func @transform_4(%arg0: i32, %arg1: i32, %arg2: i32) -> (i32, i32, i32) {
    %c0_i32 = arith.constant 0 : i32
    %c0_i32_0 = arith.constant 0 : i32
    %c0_i32_1 = arith.constant 0 : i32
    %c0_i32_2 = arith.constant 0 : i32
    return %c0_i32, %c0_i32_0, %c0_i32_1 : i32, i32, i32
  }
  func.func @transform_5(%arg0: i32, %arg1: i32, %arg2: i32) -> (i32, i32, i32) {
    %c0_i32 = arith.constant 0 : i32
    %c0_i32_0 = arith.constant 0 : i32
    %c0_i32_1 = arith.constant 0 : i32
    %c0_i32_2 = arith.constant 0 : i32
    return %c0_i32, %c0_i32_0, %c0_i32_1 : i32, i32, i32
  }
  func.func @transform_6(%arg0: i32, %arg1: i32, %arg2: i32) -> (i32, i32, i32) {
    %c0_i32 = arith.constant 0 : i32
    %c0_i32_0 = arith.constant 0 : i32
    %c0_i32_1 = arith.constant 0 : i32
    %c0_i32_2 = arith.constant 0 : i32
    return %c0_i32, %c0_i32_0, %c0_i32_1 : i32, i32, i32
  }
  func.func @transform_7(%arg0: i32, %arg1: i32, %arg2: i32) -> (i32, i32, i32) {
    %c0_i32 = arith.constant 0 : i32
    %c0_i32_0 = arith.constant 0 : i32
    %c0_i32_1 = arith.constant 0 : i32
    return %arg0, %c0_i32, %c0_i32_0 : i32, i32, i32
  }
  func.func @transform_8(%arg0: i32, %arg1: i32, %arg2: i32) -> (i32, i32, i32) {
    %c0_i32 = arith.constant 0 : i32
    return %arg0, %arg2, %arg1 : i32, i32, i32
  }
}

module attributes {stable_mosaic.version = 11 : i64} {
  func.func @_self_attention_kernel(%arg0: i32, %arg1: i32, %arg2: i32, %arg3: memref<1x16x32xf32, #tpu.memory_space<vmem>>, %arg4: memref<1x32x32xf32, #tpu.memory_space<vmem>>, %arg5: memref<1x32x32xf32, #tpu.memory_space<vmem>>, %arg6: memref<1x32x32xf32, #tpu.memory_space<vmem>>, %arg7: memref<1x1x32xf32, #tpu.memory_space<vmem>>, %arg8: memref<1x1x32xf32, #tpu.memory_space<vmem>>, %arg9: memref<1x1x32xf32, #tpu.memory_space<vmem>>, %arg10: memref<1x1x16xf32, #tpu.memory_space<vmem>>, %arg11: memref<1x16x32xf32, #tpu.memory_space<vmem>>, %arg12: memref<16x32xf32, #tpu.memory_space<vmem>>, %arg13: memref<16x32xf32, #tpu.memory_space<vmem>>, %arg14: memref<16x32xf32, #tpu.memory_space<vmem>>) attributes {dimension_semantics = [#tpu.dimension_semantics<parallel>, #tpu.dimension_semantics<parallel>, #tpu.dimension_semantics<arbitrary>], iteration_bounds = array<i64: 2, 1, 1>, scalar_prefetch = 0 : i64, scratch_operands = 3 : i64, tpu.core_type = #tpu.core_type<tc>, window_params = [{transform_indices = @transform_0, window_bounds = array<i64: 1, 16, 32>}, {pipeline_mode = #tpu.pipeline_mode<synchronous>, transform_indices = @transform_1, window_bounds = array<i64: 1, 32, 32>}, {pipeline_mode = #tpu.pipeline_mode<synchronous>, transform_indices = @transform_2, window_bounds = array<i64: 1, 32, 32>}, {pipeline_mode = #tpu.pipeline_mode<synchronous>, transform_indices = @transform_3, window_bounds = array<i64: 1, 32, 32>}, {pipeline_mode = #tpu.pipeline_mode<synchronous>, transform_indices = @transform_4, window_bounds = array<i64: 1, 1, 32>}, {pipeline_mode = #tpu.pipeline_mode<synchronous>, transform_indices = @transform_5, window_bounds = array<i64: 1, 1, 32>}, {pipeline_mode = #tpu.pipeline_mode<synchronous>, transform_indices = @transform_6, window_bounds = array<i64: 1, 1, 32>}, {transform_indices = @transform_7, window_bounds = array<i64: 1, 1, 16>}, {transform_indices = @transform_8, window_bounds = array<i64: 1, 16, 32>}]} {
    %c0_i32 = arith.constant 0 : i32
    %0 = arith.cmpi eq, %arg2, %c0_i32 : i32
    %1 = arith.extui %0 : i1 to i32
    %c0_i32_0 = arith.constant 0 : i32
    %2 = arith.cmpi ne, %1, %c0_i32_0 : i32
    scf.if %2 {
      %c0_39 = arith.constant 0 : index
      %c0_40 = arith.constant 0 : index
      %c0_41 = arith.constant 0 : index
      %97 = vector.load %arg3[%c0_39, %c0_40, %c0_41] : memref<1x16x32xf32, #tpu.memory_space<vmem>>, vector<1x16x32xf32>
      %98 = vector.shape_cast %97 : vector<1x16x32xf32> to vector<16x32xf32>
      %99 = arith.index_cast %arg1 : i32 to index
      %c0_42 = arith.constant 0 : index
      %c0_43 = arith.constant 0 : index
      %100 = vector.load %arg5[%99, %c0_42, %c0_43] : memref<1x32x32xf32, #tpu.memory_space<vmem>>, vector<1x32x32xf32>
      %101 = vector.shape_cast %100 : vector<1x32x32xf32> to vector<32x32xf32>
      %102 = arith.index_cast %arg1 : i32 to index
      %c0_44 = arith.constant 0 : index
      %c0_45 = arith.constant 0 : index
      %103 = vector.load %arg6[%102, %c0_44, %c0_45] : memref<1x32x32xf32, #tpu.memory_space<vmem>>, vector<1x32x32xf32>
      %104 = vector.shape_cast %103 : vector<1x32x32xf32> to vector<32x32xf32>
      %105 = arith.index_cast %arg1 : i32 to index
      %c0_46 = arith.constant 0 : index
      %c0_47 = arith.constant 0 : index
      %106 = vector.load %arg8[%105, %c0_46, %c0_47] : memref<1x1x32xf32, #tpu.memory_space<vmem>>, vector<1x1x32xf32>
      %107 = vector.shape_cast %106 : vector<1x1x32xf32> to vector<1x32xf32>
      %108 = arith.index_cast %arg1 : i32 to index
      %c0_48 = arith.constant 0 : index
      %c0_49 = arith.constant 0 : index
      %109 = vector.load %arg9[%108, %c0_48, %c0_49] : memref<1x1x32xf32, #tpu.memory_space<vmem>>, vector<1x1x32xf32>
      %110 = vector.shape_cast %109 : vector<1x1x32xf32> to vector<1x32xf32>
      %cst_50 = arith.constant dense<0.000000e+00> : vector<16x32xf32>
      %111 = tpu.matmul %98, %101, %cst_50 {dimension_numbers = #tpu.dot_dimension_numbers<[1], [0], [0], [1], [0, 0, 1, 1], [], []>} : vector<16x32xf32>, vector<32x32xf32>, vector<16x32xf32> -> vector<16x32xf32>
      %112 = vector.broadcast %107 : vector<1x32xf32> to vector<16x32xf32>
      %113 = arith.addf %111, %112 : vector<16x32xf32>
      %cst_51 = arith.constant dense<0.000000e+00> : vector<16x32xf32>
      %114 = tpu.matmul %98, %104, %cst_51 {dimension_numbers = #tpu.dot_dimension_numbers<[1], [0], [0], [1], [0, 0, 1, 1], [], []>} : vector<16x32xf32>, vector<32x32xf32>, vector<16x32xf32> -> vector<16x32xf32>
      %115 = vector.broadcast %110 : vector<1x32xf32> to vector<16x32xf32>
      %116 = arith.addf %114, %115 : vector<16x32xf32>
      %c0_52 = arith.constant 0 : index
      %c0_53 = arith.constant 0 : index
      %117 = vector.load %arg12[%c0_52, %c0_53] : memref<16x32xf32, #tpu.memory_space<vmem>>, vector<16x32xf32>
      tpu.vector_store %arg12[%c0_52, %c0_53], %113 {strides = array<i32>} : memref<16x32xf32, #tpu.memory_space<vmem>>, vector<16x32xf32>,
      %c0_54 = arith.constant 0 : index
      %c0_55 = arith.constant 0 : index
      %118 = vector.load %arg13[%c0_54, %c0_55] : memref<16x32xf32, #tpu.memory_space<vmem>>, vector<16x32xf32>
      tpu.vector_store %arg13[%c0_54, %c0_55], %116 {strides = array<i32>} : memref<16x32xf32, #tpu.memory_space<vmem>>, vector<16x32xf32>,
    } else {
    }
    %c16_i32 = arith.constant 16 : i32
    %3 = arith.muli %arg2, %c16_i32 : i32
    %4 = tpu.assume_multiple %3, 16 : i32
    %c0 = arith.constant 0 : index
    %5 = arith.index_cast %4 : i32 to index
    %c0_1 = arith.constant 0 : index
    %6 = vector.load %arg3[%c0, %5, %c0_1] : memref<1x16x32xf32, #tpu.memory_space<vmem>>, vector<1x16x32xf32>
    %7 = vector.shape_cast %6 : vector<1x16x32xf32> to vector<16x32xf32>
    %8 = arith.index_cast %arg1 : i32 to index
    %c0_2 = arith.constant 0 : index
    %c0_3 = arith.constant 0 : index
    %9 = vector.load %arg4[%8, %c0_2, %c0_3] : memref<1x32x32xf32, #tpu.memory_space<vmem>>, vector<1x32x32xf32>
    %10 = vector.shape_cast %9 : vector<1x32x32xf32> to vector<32x32xf32>
    %11 = arith.index_cast %arg1 : i32 to index
    %c0_4 = arith.constant 0 : index
    %c0_5 = arith.constant 0 : index
    %12 = vector.load %arg7[%11, %c0_4, %c0_5] : memref<1x1x32xf32, #tpu.memory_space<vmem>>, vector<1x1x32xf32>
    %13 = vector.shape_cast %12 : vector<1x1x32xf32> to vector<1x32xf32>
    %cst = arith.constant dense<0.000000e+00> : vector<16x32xf32>
    %14 = tpu.matmul %7, %10, %cst {dimension_numbers = #tpu.dot_dimension_numbers<[1], [0], [0], [1], [0, 0, 1, 1], [], []>} : vector<16x32xf32>, vector<32x32xf32>, vector<16x32xf32> -> vector<16x32xf32>
    %15 = vector.broadcast %13 : vector<1x32xf32> to vector<16x32xf32>
    %16 = arith.addf %14, %15 : vector<16x32xf32>
    %c0_6 = arith.constant 0 : index
    %c0_7 = arith.constant 0 : index
    %17 = vector.load %arg12[%c0_6, %c0_7] : memref<16x32xf32, #tpu.memory_space<vmem>>, vector<16x32xf32>
    %c0_8 = arith.constant 0 : index
    %c0_9 = arith.constant 0 : index
    %18 = vector.load %arg13[%c0_8, %c0_9] : memref<16x32xf32, #tpu.memory_space<vmem>>, vector<16x32xf32>
    %c0_10 = arith.constant 0 : index
    %c0_11 = arith.constant 0 : index
    %c0_12 = arith.constant 0 : index
    %19 = vector.load %arg10[%c0_10, %c0_11, %c0_12] : memref<1x1x16xf32, #tpu.memory_space<vmem>>, vector<1x1x16xf32>
    %20 = vector.shape_cast %19 : vector<1x1x16xf32> to vector<1x16xf32>
    %21 = vector.extract_strided_slice %16 {offsets = [0, 0], sizes = [16, 8], strides = [1, 1]} : vector<16x32xf32> to vector<16x8xf32>
    %22 = vector.extract_strided_slice %17 {offsets = [0, 0], sizes = [16, 8], strides = [1, 1]} : vector<16x32xf32> to vector<16x8xf32>
    %23 = vector.extract_strided_slice %18 {offsets = [0, 0], sizes = [16, 8], strides = [1, 1]} : vector<16x32xf32> to vector<16x8xf32>
    %cst_13 = arith.constant dense<0.000000e+00> : vector<16x16xf32>
    %24 = tpu.matmul %21, %22, %cst_13 {dimension_numbers = #tpu.dot_dimension_numbers<[1], [1], [0], [0], [0, 0, 1, 0], [], []>} : vector<16x8xf32>, vector<16x8xf32>, vector<16x16xf32> -> vector<16x16xf32>
    %25 = vector.broadcast %20 : vector<1x16xf32> to vector<16x16xf32>
    %26 = arith.addf %24, %25 : vector<16x16xf32>
    %cst_14 = arith.constant dense<0xFF800000> : vector<16xf32>
    %27 = vector.multi_reduction <maximumf>, %26, %cst_14 [1] : vector<16x16xf32> to vector<16xf32>
    %28 = vector.shape_cast %27 : vector<16xf32> to vector<16x1xf32>
    %29 = vector.broadcast %28 : vector<16x1xf32> to vector<16x16xf32>
    %30 = arith.subf %26, %29 : vector<16x16xf32>
    %31 = math.exp %30 : vector<16x16xf32>
    %cst_15 = arith.constant dense<0.000000e+00> : vector<16xf32>
    %32 = vector.multi_reduction <add>, %31, %cst_15 [1] : vector<16x16xf32> to vector<16xf32>
    %33 = vector.shape_cast %32 : vector<16xf32> to vector<16x1xf32>
    %34 = tpu.reciprocal %33 : vector<16x1xf32> -> vector<16x1xf32>
    %35 = vector.broadcast %34 : vector<16x1xf32> to vector<16x16xf32>
    %36 = arith.mulf %31, %35 : vector<16x16xf32>
    %cst_16 = arith.constant dense<0.000000e+00> : vector<16x8xf32>
    %37 = tpu.matmul %36, %23, %cst_16 {dimension_numbers = #tpu.dot_dimension_numbers<[1], [0], [0], [1], [0, 0, 1, 1], [], []>} : vector<16x16xf32>, vector<16x8xf32>, vector<16x8xf32> -> vector<16x8xf32>
    %c0_17 = arith.constant 0 : index
    %c0_18 = arith.constant 0 : index
    %38 = vector.load %arg14[%c0_17, %c0_18] : memref<16x32xf32, #tpu.memory_space<vmem>>, vector<16x8xf32>
    tpu.vector_store %arg14[%c0_17, %c0_18], %37 {strides = array<i32>} : memref<16x32xf32, #tpu.memory_space<vmem>>, vector<16x8xf32>,
    %39 = vector.extract_strided_slice %16 {offsets = [0, 8], sizes = [16, 8], strides = [1, 1]} : vector<16x32xf32> to vector<16x8xf32>
    %40 = vector.extract_strided_slice %17 {offsets = [0, 8], sizes = [16, 8], strides = [1, 1]} : vector<16x32xf32> to vector<16x8xf32>
    %41 = vector.extract_strided_slice %18 {offsets = [0, 8], sizes = [16, 8], strides = [1, 1]} : vector<16x32xf32> to vector<16x8xf32>
    %cst_19 = arith.constant dense<0.000000e+00> : vector<16x16xf32>
    %42 = tpu.matmul %39, %40, %cst_19 {dimension_numbers = #tpu.dot_dimension_numbers<[1], [1], [0], [0], [0, 0, 1, 0], [], []>} : vector<16x8xf32>, vector<16x8xf32>, vector<16x16xf32> -> vector<16x16xf32>
    %43 = vector.broadcast %20 : vector<1x16xf32> to vector<16x16xf32>
    %44 = arith.addf %42, %43 : vector<16x16xf32>
    %cst_20 = arith.constant dense<0xFF800000> : vector<16xf32>
    %45 = vector.multi_reduction <maximumf>, %44, %cst_20 [1] : vector<16x16xf32> to vector<16xf32>
    %46 = vector.shape_cast %45 : vector<16xf32> to vector<16x1xf32>
    %47 = vector.broadcast %46 : vector<16x1xf32> to vector<16x16xf32>
    %48 = arith.subf %44, %47 : vector<16x16xf32>
    %49 = math.exp %48 : vector<16x16xf32>
    %cst_21 = arith.constant dense<0.000000e+00> : vector<16xf32>
    %50 = vector.multi_reduction <add>, %49, %cst_21 [1] : vector<16x16xf32> to vector<16xf32>
    %51 = vector.shape_cast %50 : vector<16xf32> to vector<16x1xf32>
    %52 = tpu.reciprocal %51 : vector<16x1xf32> -> vector<16x1xf32>
    %53 = vector.broadcast %52 : vector<16x1xf32> to vector<16x16xf32>
    %54 = arith.mulf %49, %53 : vector<16x16xf32>
    %cst_22 = arith.constant dense<0.000000e+00> : vector<16x8xf32>
    %55 = tpu.matmul %54, %41, %cst_22 {dimension_numbers = #tpu.dot_dimension_numbers<[1], [0], [0], [1], [0, 0, 1, 1], [], []>} : vector<16x16xf32>, vector<16x8xf32>, vector<16x8xf32> -> vector<16x8xf32>
    %c0_23 = arith.constant 0 : index
    %c8 = arith.constant 8 : index
    %56 = vector.load %arg14[%c0_23, %c8] : memref<16x32xf32, #tpu.memory_space<vmem>>, vector<16x8xf32>
    tpu.vector_store %arg14[%c0_23, %c8], %55 {strides = array<i32>} : memref<16x32xf32, #tpu.memory_space<vmem>>, vector<16x8xf32>,
    %57 = vector.extract_strided_slice %16 {offsets = [0, 16], sizes = [16, 8], strides = [1, 1]} : vector<16x32xf32> to vector<16x8xf32>
    %58 = vector.extract_strided_slice %17 {offsets = [0, 16], sizes = [16, 8], strides = [1, 1]} : vector<16x32xf32> to vector<16x8xf32>
    %59 = vector.extract_strided_slice %18 {offsets = [0, 16], sizes = [16, 8], strides = [1, 1]} : vector<16x32xf32> to vector<16x8xf32>
    %cst_24 = arith.constant dense<0.000000e+00> : vector<16x16xf32>
    %60 = tpu.matmul %57, %58, %cst_24 {dimension_numbers = #tpu.dot_dimension_numbers<[1], [1], [0], [0], [0, 0, 1, 0], [], []>} : vector<16x8xf32>, vector<16x8xf32>, vector<16x16xf32> -> vector<16x16xf32>
    %61 = vector.broadcast %20 : vector<1x16xf32> to vector<16x16xf32>
    %62 = arith.addf %60, %61 : vector<16x16xf32>
    %cst_25 = arith.constant dense<0xFF800000> : vector<16xf32>
    %63 = vector.multi_reduction <maximumf>, %62, %cst_25 [1] : vector<16x16xf32> to vector<16xf32>
    %64 = vector.shape_cast %63 : vector<16xf32> to vector<16x1xf32>
    %65 = vector.broadcast %64 : vector<16x1xf32> to vector<16x16xf32>
    %66 = arith.subf %62, %65 : vector<16x16xf32>
    %67 = math.exp %66 : vector<16x16xf32>
    %cst_26 = arith.constant dense<0.000000e+00> : vector<16xf32>
    %68 = vector.multi_reduction <add>, %67, %cst_26 [1] : vector<16x16xf32> to vector<16xf32>
    %69 = vector.shape_cast %68 : vector<16xf32> to vector<16x1xf32>
    %70 = tpu.reciprocal %69 : vector<16x1xf32> -> vector<16x1xf32>
    %71 = vector.broadcast %70 : vector<16x1xf32> to vector<16x16xf32>
    %72 = arith.mulf %67, %71 : vector<16x16xf32>
    %cst_27 = arith.constant dense<0.000000e+00> : vector<16x8xf32>
    %73 = tpu.matmul %72, %59, %cst_27 {dimension_numbers = #tpu.dot_dimension_numbers<[1], [0], [0], [1], [0, 0, 1, 1], [], []>} : vector<16x16xf32>, vector<16x8xf32>, vector<16x8xf32> -> vector<16x8xf32>
    %c0_28 = arith.constant 0 : index
    %c16 = arith.constant 16 : index
    %74 = vector.load %arg14[%c0_28, %c16] : memref<16x32xf32, #tpu.memory_space<vmem>>, vector<16x8xf32>
    tpu.vector_store %arg14[%c0_28, %c16], %73 {strides = array<i32>} : memref<16x32xf32, #tpu.memory_space<vmem>>, vector<16x8xf32>,
    %75 = vector.extract_strided_slice %16 {offsets = [0, 24], sizes = [16, 8], strides = [1, 1]} : vector<16x32xf32> to vector<16x8xf32>
    %76 = vector.extract_strided_slice %17 {offsets = [0, 24], sizes = [16, 8], strides = [1, 1]} : vector<16x32xf32> to vector<16x8xf32>
    %77 = vector.extract_strided_slice %18 {offsets = [0, 24], sizes = [16, 8], strides = [1, 1]} : vector<16x32xf32> to vector<16x8xf32>
    %cst_29 = arith.constant dense<0.000000e+00> : vector<16x16xf32>
    %78 = tpu.matmul %75, %76, %cst_29 {dimension_numbers = #tpu.dot_dimension_numbers<[1], [1], [0], [0], [0, 0, 1, 0], [], []>} : vector<16x8xf32>, vector<16x8xf32>, vector<16x16xf32> -> vector<16x16xf32>
    %79 = vector.broadcast %20 : vector<1x16xf32> to vector<16x16xf32>
    %80 = arith.addf %78, %79 : vector<16x16xf32>
    %cst_30 = arith.constant dense<0xFF800000> : vector<16xf32>
    %81 = vector.multi_reduction <maximumf>, %80, %cst_30 [1] : vector<16x16xf32> to vector<16xf32>
    %82 = vector.shape_cast %81 : vector<16xf32> to vector<16x1xf32>
    %83 = vector.broadcast %82 : vector<16x1xf32> to vector<16x16xf32>
    %84 = arith.subf %80, %83 : vector<16x16xf32>
    %85 = math.exp %84 : vector<16x16xf32>
    %cst_31 = arith.constant dense<0.000000e+00> : vector<16xf32>
    %86 = vector.multi_reduction <add>, %85, %cst_31 [1] : vector<16x16xf32> to vector<16xf32>
    %87 = vector.shape_cast %86 : vector<16xf32> to vector<16x1xf32>
    %88 = tpu.reciprocal %87 : vector<16x1xf32> -> vector<16x1xf32>
    %89 = vector.broadcast %88 : vector<16x1xf32> to vector<16x16xf32>
    %90 = arith.mulf %85, %89 : vector<16x16xf32>
    %cst_32 = arith.constant dense<0.000000e+00> : vector<16x8xf32>
    %91 = tpu.matmul %90, %77, %cst_32 {dimension_numbers = #tpu.dot_dimension_numbers<[1], [0], [0], [1], [0, 0, 1, 1], [], []>} : vector<16x16xf32>, vector<16x8xf32>, vector<16x8xf32> -> vector<16x8xf32>
    %c0_33 = arith.constant 0 : index
    %c24 = arith.constant 24 : index
    %92 = vector.load %arg14[%c0_33, %c24] : memref<16x32xf32, #tpu.memory_space<vmem>>, vector<16x8xf32>
    tpu.vector_store %arg14[%c0_33, %c24], %91 {strides = array<i32>} : memref<16x32xf32, #tpu.memory_space<vmem>>, vector<16x8xf32>,
    %c0_34 = arith.constant 0 : index
    %c0_35 = arith.constant 0 : index
    %93 = vector.load %arg14[%c0_34, %c0_35] : memref<16x32xf32, #tpu.memory_space<vmem>>, vector<16x32xf32>
    %c0_36 = arith.constant 0 : index
    %c0_37 = arith.constant 0 : index
    %c0_38 = arith.constant 0 : index
    %94 = vector.load %arg11[%c0_36, %c0_37, %c0_38] : memref<1x16x32xf32, #tpu.memory_space<vmem>>, vector<1x16x32xf32>
    %95 = vector.shape_cast %94 : vector<1x16x32xf32> to vector<16x32xf32>
    %96 = vector.shape_cast %93 : vector<16x32xf32> to vector<1x16x32xf32>
    tpu.vector_store %arg11[%c0_36, %c0_37, %c0_38], %96 {strides = array<i32>} : memref<1x16x32xf32, #tpu.memory_space<vmem>>, vector<1x16x32xf32>,
    return
  }
  func.func @transform_0(%arg0: i32, %arg1: i32, %arg2: i32) -> (i32, i32, i32) {
    %c0_i32 = arith.constant 0 : i32
    %c0_i32_0 = arith.constant 0 : i32
    %c0_i32_1 = arith.constant 0 : i32
    return %arg0, %c0_i32, %c0_i32_0 : i32, i32, i32
  }
  func.func @transform_1(%arg0: i32, %arg1: i32, %arg2: i32) -> (i32, i32, i32) {
    %c0_i32 = arith.constant 0 : i32
    %c0_i32_0 = arith.constant 0 : i32
    %c0_i32_1 = arith.constant 0 : i32
    %c0_i32_2 = arith.constant 0 : i32
    return %c0_i32, %c0_i32_0, %c0_i32_1 : i32, i32, i32
  }
  func.func @transform_2(%arg0: i32, %arg1: i32, %arg2: i32) -> (i32, i32, i32) {
    %c0_i32 = arith.constant 0 : i32
    %c0_i32_0 = arith.constant 0 : i32
    %c0_i32_1 = arith.constant 0 : i32
    %c0_i32_2 = arith.constant 0 : i32
    return %c0_i32, %c0_i32_0, %c0_i32_1 : i32, i32, i32
  }
  func.func @transform_3(%arg0: i32, %arg1: i32, %arg2: i32) -> (i32, i32, i32) {
    %c0_i32 = arith.constant 0 : i32
    %c0_i32_0 = arith.constant 0 : i32
    %c0_i32_1 = arith.constant 0 : i32
    %c0_i32_2 = arith.constant 0 : i32
    return %c0_i32, %c0_i32_0, %c0_i32_1 : i32, i32, i32
  }
  func.func @transform_4(%arg0: i32, %arg1: i32, %arg2: i32) -> (i32, i32, i32) {
    %c0_i32 = arith.constant 0 : i32
    %c0_i32_0 = arith.constant 0 : i32
    %c0_i32_1 = arith.constant 0 : i32
    %c0_i32_2 = arith.constant 0 : i32
    return %c0_i32, %c0_i32_0, %c0_i32_1 : i32, i32, i32
  }
  func.func @transform_5(%arg0: i32, %arg1: i32, %arg2: i32) -> (i32, i32, i32) {
    %c0_i32 = arith.constant 0 : i32
    %c0_i32_0 = arith.constant 0 : i32
    %c0_i32_1 = arith.constant 0 : i32
    %c0_i32_2 = arith.constant 0 : i32
    return %c0_i32, %c0_i32_0, %c0_i32_1 : i32, i32, i32
  }
  func.func @transform_6(%arg0: i32, %arg1: i32, %arg2: i32) -> (i32, i32, i32) {
    %c0_i32 = arith.constant 0 : i32
    %c0_i32_0 = arith.constant 0 : i32
    %c0_i32_1 = arith.constant 0 : i32
    %c0_i32_2 = arith.constant 0 : i32
    return %c0_i32, %c0_i32_0, %c0_i32_1 : i32, i32, i32
  }
  func.func @transform_7(%arg0: i32, %arg1: i32, %arg2: i32) -> (i32, i32, i32) {
    %c0_i32 = arith.constant 0 : i32
    %c0_i32_0 = arith.constant 0 : i32
    %c0_i32_1 = arith.constant 0 : i32
    return %arg0, %c0_i32, %c0_i32_0 : i32, i32, i32
  }
  func.func @transform_8(%arg0: i32, %arg1: i32, %arg2: i32) -> (i32, i32, i32) {
    %c0_i32 = arith.constant 0 : i32
    return %arg0, %arg2, %arg1 : i32, i32, i32
  }
}

</mosaic_0001>

<llo_original>
// kernel: tpu_custom_call.1
$region0: #{tpu_custom_call.1}
  #allocation0 [shape = 'u32[]', space=smem, size = 0x4, offset = 0x4, fixed_abs, tag = 'smem constant byte address 0x4 - core index']
  #allocation1 [shape = 'u32[144,128]{1,0:T(1,128)}', space=vmem, size = 0x12000, scoped, tag = 'internal scratch']
  #allocation2 [shape = 'f32[16,32]{1,0:T(8,128)}', space=vmem, size = 0x2000, scoped, tag = 'scratch operand']
  #allocation3 [shape = 'f32[16,32]{1,0:T(8,128)}', space=vmem, size = 0x2000, scoped, tag = 'scratch operand']
  #allocation4 [shape = 'f32[16,32]{1,0:T(8,128)}', space=vmem, size = 0x2000, scoped, tag = 'scratch operand']
  %s0 = inlined_call_operand.hbm [shape: f32[2,16,32], index: 0, kind: input, shape index: {}]
  %s1 = inlined_call_operand.hbm [shape: f32[1,32,32], index: 1, kind: input, shape index: {}]
  %s2 = inlined_call_operand.hbm [shape: f32[1,32,32], index: 2, kind: input, shape index: {}]
  %s3 = inlined_call_operand.hbm [shape: f32[1,32,32], index: 3, kind: input, shape index: {}]
  %s4 = inlined_call_operand.vmem [shape: f32[1,1,32], index: 4, kind: input, shape index: {}]
  %s5 = inlined_call_operand.vmem [shape: f32[1,1,32], index: 5, kind: input, shape index: {}]
  %s6 = inlined_call_operand.vmem [shape: f32[1,1,32], index: 6, kind: input, shape index: {}]
  %s7 = inlined_call_operand.vmem [shape: f32[2,1,16], index: 7, kind: input, shape index: {}]
  %s8 = inlined_call_operand.hbm [shape: f32[2,16,32], index: 8, kind: output, shape index: {}]
  %s9 = sld [smem:[#allocation0]]
  $region85: #{tpu_custom_call.1} parent=0
    _
  %s11 = ssub.s32 1, %s9
  %s12 = scalar_select 0, %s11, %s9
  $region1: #{tpu_custom_call.1} parent=0
    #allocation5 [shape = 'u8[16384]{0}', space=vmem, size = 0x4000, scoped, tag = 'input window, operand 0']
    #allocation6 [shape = 's32[2]{0}', space=sflag, size = 0x8, scoped, tag = 'scoped memory for tpu_custom_call.1']
    #allocation7 [shape = 's32[2]{0}', space=sflag, size = 0x8, scoped, tag = 'scoped memory for tpu_custom_call.1']
    #allocation8 [shape = 'u8[16384]{0}', space=vmem, size = 0x4000, scoped, tag = 'input window, operand 1, single buffered']
    #allocation9 [shape = 's32[1]{0}', space=sflag, size = 0x4, scoped, tag = 'scoped memory for tpu_custom_call.1']
    #allocation10 [shape = 'u8[16384]{0}', space=vmem, size = 0x4000, scoped, tag = 'input window, operand 2, single buffered']
    #allocation11 [shape = 'u8[16384]{0}', space=vmem, size = 0x4000, scoped, tag = 'input window, operand 3, single buffered']
    #allocation12 [shape = 's32[1]{0}', space=sflag, size = 0x4, scoped, tag = 'scoped memory for tpu_custom_call.1']
    #allocation13 [shape = 'u8[16384]{0}', space=vmem, size = 0x4000, scoped, tag = 'output window, operand 0']
    %13 = vsyncpa [#allocation6], 0
    %s14 = scalar_lea.sflag [#allocation6], 1
    %15 = vsyncpa %s14, 0
    %16 = vsyncpa [#allocation9], 0
    %17 = vsyncpa [#allocation12], 0
    %18 = vsyncpa [#allocation7], 0
    %s19 = scalar_lea.sflag [#allocation7], 1
    %20 = vsyncpa %s19, 0
    loop: start=0, step=1, limit=4
    $region2: #{tpu_custom_call.1} parent=1 // loop_pre_header
      _
    $region3: #{tpu_custom_call.1} parent=1 // loop_header
      %s22 = sphi 0, %s26
      %p23 = scmp.ge.s32.totalorder %s22, 4
      %s29 = sphi 0, %s48
      %s30 = sphi 0, %s44
      %s31 = sphi 0, %s40
      %s32 = sphi 0, %s29
      %s33 = sphi 0, %s30
      %s34 = sphi 0, %s31
      %s35 = sphi 0, %s32
      %s36 = sphi 0, %s33
      %s37 = sphi 0, %s34
      %s51 = sphi 0, %s53
      %s54 = sphi 0, %s51
      %s55 = sphi 0, %s54
      %s71 = sphi 0, %s55
      %s75 = sphi 0, %s75
      %s77 = sphi 0, %s75
      %s78 = sphi 0, %s77
      %s92 = sphi 0, %s78
      %s96 = sphi 0, %s96
      %s98 = sphi 0, %s96
      %s99 = sphi 0, %s98
      %s113 = sphi 0, %s99
      %s117 = sphi 0, %s117
      %s119 = sphi 0, %s117
      %s120 = sphi 0, %s119
      %s134 = sphi 0, %s120
      %s138 = sphi 0, %s138
      %s140 = sphi 0, %s138
      %s141 = sphi 0, %s140
      %s155 = sphi 0, %s141
      %s159 = sphi 0, %s159
      %s161 = sphi 0, %s159
      %s162 = sphi 0, %s161
      %s176 = sphi 0, %s162
      %s180 = sphi 0, %s180
      %s182 = sphi 0, %s180
      %s183 = sphi 0, %s182
      %s197 = sphi 0, %s183
      %s203 = sphi 0, %s205
      %s206 = sphi 0, %s203
      %s207 = sphi 0, %s206
      %s223 = sphi 0, %s207
      %s233 = sphi 0, %s235
      %s236 = sphi 0, %s233
      %s237 = sphi 0, %s236
      %s253 = sphi 0, %s237
    $region4: #{tpu_custom_call.1} parent=1 // loop_header_branch
      %25 = sbr.rel (%p23) target = $region8
    $region5: #{tpu_custom_call.1} parent=1 // loop_body
      %s27 = ssub.s32 %s22, 1
      %s28 = ssub.s32 %s22, 2
      %s38 = sadd.s32 1, %s31
      %p39 = scmp.ge.s32.totalorder %s38, 1
      %s40 = scalar_select %p39, 0, %s38
      %s41 = sadd.s32 1, %s30
      %s42 = scalar_select %p39, %s41, %s30
      %p43 = scmp.ge.s32.totalorder %s42, 1
      %s44 = scalar_select %p43, 0, %s42
      %s45 = sadd.s32 1, %s29
      %s46 = scalar_select %p43, %s45, %s29
      %p47 = scmp.ge.s32.totalorder %s46, 2
      %s48 = scalar_select %p47, 0, %s46
      %s49 = ssub.s32 %s29, %s48
      %p50 = scmp.eq.s32.totalorder %s49, 0
      %s52 = sadd.s32 %s51, 1
      %s53 = scalar_select %p50, %s51, %s52
      %p56 = pneg %p50
      %p57 = scmp.eq.s32.totalorder %s22, 1
      %p58 = por %p56, %p57
      %p59 = scmp.ne.s32.totalorder %s51, %s54
      %p60 = scmp.eq.s32.totalorder %s22, 0
      %p61 = por %p59, %p60
      %p62 = scmp.ne.s32.totalorder %s51, %s54
      %p63 = scmp.eq.s32.totalorder %s27, 1
      %p64 = por %p62, %p63
      %p65 = scmp.ne.s32.totalorder %s54, %s55
      %p66 = scmp.eq.s32.totalorder %s27, 0
      %p67 = por %p65, %p66
      %p68 = scmp.ne.s32.totalorder %s54, %s55
      %p69 = scmp.eq.s32.totalorder %s28, 1
      %p70 = por %p68, %p69
      %p72 = scmp.ne.s32.totalorder %s55, %s71
      %p73 = scmp.eq.s32.totalorder %s28, 0
      %p74 = por %p72, %p73
      %s76 = sadd.s32 %s75, 1
      %p79 = scmp.eq.s32.totalorder %s22, 1
      %p80 = scmp.ne.s32.totalorder %s75, %s77
      %p81 = scmp.eq.s32.totalorder %s22, 0
      %p82 = por %p80, %p81
      %p83 = scmp.ne.s32.totalorder %s75, %s77
      %p84 = scmp.eq.s32.totalorder %s27, 1
      %p85 = por %p83, %p84
      %p86 = scmp.ne.s32.totalorder %s77, %s78
      %p87 = scmp.eq.s32.totalorder %s27, 0
      %p88 = por %p86, %p87
      %p89 = scmp.ne.s32.totalorder %s77, %s78
      %p90 = scmp.eq.s32.totalorder %s28, 1
      %p91 = por %p89, %p90
      %p93 = scmp.ne.s32.totalorder %s78, %s92
      %p94 = scmp.eq.s32.totalorder %s28, 0
      %p95 = por %p93, %p94
      %s97 = sadd.s32 %s96, 1
      %p100 = scmp.eq.s32.totalorder %s22, 1
      %p101 = scmp.ne.s32.totalorder %s96, %s98
      %p102 = scmp.eq.s32.totalorder %s22, 0
      %p103 = por %p101, %p102
      %p104 = scmp.ne.s32.totalorder %s96, %s98
      %p105 = scmp.eq.s32.totalorder %s27, 1
      %p106 = por %p104, %p105
      %p107 = scmp.ne.s32.totalorder %s98, %s99
      %p108 = scmp.eq.s32.totalorder %s27, 0
      %p109 = por %p107, %p108
      %p110 = scmp.ne.s32.totalorder %s98, %s99
      %p111 = scmp.eq.s32.totalorder %s28, 1
      %p112 = por %p110, %p111
      %p114 = scmp.ne.s32.totalorder %s99, %s113
      %p115 = scmp.eq.s32.totalorder %s28, 0
      %p116 = por %p114, %p115
      %s118 = sadd.s32 %s117, 1
      %p121 = scmp.eq.s32.totalorder %s22, 1
      %p122 = scmp.ne.s32.totalorder %s117, %s119
      %p123 = scmp.eq.s32.totalorder %s22, 0
      %p124 = por %p122, %p123
      %p125 = scmp.ne.s32.totalorder %s117, %s119
      %p126 = scmp.eq.s32.totalorder %s27, 1
      %p127 = por %p125, %p126
      %p128 = scmp.ne.s32.totalorder %s119, %s120
      %p129 = scmp.eq.s32.totalorder %s27, 0
      %p130 = por %p128, %p129
      %p131 = scmp.ne.s32.totalorder %s119, %s120
      %p132 = scmp.eq.s32.totalorder %s28, 1
      %p133 = por %p131, %p132
      %p135 = scmp.ne.s32.totalorder %s120, %s134
      %p136 = scmp.eq.s32.totalorder %s28, 0
      %p137 = por %p135, %p136
      %s139 = sadd.s32 %s138, 1
      %p142 = scmp.eq.s32.totalorder %s22, 1
      %p143 = scmp.ne.s32.totalorder %s138, %s140
      %p144 = scmp.eq.s32.totalorder %s22, 0
      %p145 = por %p143, %p144
      %p146 = scmp.ne.s32.totalorder %s138, %s140
      %p147 = scmp.eq.s32.totalorder %s27, 1
      %p148 = por %p146, %p147
      %p149 = scmp.ne.s32.totalorder %s140, %s141
      %p150 = scmp.eq.s32.totalorder %s27, 0
      %p151 = por %p149, %p150
      %p152 = scmp.ne.s32.totalorder %s140, %s141
      %p153 = scmp.eq.s32.totalorder %s28, 1
      %p154 = por %p152, %p153
      %p156 = scmp.ne.s32.totalorder %s141, %s155
      %p157 = scmp.eq.s32.totalorder %s28, 0
      %p158 = por %p156, %p157
      %s160 = sadd.s32 %s159, 1
      %p163 = scmp.eq.s32.totalorder %s22, 1
      %p164 = scmp.ne.s32.totalorder %s159, %s161
      %p165 = scmp.eq.s32.totalorder %s22, 0
      %p166 = por %p164, %p165
      %p167 = scmp.ne.s32.totalorder %s159, %s161
      %p168 = scmp.eq.s32.totalorder %s27, 1
      %p169 = por %p167, %p168
      %p170 = scmp.ne.s32.totalorder %s161, %s162
      %p171 = scmp.eq.s32.totalorder %s27, 0
      %p172 = por %p170, %p171
      %p173 = scmp.ne.s32.totalorder %s161, %s162
      %p174 = scmp.eq.s32.totalorder %s28, 1
      %p175 = por %p173, %p174
      %p177 = scmp.ne.s32.totalorder %s162, %s176
      %p178 = scmp.eq.s32.totalorder %s28, 0
      %p179 = por %p177, %p178
      %s181 = sadd.s32 %s180, 1
      %p184 = scmp.eq.s32.totalorder %s22, 1
      %p185 = scmp.ne.s32.totalorder %s180, %s182
      %p186 = scmp.eq.s32.totalorder %s22, 0
      %p187 = por %p185, %p186
      %p188 = scmp.ne.s32.totalorder %s180, %s182
      %p189 = scmp.eq.s32.totalorder %s27, 1
      %p190 = por %p188, %p189
      %p191 = scmp.ne.s32.totalorder %s182, %s183
      %p192 = scmp.eq.s32.totalorder %s27, 0
      %p193 = por %p191, %p192
      %p194 = scmp.ne.s32.totalorder %s182, %s183
      %p195 = scmp.eq.s32.totalorder %s28, 1
      %p196 = por %p194, %p195
      %p198 = scmp.ne.s32.totalorder %s183, %s197
      %p199 = scmp.eq.s32.totalorder %s28, 0
      %p200 = por %p198, %p199
      %s201 = ssub.s32 %s29, %s48
      %p202 = scmp.eq.s32.totalorder %s201, 0
      %s204 = sadd.s32 %s203, 1
      %s205 = scalar_select %p202, %s203, %s204
      %p208 = pneg %p202
      %p209 = scmp.eq.s32.totalorder %s22, 1
      %p210 = por %p208, %p209
      %p211 = scmp.ne.s32.totalorder %s203, %s206
      %p212 = scmp.eq.s32.totalorder %s22, 0
      %p213 = por %p211, %p212
      %p214 = scmp.ne.s32.totalorder %s203, %s206
      %p215 = scmp.eq.s32.totalorder %s27, 1
      %p216 = por %p214, %p215
      %p217 = scmp.ne.s32.totalorder %s206, %s207
      %p218 = scmp.eq.s32.totalorder %s27, 0
      %p219 = por %p217, %p218
      %p220 = scmp.ne.s32.totalorder %s206, %s207
      %p221 = scmp.eq.s32.totalorder %s28, 1
      %p222 = por %p220, %p221
      %p224 = scmp.ne.s32.totalorder %s207, %s223
      %p225 = scmp.eq.s32.totalorder %s28, 0
      %p226 = por %p224, %p225
      %s227 = ssub.s32 %s29, %s48
      %s228 = ssub.s32 %s31, %s40
      %s229 = sor.u32 %s227, %s228
      %s230 = ssub.s32 %s30, %s44
      %s231 = sor.u32 %s229, %s230
      %p232 = scmp.eq.s32.totalorder %s231, 0
      %s234 = sadd.s32 %s233, 1
      %s235 = scalar_select %p232, %s233, %s234
      %p238 = pneg %p232
      %p239 = scmp.eq.s32.totalorder %s22, 1
      %p240 = por %p238, %p239
      %p241 = scmp.ne.s32.totalorder %s233, %s236
      %p242 = scmp.eq.s32.totalorder %s22, 0
      %p243 = por %p241, %p242
      %p244 = scmp.ne.s32.totalorder %s233, %s236
      %p245 = scmp.eq.s32.totalorder %s27, 1
      %p246 = por %p244, %p245
      %p247 = scmp.ne.s32.totalorder %s236, %s237
      %p248 = scmp.eq.s32.totalorder %s27, 0
      %p249 = por %p247, %p248
      %p250 = scmp.ne.s32.totalorder %s236, %s237
      %p251 = scmp.eq.s32.totalorder %s28, 1
      %p252 = por %p250, %p251
      %p254 = scmp.ne.s32.totalorder %s237, %s253
      %p255 = scmp.eq.s32.totalorder %s28, 0
      %p256 = por %p254, %p255
      %p257 = scmp.le.s32.totalorder 1, %s22
      %p258 = scmp.lt.s32.totalorder %s22, 3
      %p259 = pnand %p257, %p258
      %p260 = pneg %p259
      // Predicated region
      $region9: #{tpu_custom_call.1} parent=5 // pred_check
        _
      $region10: #{tpu_custom_call.1} parent=5 // pred_check_branch
        %262 = sbr.rel (%p259) target = $region12
      $region11: #{tpu_custom_call.1} parent=5 // pred_region
        %s263 = ssub.s32 %s22, 1
        // Predicated region
        $region13: #{tpu_custom_call.1} parent=11 // pred_check
          %p264 = pneg %p88
        $region14: #{tpu_custom_call.1} parent=11 // pred_check_branch
          %266 = sbr.rel (%p264) target = $region16
        $region15: #{tpu_custom_call.1} parent=11 // pred_region
          %s268 = ssub.s32 512, 512
          %269 = vsyncadd [#allocation9], %s268
          %s270 = sshll.u32 [#allocation8], 4
          %s271 = int_to_ptr.vmem [resolvable:$true] %s270
          %276 = dma.hbm_to_vmem [thread:$0]  %s1, 512, %s271, [#allocation9], 128, 128, 8
        $region16: #{tpu_custom_call.1} parent=11 // pred_fallthru
          _
        // Predicated region
        $region17: #{tpu_custom_call.1} parent=11 // pred_check
          %p277 = pneg %p109
        $region18: #{tpu_custom_call.1} parent=11 // pred_check_branch
          %279 = sbr.rel (%p277) target = $region20
        $region19: #{tpu_custom_call.1} parent=11 // pred_region
          %s281 = ssub.s32 512, 512
          %282 = vsyncadd [#allocation9], %s281
          %s283 = sshll.u32 [#allocation10], 4
          %s284 = int_to_ptr.vmem [resolvable:$true] %s283
          %289 = dma.hbm_to_vmem [thread:$0]  %s2, 512, %s284, [#allocation9], 128, 128, 8
        $region20: #{tpu_custom_call.1} parent=11 // pred_fallthru
          _
        // Predicated region
        $region21: #{tpu_custom_call.1} parent=11 // pred_check
          %p290 = pneg %p130
        $region22: #{tpu_custom_call.1} parent=11 // pred_check_branch
          %292 = sbr.rel (%p290) target = $region24
        $region23: #{tpu_custom_call.1} parent=11 // pred_region
          %s294 = ssub.s32 512, 512
          %295 = vsyncadd [#allocation12], %s294
          %s296 = sshll.u32 [#allocation11], 4
          %s297 = int_to_ptr.vmem [resolvable:$true] %s296
          %302 = dma.hbm_to_vmem [thread:$0]  %s3, 512, %s297, [#allocation12], 128, 128, 8
        $region24: #{tpu_custom_call.1} parent=11 // pred_fallthru
          _
        // Predicated region
        $region25: #{tpu_custom_call.1} parent=11 // pred_check
          %p303 = pneg %p151
        $region26: #{tpu_custom_call.1} parent=11 // pred_check_branch
          %305 = sbr.rel (%p303) target = $region28
        $region27: #{tpu_custom_call.1} parent=11 // pred_region
          _
        $region28: #{tpu_custom_call.1} parent=11 // pred_fallthru
          _
        // Predicated region
        $region29: #{tpu_custom_call.1} parent=11 // pred_check
          %p306 = pneg %p172
        $region30: #{tpu_custom_call.1} parent=11 // pred_check_branch
          %308 = sbr.rel (%p306) target = $region32
        $region31: #{tpu_custom_call.1} parent=11 // pred_region
          _
        $region32: #{tpu_custom_call.1} parent=11 // pred_fallthru
          _
        // Predicated region
        $region33: #{tpu_custom_call.1} parent=11 // pred_check
          %p309 = pneg %p193
        $region34: #{tpu_custom_call.1} parent=11 // pred_check_branch
          %311 = sbr.rel (%p309) target = $region36
        $region35: #{tpu_custom_call.1} parent=11 // pred_region
          _
        $region36: #{tpu_custom_call.1} parent=11 // pred_fallthru
          _
      $region12: #{tpu_custom_call.1} parent=5 // pred_fallthru
        _
      %p312 = scmp.lt.s32.totalorder %s22, 2
      // Predicated region
      $region37: #{tpu_custom_call.1} parent=5 // pred_check
        %p313 = pneg %p312
      $region38: #{tpu_custom_call.1} parent=5 // pred_check_branch
        %315 = sbr.rel (%p313) target = $region40
      $region39: #{tpu_custom_call.1} parent=5 // pred_region
        // Predicated region
        $region41: #{tpu_custom_call.1} parent=39 // pred_check
          %p316 = pneg %p61
        $region42: #{tpu_custom_call.1} parent=39 // pred_check_branch
          %318 = sbr.rel (%p316) target = $region44
        $region43: #{tpu_custom_call.1} parent=39 // pred_region
          %s319 = sand.u32 %s51, 1
          %s320 = scalar_lea.sflag [#allocation6], %s319
          %s321 = sand.u32 %s51, 1
          %s322 = smul.addr %s321, 16
          %s323 = scalar_lea.vmem [#allocation5], %s322
          %s325 = ssub.s32 256, 256
          %326 = vsyncadd %s320, %s325
          %s327 = smul.addr %s29, 2
          %s328 = smul.addr %s327, 128
          %s329 = scalar_lea.hbm %s0, %s328
          %s330 = sshll.u32 %s323, 4
          %s331 = int_to_ptr.vmem [resolvable:$true] %s330
          %336 = dma.hbm_to_vmem [thread:$0]  %s329, 256, %s331, %s320, 128, 128, 8
        $region44: #{tpu_custom_call.1} parent=39 // pred_fallthru
          _
        // Predicated region
        $region45: #{tpu_custom_call.1} parent=39 // pred_check
          %p337 = pneg %p213
        $region46: #{tpu_custom_call.1} parent=39 // pred_check_branch
          %339 = sbr.rel (%p337) target = $region48
        $region47: #{tpu_custom_call.1} parent=39 // pred_region
          %p340 = scmp.lt.s32.totalorder %s29, 1
          %s341 = scalar_select %p340, %s29, 1
          %s342 = scalar_lea.vmem %s7, %s341
        $region48: #{tpu_custom_call.1} parent=39 // pred_fallthru
          _
      $region40: #{tpu_custom_call.1} parent=5 // pred_fallthru
        _
      %p343 = scmp.le.s32.totalorder 1, %s22
      %p344 = scmp.lt.s32.totalorder %s22, 3
      %p345 = pnand %p343, %p344
      %p346 = pneg %p345
      // Predicated region
      $region49: #{tpu_custom_call.1} parent=5 // pred_check
        _
      $region50: #{tpu_custom_call.1} parent=5 // pred_check_branch
        %348 = sbr.rel (%p345) target = $region52
      $region51: #{tpu_custom_call.1} parent=5 // pred_region
        %s349 = ssub.s32 %s22, 1
        %s350 = sand.u32 %s54, 1
        %s351 = scalar_lea.sflag [#allocation6], %s350
        %s352 = sand.u32 %s54, 1
        %s353 = smul.addr %s352, 16
        %s354 = scalar_lea.vmem [#allocation5], %s353
        // Predicated region
        $region53: #{tpu_custom_call.1} parent=51 // pred_check
          %p355 = pneg %p67
        $region54: #{tpu_custom_call.1} parent=51 // pred_check_branch
          %357 = sbr.rel (%p355) target = $region56
        $region55: #{tpu_custom_call.1} parent=51 // pred_region
          %358 = dma.done %s351, 256
        $region56: #{tpu_custom_call.1} parent=51 // pred_fallthru
          _
        // Predicated region
        $region57: #{tpu_custom_call.1} parent=51 // pred_check
          %p359 = pneg %p88
        $region58: #{tpu_custom_call.1} parent=51 // pred_check_branch
          %361 = sbr.rel (%p359) target = $region60
        $region59: #{tpu_custom_call.1} parent=51 // pred_region
          %362 = dma.done [#allocation9], 512
        $region60: #{tpu_custom_call.1} parent=51 // pred_fallthru
          _
        // Predicated region
        $region61: #{tpu_custom_call.1} parent=51 // pred_check
          %p363 = pneg %p109
        $region62: #{tpu_custom_call.1} parent=51 // pred_check_branch
          %365 = sbr.rel (%p363) target = $region64
        $region63: #{tpu_custom_call.1} parent=51 // pred_region
          %366 = dma.done [#allocation9], 512
        $region64: #{tpu_custom_call.1} parent=51 // pred_fallthru
          _
        // Predicated region
        $region65: #{tpu_custom_call.1} parent=51 // pred_check
          %p367 = pneg %p130
        $region66: #{tpu_custom_call.1} parent=51 // pred_check_branch
          %369 = sbr.rel (%p367) target = $region68
        $region67: #{tpu_custom_call.1} parent=51 // pred_region
          %370 = dma.done [#allocation12], 512
        $region68: #{tpu_custom_call.1} parent=51 // pred_fallthru
          _
        %s371 = sand.u32 %s54, 1
        %s372 = scalar_lea.sflag [#allocation6], %s371
        %s373 = sand.u32 %s54, 1
        %s374 = smul.addr %s373, 16
        %s375 = scalar_lea.vmem [#allocation5], %s374
        %p376 = pneg %p67
        %p377 = pneg %p64
        %p378 = pneg %p88
        %p379 = pneg %p85
        %p380 = pneg %p109
        %p381 = pneg %p106
        %p382 = pneg %p130
        %p383 = pneg %p127
        %p384 = pneg %p151
        %p385 = pneg %p148
        %p386 = pneg %p172
        %p387 = pneg %p169
        %p388 = pneg %p193
        %p389 = pneg %p190
        %p390 = scmp.lt.s32.totalorder %s32, 1
        %s391 = scalar_select %p390, %s32, 1
        %s392 = scalar_lea.vmem %s7, %s391
        %p393 = pneg %p219
        %p394 = pneg %p216
        %p395 = pneg %p249
        %p396 = pneg %p246
        %s397 = sand.u32 %s236, 1
        %s398 = scalar_lea.sflag [#allocation7], %s397
        %s399 = sand.u32 %s236, 1
        %s400 = smul.addr %s399, 16
        %s401 = scalar_lea.vmem [#allocation13], %s400
        %p402 = scmp.lt.s32.totalorder %s32, 1
        %s403 = scalar_select %p402, %s32, 1
        %s404 = scalar_lea.vmem %s7, %s403
        %s405 = smul.u32 2, %s34
        %p406 = scmp.eq.s32.totalorder %s34, 0
        // Predicated region
        $region69: #{tpu_custom_call.1} parent=51 // pred_check
          %p407 = pneg %p406
        $region70: #{tpu_custom_call.1} parent=51 // pred_check_branch
          %409 = sbr.rel (%p407) target = $region72
        $region71: #{tpu_custom_call.1} parent=51 // pred_region
          %v410 = vld [vmem:[%s354] sm:$0xff]
          %v411 = vld [vmem:[%s354 + $0x8] sm:$0xff]
          %s412 = smul.u32 %s33, 32
          %s413 = scalar_lea.vmem [#allocation10], %s412
          %v414 = vld [vmem:[%s413] sm:$0xff]
          %v415 = vld [vmem:[%s413 + $0x8] sm:$0xff]
          %v416 = vld [vmem:[%s413 + $0x10] sm:$0xff]
          %v417 = vld [vmem:[%s413 + $0x18] sm:$0xff]
          %s418 = scalar_lea.vmem [#allocation11], %s412
          %v419 = vld [vmem:[%s418] sm:$0xff]
          %v420 = vld [vmem:[%s418 + $0x8] sm:$0xff]
          %v421 = vld [vmem:[%s418 + $0x10] sm:$0xff]
          %v422 = vld [vmem:[%s418 + $0x18] sm:$0xff]
          %s423 = scalar_lea.vmem %s5, %s33
          %v424 = vld [vmem:[%s423] sm:$0x1]
          %s425 = scalar_lea.vmem %s6, %s33
          %v426 = vld [vmem:[%s425] sm:$0x1]
          %v428 = vlaneseq
          %v429 = vshrl.u32 %v428, 7
          %v430 = vsub.s32 0, %v429
          %v431 = vrot.slane %v424, %v430
          %vm433 = vcmask 261120
          %v435 = vsel %vm433, %v410, 0
          %v438 = vsel %vm433, %v411, 0
          %440 = vmatprep.subr.mxu0 0.0
          %441 = vmatpush1.msra.mxu0 %v414
          %442 = vmatprep.subr.mxu0 0.0
          %443 = vmatpush1.msra.mxu0 %v415
          %444 = vmatprep.subr.mxu0 0.0
          %445 = vmatpush1.msra.mxu0 %v416
          %446 = vmatprep.subr.mxu0 0.0
          %447 = vmatpush1.msra.mxu0 %v417
          %448 = vmatprep.subr.mxu0 0.0
          %449 = vmatpush1.msra.mxu0 0.0
          %450 = vmatprep.subr.mxu0 0.0
          %451 = vmatpush1.msra.mxu0 0.0
          %452 = vmatprep.subr.mxu0 0.0
          %453 = vmatpush1.msra.mxu0 0.0
          %454 = vmatprep.subr.mxu0 0.0
          %455 = vmatpush1.msra.mxu0 0.0
          %456 = vmatprep.subr.mxu0 0.0
          %457 = vmatpush1.msra.mxu0 0.0
          %458 = vmatprep.subr.mxu0 0.0
          %459 = vmatpush1.msra.mxu0 0.0
          %460 = vmatprep.subr.mxu0 0.0
          %461 = vmatpush1.msra.mxu0 0.0
          %462 = vmatprep.subr.mxu0 0.0
          %463 = vmatpush1.msra.mxu0 0.0
          %464 = vmatprep.subr.mxu0 0.0
          %465 = vmatpush1.msra.mxu0 0.0
          %466 = vmatprep.subr.mxu0 0.0
          %467 = vmatpush1.msra.mxu0 0.0
          %468 = vmatprep.subr.mxu0 0.0
          %469 = vmatpush1.msra.mxu0 0.0
          %470 = vmatprep.subr.mxu0 0.0
          %471 = vmatpush1.msra.mxu0 0.0
          %472 = vmatprep.subr.mxu0 0.0
          %473 = vmatpush1.msra.mxu0 0.0
          %474 = vmatprep.subr.mxu0 0.0
          %475 = vmatpush1.msra.mxu0 0.0
          %476 = vmatprep.subr.mxu0 0.0
          %477 = vmatpush1.msra.mxu0 0.0
          %478 = vmatprep.subr.mxu0 0.0
          %479 = vmatpush1.msra.mxu0 0.0
          %480 = vmatprep.subr.mxu0 0.0
          %481 = vmatpush1.msra.mxu0 0.0
          %482 = vmatprep.subr.mxu0 0.0
          %483 = vmatpush1.msra.mxu0 0.0
          %484 = vmatprep.subr.mxu0 0.0
          %485 = vmatpush1.msra.mxu0 0.0
          %486 = vmatprep.subr.mxu0 0.0
          %487 = vmatpush1.msra.mxu0 0.0
          %488 = vmatprep.subr.mxu0 0.0
          %489 = vmatpush1.msra.mxu0 0.0
          %490 = vmatprep.subr.mxu0 0.0
          %491 = vmatpush1.msra.mxu0 0.0
          %492 = vmatprep.subr.mxu0 0.0
          %493 = vmatpush1.msra.mxu0 0.0
          %494 = vmatprep.subr.mxu0 0.0
          %495 = vmatpush1.msra.mxu0 0.0
          %496 = vmatprep.subr.mxu0 0.0
          %497 = vmatpush1.msra.mxu0 0.0
          %498 = vmatprep.subr.mxu0 0.0
          %499 = vmatpush1.msra.mxu0 0.0
          %500 = vmatprep.subr.mxu0 0.0
          %501 = vmatpush1.msra.mxu0 0.0
          %502 = vmatprep.subr.mxu0 0.0
          %503 = vmatpush1.msra.mxu0 0.0
          %504 = vmatprep.mubr.f32.mxu0 0.0
          %505 = vmatmul.mubr.f32.gmra.mrb[0].mxu0 %v435
          %v506 = vpop.f32.mrb[0].mxu0
          %v507 = vadd.f32 %v431, %v506
          %v508 = vpop.f32.mrb[0].mxu0
          %509 = vmatprep.mubr.f32.mxu0 0.0
          %510 = vmatmul.mubr.f32.gmra.mrb[0].mxu0 %v438
          %v511 = vpop.f32.mrb[0].mxu0
          %v512 = vadd.f32 %v431, %v511
          %v513 = vpop.f32.mrb[0].mxu0
          %514 = vdwg.mxu0
          %v516 = vlaneseq
          %v517 = vshrl.u32 %v516, 7
          %v518 = vsub.s32 0, %v517
          %v519 = vrot.slane %v426, %v518
          %521 = vmatprep.subr.mxu0 0.0
          %522 = vmatpush1.msra.mxu0 %v419
          %523 = vmatprep.subr.mxu0 0.0
          %524 = vmatpush1.msra.mxu0 %v420
          %525 = vmatprep.subr.mxu0 0.0
          %526 = vmatpush1.msra.mxu0 %v421
          %527 = vmatprep.subr.mxu0 0.0
          %528 = vmatpush1.msra.mxu0 %v422
          %529 = vmatprep.subr.mxu0 0.0
          %530 = vmatpush1.msra.mxu0 0.0
          %531 = vmatprep.subr.mxu0 0.0
          %532 = vmatpush1.msra.mxu0 0.0
          %533 = vmatprep.subr.mxu0 0.0
          %534 = vmatpush1.msra.mxu0 0.0
          %535 = vmatprep.subr.mxu0 0.0
          %536 = vmatpush1.msra.mxu0 0.0
          %537 = vmatprep.subr.mxu0 0.0
          %538 = vmatpush1.msra.mxu0 0.0
          %539 = vmatprep.subr.mxu0 0.0
          %540 = vmatpush1.msra.mxu0 0.0
          %541 = vmatprep.subr.mxu0 0.0
          %542 = vmatpush1.msra.mxu0 0.0
          %543 = vmatprep.subr.mxu0 0.0
          %544 = vmatpush1.msra.mxu0 0.0
          %545 = vmatprep.subr.mxu0 0.0
          %546 = vmatpush1.msra.mxu0 0.0
          %547 = vmatprep.subr.mxu0 0.0
          %548 = vmatpush1.msra.mxu0 0.0
          %549 = vmatprep.subr.mxu0 0.0
          %550 = vmatpush1.msra.mxu0 0.0
          %551 = vmatprep.subr.mxu0 0.0
          %552 = vmatpush1.msra.mxu0 0.0
          %553 = vmatprep.subr.mxu0 0.0
          %554 = vmatpush1.msra.mxu0 0.0
          %555 = vmatprep.subr.mxu0 0.0
          %556 = vmatpush1.msra.mxu0 0.0
          %557 = vmatprep.subr.mxu0 0.0
          %558 = vmatpush1.msra.mxu0 0.0
          %559 = vmatprep.subr.mxu0 0.0
          %560 = vmatpush1.msra.mxu0 0.0
          %561 = vmatprep.subr.mxu0 0.0
          %562 = vmatpush1.msra.mxu0 0.0
          %563 = vmatprep.subr.mxu0 0.0
          %564 = vmatpush1.msra.mxu0 0.0
          %565 = vmatprep.subr.mxu0 0.0
          %566 = vmatpush1.msra.mxu0 0.0
          %567 = vmatprep.subr.mxu0 0.0
          %568 = vmatpush1.msra.mxu0 0.0
          %569 = vmatprep.subr.mxu0 0.0
          %570 = vmatpush1.msra.mxu0 0.0
          %571 = vmatprep.subr.mxu0 0.0
          %572 = vmatpush1.msra.mxu0 0.0
          %573 = vmatprep.subr.mxu0 0.0
          %574 = vmatpush1.msra.mxu0 0.0
          %575 = vmatprep.subr.mxu0 0.0
          %576 = vmatpush1.msra.mxu0 0.0
          %577 = vmatprep.subr.mxu0 0.0
          %578 = vmatpush1.msra.mxu0 0.0
          %579 = vmatprep.subr.mxu0 0.0
          %580 = vmatpush1.msra.mxu0 0.0
          %581 = vmatprep.subr.mxu0 0.0
          %582 = vmatpush1.msra.mxu0 0.0
          %583 = vmatprep.subr.mxu0 0.0
          %584 = vmatpush1.msra.mxu0 0.0
          %585 = vmatprep.mubr.f32.mxu0 0.0
          %586 = vmatmul.mubr.f32.gmra.mrb[0].mxu0 %v435
          %v587 = vpop.f32.mrb[0].mxu0
          %v588 = vadd.f32 %v519, %v587
          %v589 = vpop.f32.mrb[0].mxu0
          %590 = vmatprep.mubr.f32.mxu0 0.0
          %591 = vmatmul.mubr.f32.gmra.mrb[0].mxu0 %v438
          %v592 = vpop.f32.mrb[0].mxu0
          %v593 = vadd.f32 %v519, %v592
          %v594 = vpop.f32.mrb[0].mxu0
          %595 = vdwg.mxu0
          %596 = vst.msk [vmem:[#allocation2] sm:$0xff] %vm433, %v507
          %597 = vst.msk [vmem:[#allocation2 + $0x8] sm:$0xff] %vm433, %v512
          %598 = vst.msk [vmem:[#allocation3] sm:$0xff] %vm433, %v588
          %599 = vst.msk [vmem:[#allocation3 + $0x8] sm:$0xff] %vm433, %v593
        $region72: #{tpu_custom_call.1} parent=51 // pred_fallthru
          _
        %s600 = smul.u32 %s34, 16
        %s601 = scalar_lea.vmem %s354, %s600 [#allocation5]
        %v602 = vld [vmem:[%s601] sm:$0xff]
        %v603 = vld [vmem:[%s601 + $0x8] sm:$0xff]
        %s604 = smul.u32 %s33, 32
        %s605 = scalar_lea.vmem [#allocation8], %s604
        %v606 = vld [vmem:[%s605] sm:$0xff]
        %v607 = vld [vmem:[%s605 + $0x8] sm:$0xff]
        %v608 = vld [vmem:[%s605 + $0x10] sm:$0xff]
        %v609 = vld [vmem:[%s605 + $0x18] sm:$0xff]
        %s610 = scalar_lea.vmem %s4, %s33
        %v611 = vld [vmem:[%s610] sm:$0x1]
        %v613 = vlaneseq
        %v614 = vshrl.u32 %v613, 7
        %v615 = vsub.s32 0, %v614
        %v616 = vrot.slane %v611, %v615
        %vm618 = vcmask 261120
        %v620 = vsel %vm618, %v602, 0
        %v623 = vsel %vm618, %v603, 0
        %625 = vmatprep.subr.mxu0 0.0
        %626 = vmatpush1.msra.mxu0 %v606
        %627 = vmatprep.subr.mxu0 0.0
        %628 = vmatpush1.msra.mxu0 %v607
        %629 = vmatprep.subr.mxu0 0.0
        %630 = vmatpush1.msra.mxu0 %v608
        %631 = vmatprep.subr.mxu0 0.0
        %632 = vmatpush1.msra.mxu0 %v609
        %633 = vmatprep.subr.mxu0 0.0
        %634 = vmatpush1.msra.mxu0 0.0
        %635 = vmatprep.subr.mxu0 0.0
        %636 = vmatpush1.msra.mxu0 0.0
        %637 = vmatprep.subr.mxu0 0.0
        %638 = vmatpush1.msra.mxu0 0.0
        %639 = vmatprep.subr.mxu0 0.0
        %640 = vmatpush1.msra.mxu0 0.0
        %641 = vmatprep.subr.mxu0 0.0
        %642 = vmatpush1.msra.mxu0 0.0
        %643 = vmatprep.subr.mxu0 0.0
        %644 = vmatpush1.msra.mxu0 0.0
        %645 = vmatprep.subr.mxu0 0.0
        %646 = vmatpush1.msra.mxu0 0.0
        %647 = vmatprep.subr.mxu0 0.0
        %648 = vmatpush1.msra.mxu0 0.0
        %649 = vmatprep.subr.mxu0 0.0
        %650 = vmatpush1.msra.mxu0 0.0
        %651 = vmatprep.subr.mxu0 0.0
        %652 = vmatpush1.msra.mxu0 0.0
        %653 = vmatprep.subr.mxu0 0.0
        %654 = vmatpush1.msra.mxu0 0.0
        %655 = vmatprep.subr.mxu0 0.0
        %656 = vmatpush1.msra.mxu0 0.0
        %657 = vmatprep.subr.mxu0 0.0
        %658 = vmatpush1.msra.mxu0 0.0
        %659 = vmatprep.subr.mxu0 0.0
        %660 = vmatpush1.msra.mxu0 0.0
        %661 = vmatprep.subr.mxu0 0.0
        %662 = vmatpush1.msra.mxu0 0.0
        %663 = vmatprep.subr.mxu0 0.0
        %664 = vmatpush1.msra.mxu0 0.0
        %665 = vmatprep.subr.mxu0 0.0
        %666 = vmatpush1.msra.mxu0 0.0
        %667 = vmatprep.subr.mxu0 0.0
        %668 = vmatpush1.msra.mxu0 0.0
        %669 = vmatprep.subr.mxu0 0.0
        %670 = vmatpush1.msra.mxu0 0.0
        %671 = vmatprep.subr.mxu0 0.0
        %672 = vmatpush1.msra.mxu0 0.0
        %673 = vmatprep.subr.mxu0 0.0
        %674 = vmatpush1.msra.mxu0 0.0
        %675 = vmatprep.subr.mxu0 0.0
        %676 = vmatpush1.msra.mxu0 0.0
        %677 = vmatprep.subr.mxu0 0.0
        %678 = vmatpush1.msra.mxu0 0.0
        %679 = vmatprep.subr.mxu0 0.0
        %680 = vmatpush1.msra.mxu0 0.0
        %681 = vmatprep.subr.mxu0 0.0
        %682 = vmatpush1.msra.mxu0 0.0
        %683 = vmatprep.subr.mxu0 0.0
        %684 = vmatpush1.msra.mxu0 0.0
        %685 = vmatprep.subr.mxu0 0.0
        %686 = vmatpush1.msra.mxu0 0.0
        %687 = vmatprep.subr.mxu0 0.0
        %688 = vmatpush1.msra.mxu0 0.0
        %689 = vmatprep.mubr.f32.mxu0 0.0
        %690 = vmatmul.mubr.f32.gmra.mrb[0].mxu0 %v620
        %v691 = vpop.f32.mrb[0].mxu0
        %v692 = vadd.f32 %v616, %v691
        %v693 = vpop.f32.mrb[0].mxu0
        %694 = vmatprep.mubr.f32.mxu0 0.0
        %695 = vmatmul.mubr.f32.gmra.mrb[0].mxu0 %v623
        %v696 = vpop.f32.mrb[0].mxu0
        %v697 = vadd.f32 %v616, %v696
        %v698 = vpop.f32.mrb[0].mxu0
        %699 = vdwg.mxu0
        %v700 = vld [vmem:[#allocation2] sm:$0xff]
        %v701 = vld [vmem:[#allocation2 + $0x8] sm:$0xff]
        %v702 = vld [vmem:[#allocation3] sm:$0xff]
        %v703 = vld [vmem:[#allocation3 + $0x8] sm:$0xff]
        %v704 = vld [vmem:[%s404] sm:$0x1]
        %v706 = vlaneseq
        %v707 = vshrl.u32 %v706, 7
        %v708 = vsub.s32 0, %v707
        %v709 = vrot.slane %v704, %v708
        %vm711 = vcmask 64512
        %v713 = vsel %vm711, %v692, 0
        %v716 = vsel %vm711, %v697, 0
        %v719 = vsel %vm711, %v700, 0
        %v722 = vsel %vm711, %v701, 0
        %724 = vmatprep.subr.mxu0 0.0
        %725 = vmatpush1.xpose.msra.mxu0 %v719
        %726 = vmatprep.subr.mxu0 0.0
        %727 = vmatpush1.xpose.msra.mxu0 %v722
        %728 = vmatprep.subr.mxu0 0.0
        %729 = vmatpush1.xpose.msra.mxu0 0.0
        %730 = vmatprep.subr.mxu0 0.0
        %731 = vmatpush1.xpose.msra.mxu0 0.0
        %732 = vmatprep.subr.mxu0 0.0
        %733 = vmatpush1.xpose.msra.mxu0 0.0
        %734 = vmatprep.subr.mxu0 0.0
        %735 = vmatpush1.xpose.msra.mxu0 0.0
        %736 = vmatprep.subr.mxu0 0.0
        %737 = vmatpush1.xpose.msra.mxu0 0.0
        %738 = vmatprep.subr.mxu0 0.0
        %739 = vmatpush1.xpose.msra.mxu0 0.0
        %740 = vmatprep.subr.mxu0 0.0
        %741 = vmatpush1.xpose.msra.mxu0 0.0
        %742 = vmatprep.subr.mxu0 0.0
        %743 = vmatpush1.xpose.msra.mxu0 0.0
        %744 = vmatprep.subr.mxu0 0.0
        %745 = vmatpush1.xpose.msra.mxu0 0.0
        %746 = vmatprep.subr.mxu0 0.0
        %747 = vmatpush1.xpose.msra.mxu0 0.0
        %748 = vmatprep.subr.mxu0 0.0
        %749 = vmatpush1.xpose.msra.mxu0 0.0
        %750 = vmatprep.subr.mxu0 0.0
        %751 = vmatpush1.xpose.msra.mxu0 0.0
        %752 = vmatprep.subr.mxu0 0.0
        %753 = vmatpush1.xpose.msra.mxu0 0.0
        %754 = vmatprep.subr.mxu0 0.0
        %755 = vmatpush1.xpose.msra.mxu0 0.0
        %756 = vmatprep.subr.mxu0 0.0
        %757 = vmatpush1.xpose.msra.mxu0 0.0
        %758 = vmatprep.subr.mxu0 0.0
        %759 = vmatpush1.xpose.msra.mxu0 0.0
        %760 = vmatprep.subr.mxu0 0.0
        %761 = vmatpush1.xpose.msra.mxu0 0.0
        %762 = vmatprep.subr.mxu0 0.0
        %763 = vmatpush1.xpose.msra.mxu0 0.0
        %764 = vmatprep.subr.mxu0 0.0
        %765 = vmatpush1.xpose.msra.mxu0 0.0
        %766 = vmatprep.subr.mxu0 0.0
        %767 = vmatpush1.xpose.msra.mxu0 0.0
        %768 = vmatprep.subr.mxu0 0.0
        %769 = vmatpush1.xpose.msra.mxu0 0.0
        %770 = vmatprep.subr.mxu0 0.0
        %771 = vmatpush1.xpose.msra.mxu0 0.0
        %772 = vmatprep.subr.mxu0 0.0
        %773 = vmatpush1.xpose.msra.mxu0 0.0
        %774 = vmatprep.subr.mxu0 0.0
        %775 = vmatpush1.xpose.msra.mxu0 0.0
        %776 = vmatprep.subr.mxu0 0.0
        %777 = vmatpush1.xpose.msra.mxu0 0.0
        %778 = vmatprep.subr.mxu0 0.0
        %779 = vmatpush1.xpose.msra.mxu0 0.0
        %780 = vmatprep.subr.mxu0 0.0
        %781 = vmatpush1.xpose.msra.mxu0 0.0
        %782 = vmatprep.subr.mxu0 0.0
        %783 = vmatpush1.xpose.msra.mxu0 0.0
        %784 = vmatprep.subr.mxu0 0.0
        %785 = vmatpush1.xpose.msra.mxu0 0.0
        %786 = vmatprep.subr.mxu0 0.0
        %787 = vmatpush1.xpose.msra.mxu0 0.0
        %788 = vmatprep.mubr.f32.mxu0 0.0
        %789 = vmatmul.mubr.f32.gmra.mrb[0].mxu0 %v713
        %v790 = vpop.f32.mrb[0].mxu0
        %v791 = vadd.f32 %v709, %v790
        %v792 = vpop.f32.mrb[0].mxu0
        %793 = vmatprep.mubr.f32.mxu0 0.0
        %794 = vmatmul.mubr.f32.gmra.mrb[0].mxu0 %v716
        %v795 = vpop.f32.mrb[0].mxu0
        %v796 = vadd.f32 %v709, %v795
        %v797 = vpop.f32.mrb[0].mxu0
        %798 = vdwg.mxu0
        %vm799 = vcmask 130048
        %v800 = vsel %vm799, %v791, -inf
        %801 = vmax.xlane.f32.xlu0 %v800
        %v802 = vpop.xlane.xlu0 %801
        %v803 = vsel %vm799, %v796, -inf
        %804 = vmax.xlane.f32.xlu0 %v803
        %v805 = vpop.xlane.xlu0 %804
        %v806 = vsub.f32 %v791, %v802
        %v807 = vsub.f32 %v796, %v805
        %v808 = vmul.f32 %v806, 1.442695
        %v809 = vpow.pop %v808
        %v810 = vmul.f32 %v807, 1.442695
        %v811 = vpow.pop %v810
        %v812 = vsel %vm799, %v809, 0.0
        %813 = vadd.xlane.f32.xlu0 %v812
        %v814 = vpop.xlane.xlu0 %813
        %v815 = vsel %vm799, %v811, 0.0
        %816 = vadd.xlane.f32.xlu0 %v815
        %v817 = vpop.xlane.xlu0 %816
        %v818 = vrcp.pop %v814
        %v819 = vrcp.pop %v817
        %v820 = vmul.f32 %v809, %v818
        %v821 = vmul.f32 %v811, %v819
        %v823 = vsel %vm799, %v820, 0
        %v826 = vsel %vm799, %v821, 0
        %828 = vmatprep.subr.mxu0 0.0
        %829 = vmatpush1.msra.mxu0 %v702
        %830 = vmatprep.subr.mxu0 0.0
        %831 = vmatpush1.msra.mxu0 %v703
        %832 = vmatprep.subr.mxu0 0.0
        %833 = vmatpush1.msra.mxu0 0.0
        %834 = vmatprep.subr.mxu0 0.0
        %835 = vmatpush1.msra.mxu0 0.0
        %836 = vmatprep.subr.mxu0 0.0
        %837 = vmatpush1.msra.mxu0 0.0
        %838 = vmatprep.subr.mxu0 0.0
        %839 = vmatpush1.msra.mxu0 0.0
        %840 = vmatprep.subr.mxu0 0.0
        %841 = vmatpush1.msra.mxu0 0.0
        %842 = vmatprep.subr.mxu0 0.0
        %843 = vmatpush1.msra.mxu0 0.0
        %844 = vmatprep.subr.mxu0 0.0
        %845 = vmatpush1.msra.mxu0 0.0
        %846 = vmatprep.subr.mxu0 0.0
        %847 = vmatpush1.msra.mxu0 0.0
        %848 = vmatprep.subr.mxu0 0.0
        %849 = vmatpush1.msra.mxu0 0.0
        %850 = vmatprep.subr.mxu0 0.0
        %851 = vmatpush1.msra.mxu0 0.0
        %852 = vmatprep.subr.mxu0 0.0
        %853 = vmatpush1.msra.mxu0 0.0
        %854 = vmatprep.subr.mxu0 0.0
        %855 = vmatpush1.msra.mxu0 0.0
        %856 = vmatprep.subr.mxu0 0.0
        %857 = vmatpush1.msra.mxu0 0.0
        %858 = vmatprep.subr.mxu0 0.0
        %859 = vmatpush1.msra.mxu0 0.0
        %860 = vmatprep.subr.mxu0 0.0
        %861 = vmatpush1.msra.mxu0 0.0
        %862 = vmatprep.subr.mxu0 0.0
        %863 = vmatpush1.msra.mxu0 0.0
        %864 = vmatprep.subr.mxu0 0.0
        %865 = vmatpush1.msra.mxu0 0.0
        %866 = vmatprep.subr.mxu0 0.0
        %867 = vmatpush1.msra.mxu0 0.0
        %868 = vmatprep.subr.mxu0 0.0
        %869 = vmatpush1.msra.mxu0 0.0
        %870 = vmatprep.subr.mxu0 0.0
        %871 = vmatpush1.msra.mxu0 0.0
        %872 = vmatprep.subr.mxu0 0.0
        %873 = vmatpush1.msra.mxu0 0.0
        %874 = vmatprep.subr.mxu0 0.0
        %875 = vmatpush1.msra.mxu0 0.0
        %876 = vmatprep.subr.mxu0 0.0
        %877 = vmatpush1.msra.mxu0 0.0
        %878 = vmatprep.subr.mxu0 0.0
        %879 = vmatpush1.msra.mxu0 0.0
        %880 = vmatprep.subr.mxu0 0.0
        %881 = vmatpush1.msra.mxu0 0.0
        %882 = vmatprep.subr.mxu0 0.0
        %883 = vmatpush1.msra.mxu0 0.0
        %884 = vmatprep.subr.mxu0 0.0
        %885 = vmatpush1.msra.mxu0 0.0
        %886 = vmatprep.subr.mxu0 0.0
        %887 = vmatpush1.msra.mxu0 0.0
        %888 = vmatprep.subr.mxu0 0.0
        %889 = vmatpush1.msra.mxu0 0.0
        %890 = vmatprep.subr.mxu0 0.0
        %891 = vmatpush1.msra.mxu0 0.0
        %892 = vmatprep.mubr.f32.mxu0 0.0
        %893 = vmatmul.mubr.f32.gmra.mrb[0].mxu0 %v823
        %v894 = vpop.f32.mrb[0].mxu0
        %v895 = vadd.f32 0.0, %v894
        %v896 = vpop.f32.mrb[0].mxu0
        %897 = vmatprep.mubr.f32.mxu0 0.0
        %898 = vmatmul.mubr.f32.gmra.mrb[0].mxu0 %v826
        %v899 = vpop.f32.mrb[0].mxu0
        %v900 = vadd.f32 0.0, %v899
        %v901 = vpop.f32.mrb[0].mxu0
        %902 = vdwg.mxu0
        %903 = vst.msk [vmem:[#allocation4] sm:$0xff] %vm711, %v895
        %904 = vst.msk [vmem:[#allocation4 + $0x8] sm:$0xff] %vm711, %v900
        %905 = vrot.lane.b32.xlu0 %v692, 120
        %v906 = vpop.permute.xlu0 %905
        %907 = vrot.lane.b32.xlu0 %v697, 120
        %v908 = vpop.permute.xlu0 %907
        %909 = vrot.lane.b32.xlu0 %v700, 120
        %v910 = vpop.permute.xlu0 %909
        %911 = vrot.lane.b32.xlu0 %v701, 120
        %v912 = vpop.permute.xlu0 %911
        %v913 = vsel %vm711, %v906, 0
        %v915 = vsel %vm711, %v908, 0
        %v917 = vsel %vm711, %v910, 0
        %v919 = vsel %vm711, %v912, 0
        %921 = vmatprep.subr.mxu0 0.0
        %922 = vmatpush1.xpose.msra.mxu0 %v917
        %923 = vmatprep.subr.mxu0 0.0
        %924 = vmatpush1.xpose.msra.mxu0 %v919
        %925 = vmatprep.subr.mxu0 0.0
        %926 = vmatpush1.xpose.msra.mxu0 0.0
        %927 = vmatprep.subr.mxu0 0.0
        %928 = vmatpush1.xpose.msra.mxu0 0.0
        %929 = vmatprep.subr.mxu0 0.0
        %930 = vmatpush1.xpose.msra.mxu0 0.0
        %931 = vmatprep.subr.mxu0 0.0
        %932 = vmatpush1.xpose.msra.mxu0 0.0
        %933 = vmatprep.subr.mxu0 0.0
        %934 = vmatpush1.xpose.msra.mxu0 0.0
        %935 = vmatprep.subr.mxu0 0.0
        %936 = vmatpush1.xpose.msra.mxu0 0.0
        %937 = vmatprep.subr.mxu0 0.0
        %938 = vmatpush1.xpose.msra.mxu0 0.0
        %939 = vmatprep.subr.mxu0 0.0
        %940 = vmatpush1.xpose.msra.mxu0 0.0
        %941 = vmatprep.subr.mxu0 0.0
        %942 = vmatpush1.xpose.msra.mxu0 0.0
        %943 = vmatprep.subr.mxu0 0.0
        %944 = vmatpush1.xpose.msra.mxu0 0.0
        %945 = vmatprep.subr.mxu0 0.0
        %946 = vmatpush1.xpose.msra.mxu0 0.0
        %947 = vmatprep.subr.mxu0 0.0
        %948 = vmatpush1.xpose.msra.mxu0 0.0
        %949 = vmatprep.subr.mxu0 0.0
        %950 = vmatpush1.xpose.msra.mxu0 0.0
        %951 = vmatprep.subr.mxu0 0.0
        %952 = vmatpush1.xpose.msra.mxu0 0.0
        %953 = vmatprep.subr.mxu0 0.0
        %954 = vmatpush1.xpose.msra.mxu0 0.0
        %955 = vmatprep.subr.mxu0 0.0
        %956 = vmatpush1.xpose.msra.mxu0 0.0
        %957 = vmatprep.subr.mxu0 0.0
        %958 = vmatpush1.xpose.msra.mxu0 0.0
        %959 = vmatprep.subr.mxu0 0.0
        %960 = vmatpush1.xpose.msra.mxu0 0.0
        %961 = vmatprep.subr.mxu0 0.0
        %962 = vmatpush1.xpose.msra.mxu0 0.0
        %963 = vmatprep.subr.mxu0 0.0
        %964 = vmatpush1.xpose.msra.mxu0 0.0
        %965 = vmatprep.subr.mxu0 0.0
        %966 = vmatpush1.xpose.msra.mxu0 0.0
        %967 = vmatprep.subr.mxu0 0.0
        %968 = vmatpush1.xpose.msra.mxu0 0.0
        %969 = vmatprep.subr.mxu0 0.0
        %970 = vmatpush1.xpose.msra.mxu0 0.0
        %971 = vmatprep.subr.mxu0 0.0
        %972 = vmatpush1.xpose.msra.mxu0 0.0
        %973 = vmatprep.subr.mxu0 0.0
        %974 = vmatpush1.xpose.msra.mxu0 0.0
        %975 = vmatprep.subr.mxu0 0.0
        %976 = vmatpush1.xpose.msra.mxu0 0.0
        %977 = vmatprep.subr.mxu0 0.0
        %978 = vmatpush1.xpose.msra.mxu0 0.0
        %979 = vmatprep.subr.mxu0 0.0
        %980 = vmatpush1.xpose.msra.mxu0 0.0
        %981 = vmatprep.subr.mxu0 0.0
        %982 = vmatpush1.xpose.msra.mxu0 0.0
        %983 = vmatprep.subr.mxu0 0.0
        %984 = vmatpush1.xpose.msra.mxu0 0.0
        %985 = vmatprep.mubr.f32.mxu0 0.0
        %986 = vmatmul.mubr.f32.gmra.mrb[0].mxu0 %v913
        %v987 = vpop.f32.mrb[0].mxu0
        %v988 = vadd.f32 %v709, %v987
        %v989 = vpop.f32.mrb[0].mxu0
        %990 = vmatprep.mubr.f32.mxu0 0.0
        %991 = vmatmul.mubr.f32.gmra.mrb[0].mxu0 %v915
        %v992 = vpop.f32.mrb[0].mxu0
        %v993 = vadd.f32 %v709, %v992
        %v994 = vpop.f32.mrb[0].mxu0
        %995 = vdwg.mxu0
        %v996 = vsel %vm799, %v988, -inf
        %997 = vmax.xlane.f32.xlu0 %v996
        %v998 = vpop.xlane.xlu0 %997
        %v999 = vsel %vm799, %v993, -inf
        %1000 = vmax.xlane.f32.xlu0 %v999
        %v1001 = vpop.xlane.xlu0 %1000
        %v1002 = vsub.f32 %v988, %v998
        %v1003 = vsub.f32 %v993, %v1001
        %v1004 = vmul.f32 %v1002, 1.442695
        %v1005 = vpow.pop %v1004
        %v1006 = vmul.f32 %v1003, 1.442695
        %v1007 = vpow.pop %v1006
        %v1008 = vsel %vm799, %v1005, 0.0
        %1009 = vadd.xlane.f32.xlu0 %v1008
        %v1010 = vpop.xlane.xlu0 %1009
        %v1011 = vsel %vm799, %v1007, 0.0
        %1012 = vadd.xlane.f32.xlu0 %v1011
        %v1013 = vpop.xlane.xlu0 %1012
        %v1014 = vrcp.pop %v1010
        %v1015 = vrcp.pop %v1013
        %v1016 = vmul.f32 %v1005, %v1014
        %v1017 = vmul.f32 %v1007, %v1015
        %1020 = vrot.lane.b32.xlu0 %v702, 120
        %v1021 = vpop.permute.xlu0 %1020
        %1022 = vrot.lane.b32.xlu0 %v703, 120
        %v1023 = vpop.permute.xlu0 %1022
        %v1027 = vsel %vm799, %v1016, 0
        %v1030 = vsel %vm799, %v1017, 0
        %1032 = vmatprep.subr.mxu0 0.0
        %1033 = vmatpush1.msra.mxu0 %v1021
        %1034 = vmatprep.subr.mxu0 0.0
        %1035 = vmatpush1.msra.mxu0 %v1023
        %1036 = vmatprep.subr.mxu0 0.0
        %1037 = vmatpush1.msra.mxu0 0.0
        %1038 = vmatprep.subr.mxu0 0.0
        %1039 = vmatpush1.msra.mxu0 0.0
        %1040 = vmatprep.subr.mxu0 0.0
        %1041 = vmatpush1.msra.mxu0 0.0
        %1042 = vmatprep.subr.mxu0 0.0
        %1043 = vmatpush1.msra.mxu0 0.0
        %1044 = vmatprep.subr.mxu0 0.0
        %1045 = vmatpush1.msra.mxu0 0.0
        %1046 = vmatprep.subr.mxu0 0.0
        %1047 = vmatpush1.msra.mxu0 0.0
        %1048 = vmatprep.subr.mxu0 0.0
        %1049 = vmatpush1.msra.mxu0 0.0
        %1050 = vmatprep.subr.mxu0 0.0
        %1051 = vmatpush1.msra.mxu0 0.0
        %1052 = vmatprep.subr.mxu0 0.0
        %1053 = vmatpush1.msra.mxu0 0.0
        %1054 = vmatprep.subr.mxu0 0.0
        %1055 = vmatpush1.msra.mxu0 0.0
        %1056 = vmatprep.subr.mxu0 0.0
        %1057 = vmatpush1.msra.mxu0 0.0
        %1058 = vmatprep.subr.mxu0 0.0
        %1059 = vmatpush1.msra.mxu0 0.0
        %1060 = vmatprep.subr.mxu0 0.0
        %1061 = vmatpush1.msra.mxu0 0.0
        %1062 = vmatprep.subr.mxu0 0.0
        %1063 = vmatpush1.msra.mxu0 0.0
        %1064 = vmatprep.subr.mxu0 0.0
        %1065 = vmatpush1.msra.mxu0 0.0
        %1066 = vmatprep.subr.mxu0 0.0
        %1067 = vmatpush1.msra.mxu0 0.0
        %1068 = vmatprep.subr.mxu0 0.0
        %1069 = vmatpush1.msra.mxu0 0.0
        %1070 = vmatprep.subr.mxu0 0.0
        %1071 = vmatpush1.msra.mxu0 0.0
        %1072 = vmatprep.subr.mxu0 0.0
        %1073 = vmatpush1.msra.mxu0 0.0
        %1074 = vmatprep.subr.mxu0 0.0
        %1075 = vmatpush1.msra.mxu0 0.0
        %1076 = vmatprep.subr.mxu0 0.0
        %1077 = vmatpush1.msra.mxu0 0.0
        %1078 = vmatprep.subr.mxu0 0.0
        %1079 = vmatpush1.msra.mxu0 0.0
        %1080 = vmatprep.subr.mxu0 0.0
        %1081 = vmatpush1.msra.mxu0 0.0
        %1082 = vmatprep.subr.mxu0 0.0
        %1083 = vmatpush1.msra.mxu0 0.0
        %1084 = vmatprep.subr.mxu0 0.0
        %1085 = vmatpush1.msra.mxu0 0.0
        %1086 = vmatprep.subr.mxu0 0.0
        %1087 = vmatpush1.msra.mxu0 0.0
        %1088 = vmatprep.subr.mxu0 0.0
        %1089 = vmatpush1.msra.mxu0 0.0
        %1090 = vmatprep.subr.mxu0 0.0
        %1091 = vmatpush1.msra.mxu0 0.0
        %1092 = vmatprep.subr.mxu0 0.0
        %1093 = vmatpush1.msra.mxu0 0.0
        %1094 = vmatprep.subr.mxu0 0.0
        %1095 = vmatpush1.msra.mxu0 0.0
        %1096 = vmatprep.mubr.f32.mxu0 0.0
        %1097 = vmatmul.mubr.f32.gmra.mrb[0].mxu0 %v1027
        %v1098 = vpop.f32.mrb[0].mxu0
        %v1099 = vadd.f32 0.0, %v1098
        %v1100 = vpop.f32.mrb[0].mxu0
        %1101 = vmatprep.mubr.f32.mxu0 0.0
        %1102 = vmatmul.mubr.f32.gmra.mrb[0].mxu0 %v1030
        %v1103 = vpop.f32.mrb[0].mxu0
        %v1104 = vadd.f32 0.0, %v1103
        %v1105 = vpop.f32.mrb[0].mxu0
        %1106 = vdwg.mxu0
        %1109 = vrot.lane.b32.xlu0 %v1099, 8
        %v1110 = vpop.permute.xlu0 %1109
        %1111 = vrot.lane.b32.xlu0 %v1104, 8
        %v1112 = vpop.permute.xlu0 %1111
        %vm1115 = vcmask 130112
        %1116 = vst.msk [vmem:[#allocation4] sm:$0xff] %vm1115, %v1110
        %1117 = vst.msk [vmem:[#allocation4 + $0x8] sm:$0xff] %vm1115, %v1112
        %1118 = vrot.lane.b32.xlu0 %v692, 112
        %v1119 = vpop.permute.xlu0 %1118
        %1120 = vrot.lane.b32.xlu0 %v697, 112
        %v1121 = vpop.permute.xlu0 %1120
        %1122 = vrot.lane.b32.xlu0 %v700, 112
        %v1123 = vpop.permute.xlu0 %1122
        %1124 = vrot.lane.b32.xlu0 %v701, 112
        %v1125 = vpop.permute.xlu0 %1124
        %v1126 = vsel %vm711, %v1119, 0
        %v1128 = vsel %vm711, %v1121, 0
        %v1130 = vsel %vm711, %v1123, 0
        %v1132 = vsel %vm711, %v1125, 0
        %1134 = vmatprep.subr.mxu0 0.0
        %1135 = vmatpush1.xpose.msra.mxu0 %v1130
        %1136 = vmatprep.subr.mxu0 0.0
        %1137 = vmatpush1.xpose.msra.mxu0 %v1132
        %1138 = vmatprep.subr.mxu0 0.0
        %1139 = vmatpush1.xpose.msra.mxu0 0.0
        %1140 = vmatprep.subr.mxu0 0.0
        %1141 = vmatpush1.xpose.msra.mxu0 0.0
        %1142 = vmatprep.subr.mxu0 0.0
        %1143 = vmatpush1.xpose.msra.mxu0 0.0
        %1144 = vmatprep.subr.mxu0 0.0
        %1145 = vmatpush1.xpose.msra.mxu0 0.0
        %1146 = vmatprep.subr.mxu0 0.0
        %1147 = vmatpush1.xpose.msra.mxu0 0.0
        %1148 = vmatprep.subr.mxu0 0.0
        %1149 = vmatpush1.xpose.msra.mxu0 0.0
        %1150 = vmatprep.subr.mxu0 0.0
        %1151 = vmatpush1.xpose.msra.mxu0 0.0
        %1152 = vmatprep.subr.mxu0 0.0
        %1153 = vmatpush1.xpose.msra.mxu0 0.0
        %1154 = vmatprep.subr.mxu0 0.0
        %1155 = vmatpush1.xpose.msra.mxu0 0.0
        %1156 = vmatprep.subr.mxu0 0.0
        %1157 = vmatpush1.xpose.msra.mxu0 0.0
        %1158 = vmatprep.subr.mxu0 0.0
        %1159 = vmatpush1.xpose.msra.mxu0 0.0
        %1160 = vmatprep.subr.mxu0 0.0
        %1161 = vmatpush1.xpose.msra.mxu0 0.0
        %1162 = vmatprep.subr.mxu0 0.0
        %1163 = vmatpush1.xpose.msra.mxu0 0.0
        %1164 = vmatprep.subr.mxu0 0.0
        %1165 = vmatpush1.xpose.msra.mxu0 0.0
        %1166 = vmatprep.subr.mxu0 0.0
        %1167 = vmatpush1.xpose.msra.mxu0 0.0
        %1168 = vmatprep.subr.mxu0 0.0
        %1169 = vmatpush1.xpose.msra.mxu0 0.0
        %1170 = vmatprep.subr.mxu0 0.0
        %1171 = vmatpush1.xpose.msra.mxu0 0.0
        %1172 = vmatprep.subr.mxu0 0.0
        %1173 = vmatpush1.xpose.msra.mxu0 0.0
        %1174 = vmatprep.subr.mxu0 0.0
        %1175 = vmatpush1.xpose.msra.mxu0 0.0
        %1176 = vmatprep.subr.mxu0 0.0
        %1177 = vmatpush1.xpose.msra.mxu0 0.0
        %1178 = vmatprep.subr.mxu0 0.0
        %1179 = vmatpush1.xpose.msra.mxu0 0.0
        %1180 = vmatprep.subr.mxu0 0.0
        %1181 = vmatpush1.xpose.msra.mxu0 0.0
        %1182 = vmatprep.subr.mxu0 0.0
        %1183 = vmatpush1.xpose.msra.mxu0 0.0
        %1184 = vmatprep.subr.mxu0 0.0
        %1185 = vmatpush1.xpose.msra.mxu0 0.0
        %1186 = vmatprep.subr.mxu0 0.0
        %1187 = vmatpush1.xpose.msra.mxu0 0.0
        %1188 = vmatprep.subr.mxu0 0.0
        %1189 = vmatpush1.xpose.msra.mxu0 0.0
        %1190 = vmatprep.subr.mxu0 0.0
        %1191 = vmatpush1.xpose.msra.mxu0 0.0
        %1192 = vmatprep.subr.mxu0 0.0
        %1193 = vmatpush1.xpose.msra.mxu0 0.0
        %1194 = vmatprep.subr.mxu0 0.0
        %1195 = vmatpush1.xpose.msra.mxu0 0.0
        %1196 = vmatprep.subr.mxu0 0.0
        %1197 = vmatpush1.xpose.msra.mxu0 0.0
        %1198 = vmatprep.mubr.f32.mxu0 0.0
        %1199 = vmatmul.mubr.f32.gmra.mrb[0].mxu0 %v1126
        %v1200 = vpop.f32.mrb[0].mxu0
        %v1201 = vadd.f32 %v709, %v1200
        %v1202 = vpop.f32.mrb[0].mxu0
        %1203 = vmatprep.mubr.f32.mxu0 0.0
        %1204 = vmatmul.mubr.f32.gmra.mrb[0].mxu0 %v1128
        %v1205 = vpop.f32.mrb[0].mxu0
        %v1206 = vadd.f32 %v709, %v1205
        %v1207 = vpop.f32.mrb[0].mxu0
        %1208 = vdwg.mxu0
        %v1209 = vsel %vm799, %v1201, -inf
        %1210 = vmax.xlane.f32.xlu0 %v1209
        %v1211 = vpop.xlane.xlu0 %1210
        %v1212 = vsel %vm799, %v1206, -inf
        %1213 = vmax.xlane.f32.xlu0 %v1212
        %v1214 = vpop.xlane.xlu0 %1213
        %v1215 = vsub.f32 %v1201, %v1211
        %v1216 = vsub.f32 %v1206, %v1214
        %v1217 = vmul.f32 %v1215, 1.442695
        %v1218 = vpow.pop %v1217
        %v1219 = vmul.f32 %v1216, 1.442695
        %v1220 = vpow.pop %v1219
        %v1221 = vsel %vm799, %v1218, 0.0
        %1222 = vadd.xlane.f32.xlu0 %v1221
        %v1223 = vpop.xlane.xlu0 %1222
        %v1224 = vsel %vm799, %v1220, 0.0
        %1225 = vadd.xlane.f32.xlu0 %v1224
        %v1226 = vpop.xlane.xlu0 %1225
        %v1227 = vrcp.pop %v1223
        %v1228 = vrcp.pop %v1226
        %v1229 = vmul.f32 %v1218, %v1227
        %v1230 = vmul.f32 %v1220, %v1228
        %1231 = vrot.lane.b32.xlu0 %v702, 112
        %v1232 = vpop.permute.xlu0 %1231
        %1233 = vrot.lane.b32.xlu0 %v703, 112
        %v1234 = vpop.permute.xlu0 %1233
        %v1238 = vsel %vm799, %v1229, 0
        %v1241 = vsel %vm799, %v1230, 0
        %1243 = vmatprep.subr.mxu0 0.0
        %1244 = vmatpush1.msra.mxu0 %v1232
        %1245 = vmatprep.subr.mxu0 0.0
        %1246 = vmatpush1.msra.mxu0 %v1234
        %1247 = vmatprep.subr.mxu0 0.0
        %1248 = vmatpush1.msra.mxu0 0.0
        %1249 = vmatprep.subr.mxu0 0.0
        %1250 = vmatpush1.msra.mxu0 0.0
        %1251 = vmatprep.subr.mxu0 0.0
        %1252 = vmatpush1.msra.mxu0 0.0
        %1253 = vmatprep.subr.mxu0 0.0
        %1254 = vmatpush1.msra.mxu0 0.0
        %1255 = vmatprep.subr.mxu0 0.0
        %1256 = vmatpush1.msra.mxu0 0.0
        %1257 = vmatprep.subr.mxu0 0.0
        %1258 = vmatpush1.msra.mxu0 0.0
        %1259 = vmatprep.subr.mxu0 0.0
        %1260 = vmatpush1.msra.mxu0 0.0
        %1261 = vmatprep.subr.mxu0 0.0
        %1262 = vmatpush1.msra.mxu0 0.0
        %1263 = vmatprep.subr.mxu0 0.0
        %1264 = vmatpush1.msra.mxu0 0.0
        %1265 = vmatprep.subr.mxu0 0.0
        %1266 = vmatpush1.msra.mxu0 0.0
        %1267 = vmatprep.subr.mxu0 0.0
        %1268 = vmatpush1.msra.mxu0 0.0
        %1269 = vmatprep.subr.mxu0 0.0
        %1270 = vmatpush1.msra.mxu0 0.0
        %1271 = vmatprep.subr.mxu0 0.0
        %1272 = vmatpush1.msra.mxu0 0.0
        %1273 = vmatprep.subr.mxu0 0.0
        %1274 = vmatpush1.msra.mxu0 0.0
        %1275 = vmatprep.subr.mxu0 0.0
        %1276 = vmatpush1.msra.mxu0 0.0
        %1277 = vmatprep.subr.mxu0 0.0
        %1278 = vmatpush1.msra.mxu0 0.0
        %1279 = vmatprep.subr.mxu0 0.0
        %1280 = vmatpush1.msra.mxu0 0.0
        %1281 = vmatprep.subr.mxu0 0.0
        %1282 = vmatpush1.msra.mxu0 0.0
        %1283 = vmatprep.subr.mxu0 0.0
        %1284 = vmatpush1.msra.mxu0 0.0
        %1285 = vmatprep.subr.mxu0 0.0
        %1286 = vmatpush1.msra.mxu0 0.0
        %1287 = vmatprep.subr.mxu0 0.0
        %1288 = vmatpush1.msra.mxu0 0.0
        %1289 = vmatprep.subr.mxu0 0.0
        %1290 = vmatpush1.msra.mxu0 0.0
        %1291 = vmatprep.subr.mxu0 0.0
        %1292 = vmatpush1.msra.mxu0 0.0
        %1293 = vmatprep.subr.mxu0 0.0
        %1294 = vmatpush1.msra.mxu0 0.0
        %1295 = vmatprep.subr.mxu0 0.0
        %1296 = vmatpush1.msra.mxu0 0.0
        %1297 = vmatprep.subr.mxu0 0.0
        %1298 = vmatpush1.msra.mxu0 0.0
        %1299 = vmatprep.subr.mxu0 0.0
        %1300 = vmatpush1.msra.mxu0 0.0
        %1301 = vmatprep.subr.mxu0 0.0
        %1302 = vmatpush1.msra.mxu0 0.0
        %1303 = vmatprep.subr.mxu0 0.0
        %1304 = vmatpush1.msra.mxu0 0.0
        %1305 = vmatprep.subr.mxu0 0.0
        %1306 = vmatpush1.msra.mxu0 0.0
        %1307 = vmatprep.mubr.f32.mxu0 0.0
        %1308 = vmatmul.mubr.f32.gmra.mrb[0].mxu0 %v1238
        %v1309 = vpop.f32.mrb[0].mxu0
        %v1310 = vadd.f32 0.0, %v1309
        %v1311 = vpop.f32.mrb[0].mxu0
        %1312 = vmatprep.mubr.f32.mxu0 0.0
        %1313 = vmatmul.mubr.f32.gmra.mrb[0].mxu0 %v1241
        %v1314 = vpop.f32.mrb[0].mxu0
        %v1315 = vadd.f32 0.0, %v1314
        %v1316 = vpop.f32.mrb[0].mxu0
        %1317 = vdwg.mxu0
        %1320 = vrot.lane.b32.xlu0 %v1310, 16
        %v1321 = vpop.permute.xlu0 %1320
        %1322 = vrot.lane.b32.xlu0 %v1315, 16
        %v1323 = vpop.permute.xlu0 %1322
        %vm1326 = vcmask 195712
        %1327 = vst.msk [vmem:[#allocation4] sm:$0xff] %vm1326, %v1321
        %1328 = vst.msk [vmem:[#allocation4 + $0x8] sm:$0xff] %vm1326, %v1323
        %1329 = vrot.lane.b32.xlu0 %v692, 104
        %v1330 = vpop.permute.xlu0 %1329
        %1331 = vrot.lane.b32.xlu0 %v697, 104
        %v1332 = vpop.permute.xlu0 %1331
        %1333 = vrot.lane.b32.xlu0 %v700, 104
        %v1334 = vpop.permute.xlu0 %1333
        %1335 = vrot.lane.b32.xlu0 %v701, 104
        %v1336 = vpop.permute.xlu0 %1335
        %v1337 = vsel %vm711, %v1330, 0
        %v1339 = vsel %vm711, %v1332, 0
        %v1341 = vsel %vm711, %v1334, 0
        %v1343 = vsel %vm711, %v1336, 0
        %1345 = vmatprep.subr.mxu0 0.0
        %1346 = vmatpush1.xpose.msra.mxu0 %v1341
        %1347 = vmatprep.subr.mxu0 0.0
        %1348 = vmatpush1.xpose.msra.mxu0 %v1343
        %1349 = vmatprep.subr.mxu0 0.0
        %1350 = vmatpush1.xpose.msra.mxu0 0.0
        %1351 = vmatprep.subr.mxu0 0.0
        %1352 = vmatpush1.xpose.msra.mxu0 0.0
        %1353 = vmatprep.subr.mxu0 0.0
        %1354 = vmatpush1.xpose.msra.mxu0 0.0
        %1355 = vmatprep.subr.mxu0 0.0
        %1356 = vmatpush1.xpose.msra.mxu0 0.0
        %1357 = vmatprep.subr.mxu0 0.0
        %1358 = vmatpush1.xpose.msra.mxu0 0.0
        %1359 = vmatprep.subr.mxu0 0.0
        %1360 = vmatpush1.xpose.msra.mxu0 0.0
        %1361 = vmatprep.subr.mxu0 0.0
        %1362 = vmatpush1.xpose.msra.mxu0 0.0
        %1363 = vmatprep.subr.mxu0 0.0
        %1364 = vmatpush1.xpose.msra.mxu0 0.0
        %1365 = vmatprep.subr.mxu0 0.0
        %1366 = vmatpush1.xpose.msra.mxu0 0.0
        %1367 = vmatprep.subr.mxu0 0.0
        %1368 = vmatpush1.xpose.msra.mxu0 0.0
        %1369 = vmatprep.subr.mxu0 0.0
        %1370 = vmatpush1.xpose.msra.mxu0 0.0
        %1371 = vmatprep.subr.mxu0 0.0
        %1372 = vmatpush1.xpose.msra.mxu0 0.0
        %1373 = vmatprep.subr.mxu0 0.0
        %1374 = vmatpush1.xpose.msra.mxu0 0.0
        %1375 = vmatprep.subr.mxu0 0.0
        %1376 = vmatpush1.xpose.msra.mxu0 0.0
        %1377 = vmatprep.subr.mxu0 0.0
        %1378 = vmatpush1.xpose.msra.mxu0 0.0
        %1379 = vmatprep.subr.mxu0 0.0
        %1380 = vmatpush1.xpose.msra.mxu0 0.0
        %1381 = vmatprep.subr.mxu0 0.0
        %1382 = vmatpush1.xpose.msra.mxu0 0.0
        %1383 = vmatprep.subr.mxu0 0.0
        %1384 = vmatpush1.xpose.msra.mxu0 0.0
        %1385 = vmatprep.subr.mxu0 0.0
        %1386 = vmatpush1.xpose.msra.mxu0 0.0
        %1387 = vmatprep.subr.mxu0 0.0
        %1388 = vmatpush1.xpose.msra.mxu0 0.0
        %1389 = vmatprep.subr.mxu0 0.0
        %1390 = vmatpush1.xpose.msra.mxu0 0.0
        %1391 = vmatprep.subr.mxu0 0.0
        %1392 = vmatpush1.xpose.msra.mxu0 0.0
        %1393 = vmatprep.subr.mxu0 0.0
        %1394 = vmatpush1.xpose.msra.mxu0 0.0
        %1395 = vmatprep.subr.mxu0 0.0
        %1396 = vmatpush1.xpose.msra.mxu0 0.0
        %1397 = vmatprep.subr.mxu0 0.0
        %1398 = vmatpush1.xpose.msra.mxu0 0.0
        %1399 = vmatprep.subr.mxu0 0.0
        %1400 = vmatpush1.xpose.msra.mxu0 0.0
        %1401 = vmatprep.subr.mxu0 0.0
        %1402 = vmatpush1.xpose.msra.mxu0 0.0
        %1403 = vmatprep.subr.mxu0 0.0
        %1404 = vmatpush1.xpose.msra.mxu0 0.0
        %1405 = vmatprep.subr.mxu0 0.0
        %1406 = vmatpush1.xpose.msra.mxu0 0.0
        %1407 = vmatprep.subr.mxu0 0.0
        %1408 = vmatpush1.xpose.msra.mxu0 0.0
        %1409 = vmatprep.mubr.f32.mxu0 0.0
        %1410 = vmatmul.mubr.f32.gmra.mrb[0].mxu0 %v1337
        %v1411 = vpop.f32.mrb[0].mxu0
        %v1412 = vadd.f32 %v709, %v1411
        %v1413 = vpop.f32.mrb[0].mxu0
        %1414 = vmatprep.mubr.f32.mxu0 0.0
        %1415 = vmatmul.mubr.f32.gmra.mrb[0].mxu0 %v1339
        %v1416 = vpop.f32.mrb[0].mxu0
        %v1417 = vadd.f32 %v709, %v1416
        %v1418 = vpop.f32.mrb[0].mxu0
        %1419 = vdwg.mxu0
        %v1420 = vsel %vm799, %v1412, -inf
        %1421 = vmax.xlane.f32.xlu0 %v1420
        %v1422 = vpop.xlane.xlu0 %1421
        %v1423 = vsel %vm799, %v1417, -inf
        %1424 = vmax.xlane.f32.xlu0 %v1423
        %v1425 = vpop.xlane.xlu0 %1424
        %v1426 = vsub.f32 %v1412, %v1422
        %v1427 = vsub.f32 %v1417, %v1425
        %v1428 = vmul.f32 %v1426, 1.442695
        %v1429 = vpow.pop %v1428
        %v1430 = vmul.f32 %v1427, 1.442695
        %v1431 = vpow.pop %v1430
        %v1432 = vsel %vm799, %v1429, 0.0
        %1433 = vadd.xlane.f32.xlu0 %v1432
        %v1434 = vpop.xlane.xlu0 %1433
        %v1435 = vsel %vm799, %v1431, 0.0
        %1436 = vadd.xlane.f32.xlu0 %v1435
        %v1437 = vpop.xlane.xlu0 %1436
        %v1438 = vrcp.pop %v1434
        %v1439 = vrcp.pop %v1437
        %v1440 = vmul.f32 %v1429, %v1438
        %v1441 = vmul.f32 %v1431, %v1439
        %1442 = vrot.lane.b32.xlu0 %v702, 104
        %v1443 = vpop.permute.xlu0 %1442
        %1444 = vrot.lane.b32.xlu0 %v703, 104
        %v1445 = vpop.permute.xlu0 %1444
        %v1449 = vsel %vm799, %v1440, 0
        %v1452 = vsel %vm799, %v1441, 0
        %1454 = vmatprep.subr.mxu0 0.0
        %1455 = vmatpush1.msra.mxu0 %v1443
        %1456 = vmatprep.subr.mxu0 0.0
        %1457 = vmatpush1.msra.mxu0 %v1445
        %1458 = vmatprep.subr.mxu0 0.0
        %1459 = vmatpush1.msra.mxu0 0.0
        %1460 = vmatprep.subr.mxu0 0.0
        %1461 = vmatpush1.msra.mxu0 0.0
        %1462 = vmatprep.subr.mxu0 0.0
        %1463 = vmatpush1.msra.mxu0 0.0
        %1464 = vmatprep.subr.mxu0 0.0
        %1465 = vmatpush1.msra.mxu0 0.0
        %1466 = vmatprep.subr.mxu0 0.0
        %1467 = vmatpush1.msra.mxu0 0.0
        %1468 = vmatprep.subr.mxu0 0.0
        %1469 = vmatpush1.msra.mxu0 0.0
        %1470 = vmatprep.subr.mxu0 0.0
        %1471 = vmatpush1.msra.mxu0 0.0
        %1472 = vmatprep.subr.mxu0 0.0
        %1473 = vmatpush1.msra.mxu0 0.0
        %1474 = vmatprep.subr.mxu0 0.0
        %1475 = vmatpush1.msra.mxu0 0.0
        %1476 = vmatprep.subr.mxu0 0.0
        %1477 = vmatpush1.msra.mxu0 0.0
        %1478 = vmatprep.subr.mxu0 0.0
        %1479 = vmatpush1.msra.mxu0 0.0
        %1480 = vmatprep.subr.mxu0 0.0
        %1481 = vmatpush1.msra.mxu0 0.0
        %1482 = vmatprep.subr.mxu0 0.0
        %1483 = vmatpush1.msra.mxu0 0.0
        %1484 = vmatprep.subr.mxu0 0.0
        %1485 = vmatpush1.msra.mxu0 0.0
        %1486 = vmatprep.subr.mxu0 0.0
        %1487 = vmatpush1.msra.mxu0 0.0
        %1488 = vmatprep.subr.mxu0 0.0
        %1489 = vmatpush1.msra.mxu0 0.0
        %1490 = vmatprep.subr.mxu0 0.0
        %1491 = vmatpush1.msra.mxu0 0.0
        %1492 = vmatprep.subr.mxu0 0.0
        %1493 = vmatpush1.msra.mxu0 0.0
        %1494 = vmatprep.subr.mxu0 0.0
        %1495 = vmatpush1.msra.mxu0 0.0
        %1496 = vmatprep.subr.mxu0 0.0
        %1497 = vmatpush1.msra.mxu0 0.0
        %1498 = vmatprep.subr.mxu0 0.0
        %1499 = vmatpush1.msra.mxu0 0.0
        %1500 = vmatprep.subr.mxu0 0.0
        %1501 = vmatpush1.msra.mxu0 0.0
        %1502 = vmatprep.subr.mxu0 0.0
        %1503 = vmatpush1.msra.mxu0 0.0
        %1504 = vmatprep.subr.mxu0 0.0
        %1505 = vmatpush1.msra.mxu0 0.0
        %1506 = vmatprep.subr.mxu0 0.0
        %1507 = vmatpush1.msra.mxu0 0.0
        %1508 = vmatprep.subr.mxu0 0.0
        %1509 = vmatpush1.msra.mxu0 0.0
        %1510 = vmatprep.subr.mxu0 0.0
        %1511 = vmatpush1.msra.mxu0 0.0
        %1512 = vmatprep.subr.mxu0 0.0
        %1513 = vmatpush1.msra.mxu0 0.0
        %1514 = vmatprep.subr.mxu0 0.0
        %1515 = vmatpush1.msra.mxu0 0.0
        %1516 = vmatprep.subr.mxu0 0.0
        %1517 = vmatpush1.msra.mxu0 0.0
        %1518 = vmatprep.mubr.f32.mxu0 0.0
        %1519 = vmatmul.mubr.f32.gmra.mrb[0].mxu0 %v1449
        %v1520 = vpop.f32.mrb[0].mxu0
        %v1521 = vadd.f32 0.0, %v1520
        %v1522 = vpop.f32.mrb[0].mxu0
        %1523 = vmatprep.mubr.f32.mxu0 0.0
        %1524 = vmatmul.mubr.f32.gmra.mrb[0].mxu0 %v1452
        %v1525 = vpop.f32.mrb[0].mxu0
        %v1526 = vadd.f32 0.0, %v1525
        %v1527 = vpop.f32.mrb[0].mxu0
        %1528 = vdwg.mxu0
        %1531 = vrot.lane.b32.xlu0 %v1521, 24
        %v1532 = vpop.permute.xlu0 %1531
        %1533 = vrot.lane.b32.xlu0 %v1526, 24
        %v1534 = vpop.permute.xlu0 %1533
        %vm1537 = vcmask 261312
        %1538 = vst.msk [vmem:[#allocation4] sm:$0xff] %vm1537, %v1532
        %1539 = vst.msk [vmem:[#allocation4 + $0x8] sm:$0xff] %vm1537, %v1534
        %v1540 = vld [vmem:[#allocation4] sm:$0xff]
        %v1541 = vld [vmem:[#allocation4 + $0x8] sm:$0xff]
        %1542 = vst.msk [vmem:[%s401] sm:$0xff] %vm618, %v1540
        %1543 = vst.msk [vmem:[%s401 + $0x8] sm:$0xff] %vm618, %v1541
        %s1544 = sand.u32 %s236, 1
        %s1545 = scalar_lea.sflag [#allocation7], %s1544
        %s1546 = sand.u32 %s236, 1
        %s1547 = smul.addr %s1546, 16
        %s1548 = scalar_lea.vmem [#allocation13], %s1547
        // Predicated region
        $region73: #{tpu_custom_call.1} parent=51 // pred_check
          %p1549 = pneg %p246
        $region74: #{tpu_custom_call.1} parent=51 // pred_check_branch
          %1551 = sbr.rel (%p1549) target = $region76
        $region75: #{tpu_custom_call.1} parent=51 // pred_region
          %s1552 = smul.u32 2, %s34
          %s1554 = ssub.s32 256, 256
          %1555 = vsyncadd %s1545, %s1554
          %s1556 = sadd.s32 %s33, %s1552
          %s1557 = smul.addr %s32, 2
          %s1558 = sadd.s32 %s1556, %s1557
          %s1559 = smul.addr %s1558, 128
          %s1560 = scalar_lea.hbm %s8, %s1559
          %s1561 = sshll.u32 %s1548, 4
          %s1562 = int_to_ptr.vmem [resolvable:$true] %s1561
          %1567 = dma.vmem_to_hbm [thread:$0]  %s1562, 256, %s1560, %s1545, 128, 128, 8
        $region76: #{tpu_custom_call.1} parent=51 // pred_fallthru
          _
      $region52: #{tpu_custom_call.1} parent=5 // pred_fallthru
        _
      %p1568 = scmp.le.s32.totalorder 2, %s22
      // Predicated region
      $region77: #{tpu_custom_call.1} parent=5 // pred_check
        %p1569 = pneg %p1568
      $region78: #{tpu_custom_call.1} parent=5 // pred_check_branch
        %1571 = sbr.rel (%p1569) target = $region80
      $region79: #{tpu_custom_call.1} parent=5 // pred_region
        %s1572 = ssub.s32 %s22, 2
        // Predicated region
        $region81: #{tpu_custom_call.1} parent=79 // pred_check
          %p1573 = pneg %p252
        $region82: #{tpu_custom_call.1} parent=79 // pred_check_branch
          %1575 = sbr.rel (%p1573) target = $region84
        $region83: #{tpu_custom_call.1} parent=79 // pred_region
          %s1576 = sand.u32 %s237, 1
          %s1577 = scalar_lea.sflag [#allocation7], %s1576
          %s1578 = sand.u32 %s237, 1
          %s1579 = smul.addr %s1578, 16
          %s1580 = scalar_lea.vmem [#allocation13], %s1579
          %1581 = dma.done %s1577, 256
        $region84: #{tpu_custom_call.1} parent=79 // pred_fallthru
          _
      $region80: #{tpu_custom_call.1} parent=5 // pred_fallthru
        _
    $region6: #{tpu_custom_call.1} parent=1 // loop_footer
      %s26 = sadd.s32 1, %s22
    $region7: #{tpu_custom_call.1} parent=1 // loop_footer_branch
      %21 = sbr.rel target = $region3
    $region8: #{tpu_custom_call.1} parent=1 // loop_exit
      _
    %1582 = vsyncpa [#allocation6], 1
    %s1583 = scalar_lea.sflag [#allocation6], 1
    %1584 = vsyncpa %s1583, 1
    %1585 = vsyncpa [#allocation9], 1
    %1586 = vsyncpa [#allocation12], 1
    %1587 = vsyncpa [#allocation7], 1
    %s1588 = scalar_lea.sflag [#allocation7], 1
    %1589 = vsyncpa %s1588, 1

// kernel: tpu_custom_call.1
$region0: #{tpu_custom_call.1}
  #allocation0 [shape = 'u32[]', space=smem, size = 0x4, offset = 0x4, fixed_abs, tag = 'smem constant byte address 0x4 - core index']
  #allocation1 [shape = 'u32[144,128]{1,0:T(1,128)}', space=vmem, size = 0x12000, scoped, tag = 'internal scratch']
  #allocation2 [shape = 'f32[16,32]{1,0:T(8,128)}', space=vmem, size = 0x2000, scoped, tag = 'scratch operand']
  #allocation3 [shape = 'f32[16,32]{1,0:T(8,128)}', space=vmem, size = 0x2000, scoped, tag = 'scratch operand']
  #allocation4 [shape = 'f32[16,32]{1,0:T(8,128)}', space=vmem, size = 0x2000, scoped, tag = 'scratch operand']
  %s0 = inlined_call_operand.hbm [shape: f32[2,16,32], index: 0, kind: input, shape index: {}]
  %s1 = inlined_call_operand.hbm [shape: f32[1,32,32], index: 1, kind: input, shape index: {}]
  %s2 = inlined_call_operand.hbm [shape: f32[1,32,32], index: 2, kind: input, shape index: {}]
  %s3 = inlined_call_operand.hbm [shape: f32[1,32,32], index: 3, kind: input, shape index: {}]
  %s4 = inlined_call_operand.vmem [shape: f32[1,1,32], index: 4, kind: input, shape index: {}]
  %s5 = inlined_call_operand.vmem [shape: f32[1,1,32], index: 5, kind: input, shape index: {}]
  %s6 = inlined_call_operand.vmem [shape: f32[1,1,32], index: 6, kind: input, shape index: {}]
  %s7 = inlined_call_operand.vmem [shape: f32[2,1,16], index: 7, kind: input, shape index: {}]
  %s8 = inlined_call_operand.hbm [shape: f32[2,16,32], index: 8, kind: output, shape index: {}]
  %s9 = sld [smem:[#allocation0]]
  $region85: #{tpu_custom_call.1} parent=0
    _
  %s11 = ssub.s32 1, %s9
  %s12 = scalar_select 0, %s11, %s9
  $region1: #{tpu_custom_call.1} parent=0
    #allocation5 [shape = 'u8[16384]{0}', space=vmem, size = 0x4000, scoped, tag = 'input window, operand 0']
    #allocation6 [shape = 's32[2]{0}', space=sflag, size = 0x8, scoped, tag = 'scoped memory for tpu_custom_call.1']
    #allocation7 [shape = 's32[2]{0}', space=sflag, size = 0x8, scoped, tag = 'scoped memory for tpu_custom_call.1']
    #allocation8 [shape = 'u8[16384]{0}', space=vmem, size = 0x4000, scoped, tag = 'input window, operand 1, single buffered']
    #allocation9 [shape = 's32[1]{0}', space=sflag, size = 0x4, scoped, tag = 'scoped memory for tpu_custom_call.1']
    #allocation10 [shape = 'u8[16384]{0}', space=vmem, size = 0x4000, scoped, tag = 'input window, operand 2, single buffered']
    #allocation11 [shape = 'u8[16384]{0}', space=vmem, size = 0x4000, scoped, tag = 'input window, operand 3, single buffered']
    #allocation12 [shape = 's32[1]{0}', space=sflag, size = 0x4, scoped, tag = 'scoped memory for tpu_custom_call.1']
    #allocation13 [shape = 'u8[16384]{0}', space=vmem, size = 0x4000, scoped, tag = 'output window, operand 0']
    %13 = vsyncpa [#allocation6], 0
    %s14 = scalar_lea.sflag [#allocation6], 1
    %15 = vsyncpa %s14, 0
    %16 = vsyncpa [#allocation9], 0
    %17 = vsyncpa [#allocation12], 0
    %18 = vsyncpa [#allocation7], 0
    %s19 = scalar_lea.sflag [#allocation7], 1
    %20 = vsyncpa %s19, 0
    loop: start=0, step=1, limit=4
    $region2: #{tpu_custom_call.1} parent=1 // loop_pre_header
      _
    $region3: #{tpu_custom_call.1} parent=1 // loop_header
      %s22 = sphi 0, %s26
      %p23 = scmp.ge.s32.totalorder %s22, 4
      %s29 = sphi 0, %s48
      %s30 = sphi 0, %s44
      %s31 = sphi 0, %s40
      %s32 = sphi 0, %s29
      %s33 = sphi 0, %s30
      %s34 = sphi 0, %s31
      %s35 = sphi 0, %s32
      %s36 = sphi 0, %s33
      %s37 = sphi 0, %s34
      %s51 = sphi 0, %s53
      %s54 = sphi 0, %s51
      %s55 = sphi 0, %s54
      %s71 = sphi 0, %s55
      %s75 = sphi 0, %s75
      %s77 = sphi 0, %s75
      %s78 = sphi 0, %s77
      %s92 = sphi 0, %s78
      %s96 = sphi 0, %s96
      %s98 = sphi 0, %s96
      %s99 = sphi 0, %s98
      %s113 = sphi 0, %s99
      %s117 = sphi 0, %s117
      %s119 = sphi 0, %s117
      %s120 = sphi 0, %s119
      %s134 = sphi 0, %s120
      %s138 = sphi 0, %s138
      %s140 = sphi 0, %s138
      %s141 = sphi 0, %s140
      %s155 = sphi 0, %s141
      %s159 = sphi 0, %s159
      %s161 = sphi 0, %s159
      %s162 = sphi 0, %s161
      %s176 = sphi 0, %s162
      %s180 = sphi 0, %s180
      %s182 = sphi 0, %s180
      %s183 = sphi 0, %s182
      %s197 = sphi 0, %s183
      %s203 = sphi 0, %s205
      %s206 = sphi 0, %s203
      %s207 = sphi 0, %s206
      %s223 = sphi 0, %s207
      %s233 = sphi 0, %s235
      %s236 = sphi 0, %s233
      %s237 = sphi 0, %s236
      %s253 = sphi 0, %s237
    $region4: #{tpu_custom_call.1} parent=1 // loop_header_branch
      %25 = sbr.rel (%p23) target = $region8
    $region5: #{tpu_custom_call.1} parent=1 // loop_body
      %s27 = ssub.s32 %s22, 1
      %s28 = ssub.s32 %s22, 2
      %s38 = sadd.s32 1, %s31
      %p39 = scmp.ge.s32.totalorder %s38, 1
      %s40 = scalar_select %p39, 0, %s38
      %s41 = sadd.s32 1, %s30
      %s42 = scalar_select %p39, %s41, %s30
      %p43 = scmp.ge.s32.totalorder %s42, 1
      %s44 = scalar_select %p43, 0, %s42
      %s45 = sadd.s32 1, %s29
      %s46 = scalar_select %p43, %s45, %s29
      %p47 = scmp.ge.s32.totalorder %s46, 2
      %s48 = scalar_select %p47, 0, %s46
      %s49 = ssub.s32 %s29, %s48
      %p50 = scmp.eq.s32.totalorder %s49, 0
      %s52 = sadd.s32 %s51, 1
      %s53 = scalar_select %p50, %s51, %s52
      %p56 = pneg %p50
      %p57 = scmp.eq.s32.totalorder %s22, 1
      %p58 = por %p56, %p57
      %p59 = scmp.ne.s32.totalorder %s51, %s54
      %p60 = scmp.eq.s32.totalorder %s22, 0
      %p61 = por %p59, %p60
      %p62 = scmp.ne.s32.totalorder %s51, %s54
      %p63 = scmp.eq.s32.totalorder %s27, 1
      %p64 = por %p62, %p63
      %p65 = scmp.ne.s32.totalorder %s54, %s55
      %p66 = scmp.eq.s32.totalorder %s27, 0
      %p67 = por %p65, %p66
      %p68 = scmp.ne.s32.totalorder %s54, %s55
      %p69 = scmp.eq.s32.totalorder %s28, 1
      %p70 = por %p68, %p69
      %p72 = scmp.ne.s32.totalorder %s55, %s71
      %p73 = scmp.eq.s32.totalorder %s28, 0
      %p74 = por %p72, %p73
      %s76 = sadd.s32 %s75, 1
      %p79 = scmp.eq.s32.totalorder %s22, 1
      %p80 = scmp.ne.s32.totalorder %s75, %s77
      %p81 = scmp.eq.s32.totalorder %s22, 0
      %p82 = por %p80, %p81
      %p83 = scmp.ne.s32.totalorder %s75, %s77
      %p84 = scmp.eq.s32.totalorder %s27, 1
      %p85 = por %p83, %p84
      %p86 = scmp.ne.s32.totalorder %s77, %s78
      %p87 = scmp.eq.s32.totalorder %s27, 0
      %p88 = por %p86, %p87
      %p89 = scmp.ne.s32.totalorder %s77, %s78
      %p90 = scmp.eq.s32.totalorder %s28, 1
      %p91 = por %p89, %p90
      %p93 = scmp.ne.s32.totalorder %s78, %s92
      %p94 = scmp.eq.s32.totalorder %s28, 0
      %p95 = por %p93, %p94
      %s97 = sadd.s32 %s96, 1
      %p100 = scmp.eq.s32.totalorder %s22, 1
      %p101 = scmp.ne.s32.totalorder %s96, %s98
      %p102 = scmp.eq.s32.totalorder %s22, 0
      %p103 = por %p101, %p102
      %p104 = scmp.ne.s32.totalorder %s96, %s98
      %p105 = scmp.eq.s32.totalorder %s27, 1
      %p106 = por %p104, %p105
      %p107 = scmp.ne.s32.totalorder %s98, %s99
      %p108 = scmp.eq.s32.totalorder %s27, 0
      %p109 = por %p107, %p108
      %p110 = scmp.ne.s32.totalorder %s98, %s99
      %p111 = scmp.eq.s32.totalorder %s28, 1
      %p112 = por %p110, %p111
      %p114 = scmp.ne.s32.totalorder %s99, %s113
      %p115 = scmp.eq.s32.totalorder %s28, 0
      %p116 = por %p114, %p115
      %s118 = sadd.s32 %s117, 1
      %p121 = scmp.eq.s32.totalorder %s22, 1
      %p122 = scmp.ne.s32.totalorder %s117, %s119
      %p123 = scmp.eq.s32.totalorder %s22, 0
      %p124 = por %p122, %p123
      %p125 = scmp.ne.s32.totalorder %s117, %s119
      %p126 = scmp.eq.s32.totalorder %s27, 1
      %p127 = por %p125, %p126
      %p128 = scmp.ne.s32.totalorder %s119, %s120
      %p129 = scmp.eq.s32.totalorder %s27, 0
      %p130 = por %p128, %p129
      %p131 = scmp.ne.s32.totalorder %s119, %s120
      %p132 = scmp.eq.s32.totalorder %s28, 1
      %p133 = por %p131, %p132
      %p135 = scmp.ne.s32.totalorder %s120, %s134
      %p136 = scmp.eq.s32.totalorder %s28, 0
      %p137 = por %p135, %p136
      %s139 = sadd.s32 %s138, 1
      %p142 = scmp.eq.s32.totalorder %s22, 1
      %p143 = scmp.ne.s32.totalorder %s138, %s140
      %p144 = scmp.eq.s32.totalorder %s22, 0
      %p145 = por %p143, %p144
      %p146 = scmp.ne.s32.totalorder %s138, %s140
      %p147 = scmp.eq.s32.totalorder %s27, 1
      %p148 = por %p146, %p147
      %p149 = scmp.ne.s32.totalorder %s140, %s141
      %p150 = scmp.eq.s32.totalorder %s27, 0
      %p151 = por %p149, %p150
      %p152 = scmp.ne.s32.totalorder %s140, %s141
      %p153 = scmp.eq.s32.totalorder %s28, 1
      %p154 = por %p152, %p153
      %p156 = scmp.ne.s32.totalorder %s141, %s155
      %p157 = scmp.eq.s32.totalorder %s28, 0
      %p158 = por %p156, %p157
      %s160 = sadd.s32 %s159, 1
      %p163 = scmp.eq.s32.totalorder %s22, 1
      %p164 = scmp.ne.s32.totalorder %s159, %s161
      %p165 = scmp.eq.s32.totalorder %s22, 0
      %p166 = por %p164, %p165
      %p167 = scmp.ne.s32.totalorder %s159, %s161
      %p168 = scmp.eq.s32.totalorder %s27, 1
      %p169 = por %p167, %p168
      %p170 = scmp.ne.s32.totalorder %s161, %s162
      %p171 = scmp.eq.s32.totalorder %s27, 0
      %p172 = por %p170, %p171
      %p173 = scmp.ne.s32.totalorder %s161, %s162
      %p174 = scmp.eq.s32.totalorder %s28, 1
      %p175 = por %p173, %p174
      %p177 = scmp.ne.s32.totalorder %s162, %s176
      %p178 = scmp.eq.s32.totalorder %s28, 0
      %p179 = por %p177, %p178
      %s181 = sadd.s32 %s180, 1
      %p184 = scmp.eq.s32.totalorder %s22, 1
      %p185 = scmp.ne.s32.totalorder %s180, %s182
      %p186 = scmp.eq.s32.totalorder %s22, 0
      %p187 = por %p185, %p186
      %p188 = scmp.ne.s32.totalorder %s180, %s182
      %p189 = scmp.eq.s32.totalorder %s27, 1
      %p190 = por %p188, %p189
      %p191 = scmp.ne.s32.totalorder %s182, %s183
      %p192 = scmp.eq.s32.totalorder %s27, 0
      %p193 = por %p191, %p192
      %p194 = scmp.ne.s32.totalorder %s182, %s183
      %p195 = scmp.eq.s32.totalorder %s28, 1
      %p196 = por %p194, %p195
      %p198 = scmp.ne.s32.totalorder %s183, %s197
      %p199 = scmp.eq.s32.totalorder %s28, 0
      %p200 = por %p198, %p199
      %s201 = ssub.s32 %s29, %s48
      %p202 = scmp.eq.s32.totalorder %s201, 0
      %s204 = sadd.s32 %s203, 1
      %s205 = scalar_select %p202, %s203, %s204
      %p208 = pneg %p202
      %p209 = scmp.eq.s32.totalorder %s22, 1
      %p210 = por %p208, %p209
      %p211 = scmp.ne.s32.totalorder %s203, %s206
      %p212 = scmp.eq.s32.totalorder %s22, 0
      %p213 = por %p211, %p212
      %p214 = scmp.ne.s32.totalorder %s203, %s206
      %p215 = scmp.eq.s32.totalorder %s27, 1
      %p216 = por %p214, %p215
      %p217 = scmp.ne.s32.totalorder %s206, %s207
      %p218 = scmp.eq.s32.totalorder %s27, 0
      %p219 = por %p217, %p218
      %p220 = scmp.ne.s32.totalorder %s206, %s207
      %p221 = scmp.eq.s32.totalorder %s28, 1
      %p222 = por %p220, %p221
      %p224 = scmp.ne.s32.totalorder %s207, %s223
      %p225 = scmp.eq.s32.totalorder %s28, 0
      %p226 = por %p224, %p225
      %s227 = ssub.s32 %s29, %s48
      %s228 = ssub.s32 %s31, %s40
      %s229 = sor.u32 %s227, %s228
      %s230 = ssub.s32 %s30, %s44
      %s231 = sor.u32 %s229, %s230
      %p232 = scmp.eq.s32.totalorder %s231, 0
      %s234 = sadd.s32 %s233, 1
      %s235 = scalar_select %p232, %s233, %s234
      %p238 = pneg %p232
      %p239 = scmp.eq.s32.totalorder %s22, 1
      %p240 = por %p238, %p239
      %p241 = scmp.ne.s32.totalorder %s233, %s236
      %p242 = scmp.eq.s32.totalorder %s22, 0
      %p243 = por %p241, %p242
      %p244 = scmp.ne.s32.totalorder %s233, %s236
      %p245 = scmp.eq.s32.totalorder %s27, 1
      %p246 = por %p244, %p245
      %p247 = scmp.ne.s32.totalorder %s236, %s237
      %p248 = scmp.eq.s32.totalorder %s27, 0
      %p249 = por %p247, %p248
      %p250 = scmp.ne.s32.totalorder %s236, %s237
      %p251 = scmp.eq.s32.totalorder %s28, 1
      %p252 = por %p250, %p251
      %p254 = scmp.ne.s32.totalorder %s237, %s253
      %p255 = scmp.eq.s32.totalorder %s28, 0
      %p256 = por %p254, %p255
      %p257 = scmp.le.s32.totalorder 1, %s22
      %p258 = scmp.lt.s32.totalorder %s22, 3
      %p259 = pnand %p257, %p258
      %p260 = pneg %p259
      // Predicated region
      $region9: #{tpu_custom_call.1} parent=5 // pred_check
        _
      $region10: #{tpu_custom_call.1} parent=5 // pred_check_branch
        %262 = sbr.rel (%p259) target = $region12
      $region11: #{tpu_custom_call.1} parent=5 // pred_region
        %s263 = ssub.s32 %s22, 1
        // Predicated region
        $region13: #{tpu_custom_call.1} parent=11 // pred_check
          %p264 = pneg %p88
        $region14: #{tpu_custom_call.1} parent=11 // pred_check_branch
          %266 = sbr.rel (%p264) target = $region16
        $region15: #{tpu_custom_call.1} parent=11 // pred_region
          %s268 = ssub.s32 512, 512
          %269 = vsyncadd [#allocation9], %s268
          %s270 = sshll.u32 [#allocation8], 4
          %s271 = int_to_ptr.vmem [resolvable:$true] %s270
          %276 = dma.hbm_to_vmem [thread:$0]  %s1, 512, %s271, [#allocation9], 128, 128, 8
        $region16: #{tpu_custom_call.1} parent=11 // pred_fallthru
          _
        // Predicated region
        $region17: #{tpu_custom_call.1} parent=11 // pred_check
          %p277 = pneg %p109
        $region18: #{tpu_custom_call.1} parent=11 // pred_check_branch
          %279 = sbr.rel (%p277) target = $region20
        $region19: #{tpu_custom_call.1} parent=11 // pred_region
          %s281 = ssub.s32 512, 512
          %282 = vsyncadd [#allocation9], %s281
          %s283 = sshll.u32 [#allocation10], 4
          %s284 = int_to_ptr.vmem [resolvable:$true] %s283
          %289 = dma.hbm_to_vmem [thread:$0]  %s2, 512, %s284, [#allocation9], 128, 128, 8
        $region20: #{tpu_custom_call.1} parent=11 // pred_fallthru
          _
        // Predicated region
        $region21: #{tpu_custom_call.1} parent=11 // pred_check
          %p290 = pneg %p130
        $region22: #{tpu_custom_call.1} parent=11 // pred_check_branch
          %292 = sbr.rel (%p290) target = $region24
        $region23: #{tpu_custom_call.1} parent=11 // pred_region
          %s294 = ssub.s32 512, 512
          %295 = vsyncadd [#allocation12], %s294
          %s296 = sshll.u32 [#allocation11], 4
          %s297 = int_to_ptr.vmem [resolvable:$true] %s296
          %302 = dma.hbm_to_vmem [thread:$0]  %s3, 512, %s297, [#allocation12], 128, 128, 8
        $region24: #{tpu_custom_call.1} parent=11 // pred_fallthru
          _
        // Predicated region
        $region25: #{tpu_custom_call.1} parent=11 // pred_check
          %p303 = pneg %p151
        $region26: #{tpu_custom_call.1} parent=11 // pred_check_branch
          %305 = sbr.rel (%p303) target = $region28
        $region27: #{tpu_custom_call.1} parent=11 // pred_region
          _
        $region28: #{tpu_custom_call.1} parent=11 // pred_fallthru
          _
        // Predicated region
        $region29: #{tpu_custom_call.1} parent=11 // pred_check
          %p306 = pneg %p172
        $region30: #{tpu_custom_call.1} parent=11 // pred_check_branch
          %308 = sbr.rel (%p306) target = $region32
        $region31: #{tpu_custom_call.1} parent=11 // pred_region
          _
        $region32: #{tpu_custom_call.1} parent=11 // pred_fallthru
          _
        // Predicated region
        $region33: #{tpu_custom_call.1} parent=11 // pred_check
          %p309 = pneg %p193
        $region34: #{tpu_custom_call.1} parent=11 // pred_check_branch
          %311 = sbr.rel (%p309) target = $region36
        $region35: #{tpu_custom_call.1} parent=11 // pred_region
          _
        $region36: #{tpu_custom_call.1} parent=11 // pred_fallthru
          _
      $region12: #{tpu_custom_call.1} parent=5 // pred_fallthru
        _
      %p312 = scmp.lt.s32.totalorder %s22, 2
      // Predicated region
      $region37: #{tpu_custom_call.1} parent=5 // pred_check
        %p313 = pneg %p312
      $region38: #{tpu_custom_call.1} parent=5 // pred_check_branch
        %315 = sbr.rel (%p313) target = $region40
      $region39: #{tpu_custom_call.1} parent=5 // pred_region
        // Predicated region
        $region41: #{tpu_custom_call.1} parent=39 // pred_check
          %p316 = pneg %p61
        $region42: #{tpu_custom_call.1} parent=39 // pred_check_branch
          %318 = sbr.rel (%p316) target = $region44
        $region43: #{tpu_custom_call.1} parent=39 // pred_region
          %s319 = sand.u32 %s51, 1
          %s320 = scalar_lea.sflag [#allocation6], %s319
          %s321 = sand.u32 %s51, 1
          %s322 = smul.addr %s321, 16
          %s323 = scalar_lea.vmem [#allocation5], %s322
          %s325 = ssub.s32 256, 256
          %326 = vsyncadd %s320, %s325
          %s327 = smul.addr %s29, 2
          %s328 = smul.addr %s327, 128
          %s329 = scalar_lea.hbm %s0, %s328
          %s330 = sshll.u32 %s323, 4
          %s331 = int_to_ptr.vmem [resolvable:$true] %s330
          %336 = dma.hbm_to_vmem [thread:$0]  %s329, 256, %s331, %s320, 128, 128, 8
        $region44: #{tpu_custom_call.1} parent=39 // pred_fallthru
          _
        // Predicated region
        $region45: #{tpu_custom_call.1} parent=39 // pred_check
          %p337 = pneg %p213
        $region46: #{tpu_custom_call.1} parent=39 // pred_check_branch
          %339 = sbr.rel (%p337) target = $region48
        $region47: #{tpu_custom_call.1} parent=39 // pred_region
          %p340 = scmp.lt.s32.totalorder %s29, 1
          %s341 = scalar_select %p340, %s29, 1
          %s342 = scalar_lea.vmem %s7, %s341
        $region48: #{tpu_custom_call.1} parent=39 // pred_fallthru
          _
      $region40: #{tpu_custom_call.1} parent=5 // pred_fallthru
        _
      %p343 = scmp.le.s32.totalorder 1, %s22
      %p344 = scmp.lt.s32.totalorder %s22, 3
      %p345 = pnand %p343, %p344
      %p346 = pneg %p345
      // Predicated region
      $region49: #{tpu_custom_call.1} parent=5 // pred_check
        _
      $region50: #{tpu_custom_call.1} parent=5 // pred_check_branch
        %348 = sbr.rel (%p345) target = $region52
      $region51: #{tpu_custom_call.1} parent=5 // pred_region
        %s349 = ssub.s32 %s22, 1
        %s350 = sand.u32 %s54, 1
        %s351 = scalar_lea.sflag [#allocation6], %s350
        %s352 = sand.u32 %s54, 1
        %s353 = smul.addr %s352, 16
        %s354 = scalar_lea.vmem [#allocation5], %s353
        // Predicated region
        $region53: #{tpu_custom_call.1} parent=51 // pred_check
          %p355 = pneg %p67
        $region54: #{tpu_custom_call.1} parent=51 // pred_check_branch
          %357 = sbr.rel (%p355) target = $region56
        $region55: #{tpu_custom_call.1} parent=51 // pred_region
          %358 = dma.done %s351, 256
        $region56: #{tpu_custom_call.1} parent=51 // pred_fallthru
          _
        // Predicated region
        $region57: #{tpu_custom_call.1} parent=51 // pred_check
          %p359 = pneg %p88
        $region58: #{tpu_custom_call.1} parent=51 // pred_check_branch
          %361 = sbr.rel (%p359) target = $region60
        $region59: #{tpu_custom_call.1} parent=51 // pred_region
          %362 = dma.done [#allocation9], 512
        $region60: #{tpu_custom_call.1} parent=51 // pred_fallthru
          _
        // Predicated region
        $region61: #{tpu_custom_call.1} parent=51 // pred_check
          %p363 = pneg %p109
        $region62: #{tpu_custom_call.1} parent=51 // pred_check_branch
          %365 = sbr.rel (%p363) target = $region64
        $region63: #{tpu_custom_call.1} parent=51 // pred_region
          %366 = dma.done [#allocation9], 512
        $region64: #{tpu_custom_call.1} parent=51 // pred_fallthru
          _
        // Predicated region
        $region65: #{tpu_custom_call.1} parent=51 // pred_check
          %p367 = pneg %p130
        $region66: #{tpu_custom_call.1} parent=51 // pred_check_branch
          %369 = sbr.rel (%p367) target = $region68
        $region67: #{tpu_custom_call.1} parent=51 // pred_region
          %370 = dma.done [#allocation12], 512
        $region68: #{tpu_custom_call.1} parent=51 // pred_fallthru
          _
        %s371 = sand.u32 %s54, 1
        %s372 = scalar_lea.sflag [#allocation6], %s371
        %s373 = sand.u32 %s54, 1
        %s374 = smul.addr %s373, 16
        %s375 = scalar_lea.vmem [#allocation5], %s374
        %p376 = pneg %p67
        %p377 = pneg %p64
        %p378 = pneg %p88
        %p379 = pneg %p85
        %p380 = pneg %p109
        %p381 = pneg %p106
        %p382 = pneg %p130
        %p383 = pneg %p127
        %p384 = pneg %p151
        %p385 = pneg %p148
        %p386 = pneg %p172
        %p387 = pneg %p169
        %p388 = pneg %p193
        %p389 = pneg %p190
        %p390 = scmp.lt.s32.totalorder %s32, 1
        %s391 = scalar_select %p390, %s32, 1
        %s392 = scalar_lea.vmem %s7, %s391
        %p393 = pneg %p219
        %p394 = pneg %p216
        %p395 = pneg %p249
        %p396 = pneg %p246
        %s397 = sand.u32 %s236, 1
        %s398 = scalar_lea.sflag [#allocation7], %s397
        %s399 = sand.u32 %s236, 1
        %s400 = smul.addr %s399, 16
        %s401 = scalar_lea.vmem [#allocation13], %s400
        %p402 = scmp.lt.s32.totalorder %s32, 1
        %s403 = scalar_select %p402, %s32, 1
        %s404 = scalar_lea.vmem %s7, %s403
        %s405 = smul.u32 2, %s34
        %p406 = scmp.eq.s32.totalorder %s34, 0
        // Predicated region
        $region69: #{tpu_custom_call.1} parent=51 // pred_check
          %p407 = pneg %p406
        $region70: #{tpu_custom_call.1} parent=51 // pred_check_branch
          %409 = sbr.rel (%p407) target = $region72
        $region71: #{tpu_custom_call.1} parent=51 // pred_region
          %v410 = vld [vmem:[%s354] sm:$0xff]
          %v411 = vld [vmem:[%s354 + $0x8] sm:$0xff]
          %s412 = smul.u32 %s33, 32
          %s413 = scalar_lea.vmem [#allocation10], %s412
          %v414 = vld [vmem:[%s413] sm:$0xff]
          %v415 = vld [vmem:[%s413 + $0x8] sm:$0xff]
          %v416 = vld [vmem:[%s413 + $0x10] sm:$0xff]
          %v417 = vld [vmem:[%s413 + $0x18] sm:$0xff]
          %s418 = scalar_lea.vmem [#allocation11], %s412
          %v419 = vld [vmem:[%s418] sm:$0xff]
          %v420 = vld [vmem:[%s418 + $0x8] sm:$0xff]
          %v421 = vld [vmem:[%s418 + $0x10] sm:$0xff]
          %v422 = vld [vmem:[%s418 + $0x18] sm:$0xff]
          %s423 = scalar_lea.vmem %s5, %s33
          %v424 = vld [vmem:[%s423] sm:$0x1]
          %s425 = scalar_lea.vmem %s6, %s33
          %v426 = vld [vmem:[%s425] sm:$0x1]
          %v428 = vlaneseq
          %v429 = vshrl.u32 %v428, 7
          %v430 = vsub.s32 0, %v429
          %v431 = vrot.slane %v424, %v430
          %vm433 = vcmask 261120
          %v435 = vsel %vm433, %v410, 0
          %v438 = vsel %vm433, %v411, 0
          %440 = vmatprep.subr.mxu0 0.0
          %441 = vmatpush1.msra.mxu0 %v414
          %442 = vmatprep.subr.mxu0 0.0
          %443 = vmatpush1.msra.mxu0 %v415
          %444 = vmatprep.subr.mxu0 0.0
          %445 = vmatpush1.msra.mxu0 %v416
          %446 = vmatprep.subr.mxu0 0.0
          %447 = vmatpush1.msra.mxu0 %v417
          %448 = vmatprep.subr.mxu0 0.0
          %449 = vmatpush1.msra.mxu0 0.0
          %450 = vmatprep.subr.mxu0 0.0
          %451 = vmatpush1.msra.mxu0 0.0
          %452 = vmatprep.subr.mxu0 0.0
          %453 = vmatpush1.msra.mxu0 0.0
          %454 = vmatprep.subr.mxu0 0.0
          %455 = vmatpush1.msra.mxu0 0.0
          %456 = vmatprep.subr.mxu0 0.0
          %457 = vmatpush1.msra.mxu0 0.0
          %458 = vmatprep.subr.mxu0 0.0
          %459 = vmatpush1.msra.mxu0 0.0
          %460 = vmatprep.subr.mxu0 0.0
          %461 = vmatpush1.msra.mxu0 0.0
          %462 = vmatprep.subr.mxu0 0.0
          %463 = vmatpush1.msra.mxu0 0.0
          %464 = vmatprep.subr.mxu0 0.0
          %465 = vmatpush1.msra.mxu0 0.0
          %466 = vmatprep.subr.mxu0 0.0
          %467 = vmatpush1.msra.mxu0 0.0
          %468 = vmatprep.subr.mxu0 0.0
          %469 = vmatpush1.msra.mxu0 0.0
          %470 = vmatprep.subr.mxu0 0.0
          %471 = vmatpush1.msra.mxu0 0.0
          %472 = vmatprep.subr.mxu0 0.0
          %473 = vmatpush1.msra.mxu0 0.0
          %474 = vmatprep.subr.mxu0 0.0
          %475 = vmatpush1.msra.mxu0 0.0
          %476 = vmatprep.subr.mxu0 0.0
          %477 = vmatpush1.msra.mxu0 0.0
          %478 = vmatprep.subr.mxu0 0.0
          %479 = vmatpush1.msra.mxu0 0.0
          %480 = vmatprep.subr.mxu0 0.0
          %481 = vmatpush1.msra.mxu0 0.0
          %482 = vmatprep.subr.mxu0 0.0
          %483 = vmatpush1.msra.mxu0 0.0
          %484 = vmatprep.subr.mxu0 0.0
          %485 = vmatpush1.msra.mxu0 0.0
          %486 = vmatprep.subr.mxu0 0.0
          %487 = vmatpush1.msra.mxu0 0.0
          %488 = vmatprep.subr.mxu0 0.0
          %489 = vmatpush1.msra.mxu0 0.0
          %490 = vmatprep.subr.mxu0 0.0
          %491 = vmatpush1.msra.mxu0 0.0
          %492 = vmatprep.subr.mxu0 0.0
          %493 = vmatpush1.msra.mxu0 0.0
          %494 = vmatprep.subr.mxu0 0.0
          %495 = vmatpush1.msra.mxu0 0.0
          %496 = vmatprep.subr.mxu0 0.0
          %497 = vmatpush1.msra.mxu0 0.0
          %498 = vmatprep.subr.mxu0 0.0
          %499 = vmatpush1.msra.mxu0 0.0
          %500 = vmatprep.subr.mxu0 0.0
          %501 = vmatpush1.msra.mxu0 0.0
          %502 = vmatprep.subr.mxu0 0.0
          %503 = vmatpush1.msra.mxu0 0.0
          %504 = vmatprep.mubr.f32.mxu0 0.0
          %505 = vmatmul.mubr.f32.gmra.mrb[0].mxu0 %v435
          %v506 = vpop.f32.mrb[0].mxu0
          %v507 = vadd.f32 %v431, %v506
          %v508 = vpop.f32.mrb[0].mxu0
          %509 = vmatprep.mubr.f32.mxu0 0.0
          %510 = vmatmul.mubr.f32.gmra.mrb[0].mxu0 %v438
          %v511 = vpop.f32.mrb[0].mxu0
          %v512 = vadd.f32 %v431, %v511
          %v513 = vpop.f32.mrb[0].mxu0
          %514 = vdwg.mxu0
          %v516 = vlaneseq
          %v517 = vshrl.u32 %v516, 7
          %v518 = vsub.s32 0, %v517
          %v519 = vrot.slane %v426, %v518
          %521 = vmatprep.subr.mxu0 0.0
          %522 = vmatpush1.msra.mxu0 %v419
          %523 = vmatprep.subr.mxu0 0.0
          %524 = vmatpush1.msra.mxu0 %v420
          %525 = vmatprep.subr.mxu0 0.0
          %526 = vmatpush1.msra.mxu0 %v421
          %527 = vmatprep.subr.mxu0 0.0
          %528 = vmatpush1.msra.mxu0 %v422
          %529 = vmatprep.subr.mxu0 0.0
          %530 = vmatpush1.msra.mxu0 0.0
          %531 = vmatprep.subr.mxu0 0.0
          %532 = vmatpush1.msra.mxu0 0.0
          %533 = vmatprep.subr.mxu0 0.0
          %534 = vmatpush1.msra.mxu0 0.0
          %535 = vmatprep.subr.mxu0 0.0
          %536 = vmatpush1.msra.mxu0 0.0
          %537 = vmatprep.subr.mxu0 0.0
          %538 = vmatpush1.msra.mxu0 0.0
          %539 = vmatprep.subr.mxu0 0.0
          %540 = vmatpush1.msra.mxu0 0.0
          %541 = vmatprep.subr.mxu0 0.0
          %542 = vmatpush1.msra.mxu0 0.0
          %543 = vmatprep.subr.mxu0 0.0
          %544 = vmatpush1.msra.mxu0 0.0
          %545 = vmatprep.subr.mxu0 0.0
          %546 = vmatpush1.msra.mxu0 0.0
          %547 = vmatprep.subr.mxu0 0.0
          %548 = vmatpush1.msra.mxu0 0.0
          %549 = vmatprep.subr.mxu0 0.0
          %550 = vmatpush1.msra.mxu0 0.0
          %551 = vmatprep.subr.mxu0 0.0
          %552 = vmatpush1.msra.mxu0 0.0
          %553 = vmatprep.subr.mxu0 0.0
          %554 = vmatpush1.msra.mxu0 0.0
          %555 = vmatprep.subr.mxu0 0.0
          %556 = vmatpush1.msra.mxu0 0.0
          %557 = vmatprep.subr.mxu0 0.0
          %558 = vmatpush1.msra.mxu0 0.0
          %559 = vmatprep.subr.mxu0 0.0
          %560 = vmatpush1.msra.mxu0 0.0
          %561 = vmatprep.subr.mxu0 0.0
          %562 = vmatpush1.msra.mxu0 0.0
          %563 = vmatprep.subr.mxu0 0.0
          %564 = vmatpush1.msra.mxu0 0.0
          %565 = vmatprep.subr.mxu0 0.0
          %566 = vmatpush1.msra.mxu0 0.0
          %567 = vmatprep.subr.mxu0 0.0
          %568 = vmatpush1.msra.mxu0 0.0
          %569 = vmatprep.subr.mxu0 0.0
          %570 = vmatpush1.msra.mxu0 0.0
          %571 = vmatprep.subr.mxu0 0.0
          %572 = vmatpush1.msra.mxu0 0.0
          %573 = vmatprep.subr.mxu0 0.0
          %574 = vmatpush1.msra.mxu0 0.0
          %575 = vmatprep.subr.mxu0 0.0
          %576 = vmatpush1.msra.mxu0 0.0
          %577 = vmatprep.subr.mxu0 0.0
          %578 = vmatpush1.msra.mxu0 0.0
          %579 = vmatprep.subr.mxu0 0.0
          %580 = vmatpush1.msra.mxu0 0.0
          %581 = vmatprep.subr.mxu0 0.0
          %582 = vmatpush1.msra.mxu0 0.0
          %583 = vmatprep.subr.mxu0 0.0
          %584 = vmatpush1.msra.mxu0 0.0
          %585 = vmatprep.mubr.f32.mxu0 0.0
          %586 = vmatmul.mubr.f32.gmra.mrb[0].mxu0 %v435
          %v587 = vpop.f32.mrb[0].mxu0
          %v588 = vadd.f32 %v519, %v587
          %v589 = vpop.f32.mrb[0].mxu0
          %590 = vmatprep.mubr.f32.mxu0 0.0
          %591 = vmatmul.mubr.f32.gmra.mrb[0].mxu0 %v438
          %v592 = vpop.f32.mrb[0].mxu0
          %v593 = vadd.f32 %v519, %v592
          %v594 = vpop.f32.mrb[0].mxu0
          %595 = vdwg.mxu0
          %596 = vst.msk [vmem:[#allocation2] sm:$0xff] %vm433, %v507
          %597 = vst.msk [vmem:[#allocation2 + $0x8] sm:$0xff] %vm433, %v512
          %598 = vst.msk [vmem:[#allocation3] sm:$0xff] %vm433, %v588
          %599 = vst.msk [vmem:[#allocation3 + $0x8] sm:$0xff] %vm433, %v593
        $region72: #{tpu_custom_call.1} parent=51 // pred_fallthru
          _
        %s600 = smul.u32 %s34, 16
        %s601 = scalar_lea.vmem %s354, %s600 [#allocation5]
        %v602 = vld [vmem:[%s601] sm:$0xff]
        %v603 = vld [vmem:[%s601 + $0x8] sm:$0xff]
        %s604 = smul.u32 %s33, 32
        %s605 = scalar_lea.vmem [#allocation8], %s604
        %v606 = vld [vmem:[%s605] sm:$0xff]
        %v607 = vld [vmem:[%s605 + $0x8] sm:$0xff]
        %v608 = vld [vmem:[%s605 + $0x10] sm:$0xff]
        %v609 = vld [vmem:[%s605 + $0x18] sm:$0xff]
        %s610 = scalar_lea.vmem %s4, %s33
        %v611 = vld [vmem:[%s610] sm:$0x1]
        %v613 = vlaneseq
        %v614 = vshrl.u32 %v613, 7
        %v615 = vsub.s32 0, %v614
        %v616 = vrot.slane %v611, %v615
        %vm618 = vcmask 261120
        %v620 = vsel %vm618, %v602, 0
        %v623 = vsel %vm618, %v603, 0
        %625 = vmatprep.subr.mxu0 0.0
        %626 = vmatpush1.msra.mxu0 %v606
        %627 = vmatprep.subr.mxu0 0.0
        %628 = vmatpush1.msra.mxu0 %v607
        %629 = vmatprep.subr.mxu0 0.0
        %630 = vmatpush1.msra.mxu0 %v608
        %631 = vmatprep.subr.mxu0 0.0
        %632 = vmatpush1.msra.mxu0 %v609
        %633 = vmatprep.subr.mxu0 0.0
        %634 = vmatpush1.msra.mxu0 0.0
        %635 = vmatprep.subr.mxu0 0.0
        %636 = vmatpush1.msra.mxu0 0.0
        %637 = vmatprep.subr.mxu0 0.0
        %638 = vmatpush1.msra.mxu0 0.0
        %639 = vmatprep.subr.mxu0 0.0
        %640 = vmatpush1.msra.mxu0 0.0
        %641 = vmatprep.subr.mxu0 0.0
        %642 = vmatpush1.msra.mxu0 0.0
        %643 = vmatprep.subr.mxu0 0.0
        %644 = vmatpush1.msra.mxu0 0.0
        %645 = vmatprep.subr.mxu0 0.0
        %646 = vmatpush1.msra.mxu0 0.0
        %647 = vmatprep.subr.mxu0 0.0
        %648 = vmatpush1.msra.mxu0 0.0
        %649 = vmatprep.subr.mxu0 0.0
        %650 = vmatpush1.msra.mxu0 0.0
        %651 = vmatprep.subr.mxu0 0.0
        %652 = vmatpush1.msra.mxu0 0.0
        %653 = vmatprep.subr.mxu0 0.0
        %654 = vmatpush1.msra.mxu0 0.0
        %655 = vmatprep.subr.mxu0 0.0
        %656 = vmatpush1.msra.mxu0 0.0
        %657 = vmatprep.subr.mxu0 0.0
        %658 = vmatpush1.msra.mxu0 0.0
        %659 = vmatprep.subr.mxu0 0.0
        %660 = vmatpush1.msra.mxu0 0.0
        %661 = vmatprep.subr.mxu0 0.0
        %662 = vmatpush1.msra.mxu0 0.0
        %663 = vmatprep.subr.mxu0 0.0
        %664 = vmatpush1.msra.mxu0 0.0
        %665 = vmatprep.subr.mxu0 0.0
        %666 = vmatpush1.msra.mxu0 0.0
        %667 = vmatprep.subr.mxu0 0.0
        %668 = vmatpush1.msra.mxu0 0.0
        %669 = vmatprep.subr.mxu0 0.0
        %670 = vmatpush1.msra.mxu0 0.0
        %671 = vmatprep.subr.mxu0 0.0
        %672 = vmatpush1.msra.mxu0 0.0
        %673 = vmatprep.subr.mxu0 0.0
        %674 = vmatpush1.msra.mxu0 0.0
        %675 = vmatprep.subr.mxu0 0.0
        %676 = vmatpush1.msra.mxu0 0.0
        %677 = vmatprep.subr.mxu0 0.0
        %678 = vmatpush1.msra.mxu0 0.0
        %679 = vmatprep.subr.mxu0 0.0
        %680 = vmatpush1.msra.mxu0 0.0
        %681 = vmatprep.subr.mxu0 0.0
        %682 = vmatpush1.msra.mxu0 0.0
        %683 = vmatprep.subr.mxu0 0.0
        %684 = vmatpush1.msra.mxu0 0.0
        %685 = vmatprep.subr.mxu0 0.0
        %686 = vmatpush1.msra.mxu0 0.0
        %687 = vmatprep.subr.mxu0 0.0
        %688 = vmatpush1.msra.mxu0 0.0
        %689 = vmatprep.mubr.f32.mxu0 0.0
        %690 = vmatmul.mubr.f32.gmra.mrb[0].mxu0 %v620
        %v691 = vpop.f32.mrb[0].mxu0
        %v692 = vadd.f32 %v616, %v691
        %v693 = vpop.f32.mrb[0].mxu0
        %694 = vmatprep.mubr.f32.mxu0 0.0
        %695 = vmatmul.mubr.f32.gmra.mrb[0].mxu0 %v623
        %v696 = vpop.f32.mrb[0].mxu0
        %v697 = vadd.f32 %v616, %v696
        %v698 = vpop.f32.mrb[0].mxu0
        %699 = vdwg.mxu0
        %v700 = vld [vmem:[#allocation2] sm:$0xff]
        %v701 = vld [vmem:[#allocation2 + $0x8] sm:$0xff]
        %v702 = vld [vmem:[#allocation3] sm:$0xff]
        %v703 = vld [vmem:[#allocation3 + $0x8] sm:$0xff]
        %v704 = vld [vmem:[%s404] sm:$0x1]
        %v706 = vlaneseq
        %v707 = vshrl.u32 %v706, 7
        %v708 = vsub.s32 0, %v707
        %v709 = vrot.slane %v704, %v708
        %vm711 = vcmask 64512
        %v713 = vsel %vm711, %v692, 0
        %v716 = vsel %vm711, %v697, 0
        %v719 = vsel %vm711, %v700, 0
        %v722 = vsel %vm711, %v701, 0
        %724 = vmatprep.subr.mxu0 0.0
        %725 = vmatpush1.xpose.msra.mxu0 %v719
        %726 = vmatprep.subr.mxu0 0.0
        %727 = vmatpush1.xpose.msra.mxu0 %v722
        %728 = vmatprep.subr.mxu0 0.0
        %729 = vmatpush1.xpose.msra.mxu0 0.0
        %730 = vmatprep.subr.mxu0 0.0
        %731 = vmatpush1.xpose.msra.mxu0 0.0
        %732 = vmatprep.subr.mxu0 0.0
        %733 = vmatpush1.xpose.msra.mxu0 0.0
        %734 = vmatprep.subr.mxu0 0.0
        %735 = vmatpush1.xpose.msra.mxu0 0.0
        %736 = vmatprep.subr.mxu0 0.0
        %737 = vmatpush1.xpose.msra.mxu0 0.0
        %738 = vmatprep.subr.mxu0 0.0
        %739 = vmatpush1.xpose.msra.mxu0 0.0
        %740 = vmatprep.subr.mxu0 0.0
        %741 = vmatpush1.xpose.msra.mxu0 0.0
        %742 = vmatprep.subr.mxu0 0.0
        %743 = vmatpush1.xpose.msra.mxu0 0.0
        %744 = vmatprep.subr.mxu0 0.0
        %745 = vmatpush1.xpose.msra.mxu0 0.0
        %746 = vmatprep.subr.mxu0 0.0
        %747 = vmatpush1.xpose.msra.mxu0 0.0
        %748 = vmatprep.subr.mxu0 0.0
        %749 = vmatpush1.xpose.msra.mxu0 0.0
        %750 = vmatprep.subr.mxu0 0.0
        %751 = vmatpush1.xpose.msra.mxu0 0.0
        %752 = vmatprep.subr.mxu0 0.0
        %753 = vmatpush1.xpose.msra.mxu0 0.0
        %754 = vmatprep.subr.mxu0 0.0
        %755 = vmatpush1.xpose.msra.mxu0 0.0
        %756 = vmatprep.subr.mxu0 0.0
        %757 = vmatpush1.xpose.msra.mxu0 0.0
        %758 = vmatprep.subr.mxu0 0.0
        %759 = vmatpush1.xpose.msra.mxu0 0.0
        %760 = vmatprep.subr.mxu0 0.0
        %761 = vmatpush1.xpose.msra.mxu0 0.0
        %762 = vmatprep.subr.mxu0 0.0
        %763 = vmatpush1.xpose.msra.mxu0 0.0
        %764 = vmatprep.subr.mxu0 0.0
        %765 = vmatpush1.xpose.msra.mxu0 0.0
        %766 = vmatprep.subr.mxu0 0.0
        %767 = vmatpush1.xpose.msra.mxu0 0.0
        %768 = vmatprep.subr.mxu0 0.0
        %769 = vmatpush1.xpose.msra.mxu0 0.0
        %770 = vmatprep.subr.mxu0 0.0
        %771 = vmatpush1.xpose.msra.mxu0 0.0
        %772 = vmatprep.subr.mxu0 0.0
        %773 = vmatpush1.xpose.msra.mxu0 0.0
        %774 = vmatprep.subr.mxu0 0.0
        %775 = vmatpush1.xpose.msra.mxu0 0.0
        %776 = vmatprep.subr.mxu0 0.0
        %777 = vmatpush1.xpose.msra.mxu0 0.0
        %778 = vmatprep.subr.mxu0 0.0
        %779 = vmatpush1.xpose.msra.mxu0 0.0
        %780 = vmatprep.subr.mxu0 0.0
        %781 = vmatpush1.xpose.msra.mxu0 0.0
        %782 = vmatprep.subr.mxu0 0.0
        %783 = vmatpush1.xpose.msra.mxu0 0.0
        %784 = vmatprep.subr.mxu0 0.0
        %785 = vmatpush1.xpose.msra.mxu0 0.0
        %786 = vmatprep.subr.mxu0 0.0
        %787 = vmatpush1.xpose.msra.mxu0 0.0
        %788 = vmatprep.mubr.f32.mxu0 0.0
        %789 = vmatmul.mubr.f32.gmra.mrb[0].mxu0 %v713
        %v790 = vpop.f32.mrb[0].mxu0
        %v791 = vadd.f32 %v709, %v790
        %v792 = vpop.f32.mrb[0].mxu0
        %793 = vmatprep.mubr.f32.mxu0 0.0
        %794 = vmatmul.mubr.f32.gmra.mrb[0].mxu0 %v716
        %v795 = vpop.f32.mrb[0].mxu0
        %v796 = vadd.f32 %v709, %v795
        %v797 = vpop.f32.mrb[0].mxu0
        %798 = vdwg.mxu0
        %vm799 = vcmask 130048
        %v800 = vsel %vm799, %v791, -inf
        %801 = vmax.xlane.f32.xlu0 %v800
        %v802 = vpop.xlane.xlu0 %801
        %v803 = vsel %vm799, %v796, -inf
        %804 = vmax.xlane.f32.xlu0 %v803
        %v805 = vpop.xlane.xlu0 %804
        %v806 = vsub.f32 %v791, %v802
        %v807 = vsub.f32 %v796, %v805
        %v808 = vmul.f32 %v806, 1.442695
        %v809 = vpow.pop %v808
        %v810 = vmul.f32 %v807, 1.442695
        %v811 = vpow.pop %v810
        %v812 = vsel %vm799, %v809, 0.0
        %813 = vadd.xlane.f32.xlu0 %v812
        %v814 = vpop.xlane.xlu0 %813
        %v815 = vsel %vm799, %v811, 0.0
        %816 = vadd.xlane.f32.xlu0 %v815
        %v817 = vpop.xlane.xlu0 %816
        %v818 = vrcp.pop %v814
        %v819 = vrcp.pop %v817
        %v820 = vmul.f32 %v809, %v818
        %v821 = vmul.f32 %v811, %v819
        %v823 = vsel %vm799, %v820, 0
        %v826 = vsel %vm799, %v821, 0
        %828 = vmatprep.subr.mxu0 0.0
        %829 = vmatpush1.msra.mxu0 %v702
        %830 = vmatprep.subr.mxu0 0.0
        %831 = vmatpush1.msra.mxu0 %v703
        %832 = vmatprep.subr.mxu0 0.0
        %833 = vmatpush1.msra.mxu0 0.0
        %834 = vmatprep.subr.mxu0 0.0
        %835 = vmatpush1.msra.mxu0 0.0
        %836 = vmatprep.subr.mxu0 0.0
        %837 = vmatpush1.msra.mxu0 0.0
        %838 = vmatprep.subr.mxu0 0.0
        %839 = vmatpush1.msra.mxu0 0.0
        %840 = vmatprep.subr.mxu0 0.0
        %841 = vmatpush1.msra.mxu0 0.0
        %842 = vmatprep.subr.mxu0 0.0
        %843 = vmatpush1.msra.mxu0 0.0
        %844 = vmatprep.subr.mxu0 0.0
        %845 = vmatpush1.msra.mxu0 0.0
        %846 = vmatprep.subr.mxu0 0.0
        %847 = vmatpush1.msra.mxu0 0.0
        %848 = vmatprep.subr.mxu0 0.0
        %849 = vmatpush1.msra.mxu0 0.0
        %850 = vmatprep.subr.mxu0 0.0
        %851 = vmatpush1.msra.mxu0 0.0
        %852 = vmatprep.subr.mxu0 0.0
        %853 = vmatpush1.msra.mxu0 0.0
        %854 = vmatprep.subr.mxu0 0.0
        %855 = vmatpush1.msra.mxu0 0.0
        %856 = vmatprep.subr.mxu0 0.0
        %857 = vmatpush1.msra.mxu0 0.0
        %858 = vmatprep.subr.mxu0 0.0
        %859 = vmatpush1.msra.mxu0 0.0
        %860 = vmatprep.subr.mxu0 0.0
        %861 = vmatpush1.msra.mxu0 0.0
        %862 = vmatprep.subr.mxu0 0.0
        %863 = vmatpush1.msra.mxu0 0.0
        %864 = vmatprep.subr.mxu0 0.0
        %865 = vmatpush1.msra.mxu0 0.0
        %866 = vmatprep.subr.mxu0 0.0
        %867 = vmatpush1.msra.mxu0 0.0
        %868 = vmatprep.subr.mxu0 0.0
        %869 = vmatpush1.msra.mxu0 0.0
        %870 = vmatprep.subr.mxu0 0.0
        %871 = vmatpush1.msra.mxu0 0.0
        %872 = vmatprep.subr.mxu0 0.0
        %873 = vmatpush1.msra.mxu0 0.0
        %874 = vmatprep.subr.mxu0 0.0
        %875 = vmatpush1.msra.mxu0 0.0
        %876 = vmatprep.subr.mxu0 0.0
        %877 = vmatpush1.msra.mxu0 0.0
        %878 = vmatprep.subr.mxu0 0.0
        %879 = vmatpush1.msra.mxu0 0.0
        %880 = vmatprep.subr.mxu0 0.0
        %881 = vmatpush1.msra.mxu0 0.0
        %882 = vmatprep.subr.mxu0 0.0
        %883 = vmatpush1.msra.mxu0 0.0
        %884 = vmatprep.subr.mxu0 0.0
        %885 = vmatpush1.msra.mxu0 0.0
        %886 = vmatprep.subr.mxu0 0.0
        %887 = vmatpush1.msra.mxu0 0.0
        %888 = vmatprep.subr.mxu0 0.0
        %889 = vmatpush1.msra.mxu0 0.0
        %890 = vmatprep.subr.mxu0 0.0
        %891 = vmatpush1.msra.mxu0 0.0
        %892 = vmatprep.mubr.f32.mxu0 0.0
        %893 = vmatmul.mubr.f32.gmra.mrb[0].mxu0 %v823
        %v894 = vpop.f32.mrb[0].mxu0
        %v895 = vadd.f32 0.0, %v894
        %v896 = vpop.f32.mrb[0].mxu0
        %897 = vmatprep.mubr.f32.mxu0 0.0
        %898 = vmatmul.mubr.f32.gmra.mrb[0].mxu0 %v826
        %v899 = vpop.f32.mrb[0].mxu0
        %v900 = vadd.f32 0.0, %v899
        %v901 = vpop.f32.mrb[0].mxu0
        %902 = vdwg.mxu0
        %903 = vst.msk [vmem:[#allocation4] sm:$0xff] %vm711, %v895
        %904 = vst.msk [vmem:[#allocation4 + $0x8] sm:$0xff] %vm711, %v900
        %905 = vrot.lane.b32.xlu0 %v692, 120
        %v906 = vpop.permute.xlu0 %905
        %907 = vrot.lane.b32.xlu0 %v697, 120
        %v908 = vpop.permute.xlu0 %907
        %909 = vrot.lane.b32.xlu0 %v700, 120
        %v910 = vpop.permute.xlu0 %909
        %911 = vrot.lane.b32.xlu0 %v701, 120
        %v912 = vpop.permute.xlu0 %911
        %v913 = vsel %vm711, %v906, 0
        %v915 = vsel %vm711, %v908, 0
        %v917 = vsel %vm711, %v910, 0
        %v919 = vsel %vm711, %v912, 0
        %921 = vmatprep.subr.mxu0 0.0
        %922 = vmatpush1.xpose.msra.mxu0 %v917
        %923 = vmatprep.subr.mxu0 0.0
        %924 = vmatpush1.xpose.msra.mxu0 %v919
        %925 = vmatprep.subr.mxu0 0.0
        %926 = vmatpush1.xpose.msra.mxu0 0.0
        %927 = vmatprep.subr.mxu0 0.0
        %928 = vmatpush1.xpose.msra.mxu0 0.0
        %929 = vmatprep.subr.mxu0 0.0
        %930 = vmatpush1.xpose.msra.mxu0 0.0
        %931 = vmatprep.subr.mxu0 0.0
        %932 = vmatpush1.xpose.msra.mxu0 0.0
        %933 = vmatprep.subr.mxu0 0.0
        %934 = vmatpush1.xpose.msra.mxu0 0.0
        %935 = vmatprep.subr.mxu0 0.0
        %936 = vmatpush1.xpose.msra.mxu0 0.0
        %937 = vmatprep.subr.mxu0 0.0
        %938 = vmatpush1.xpose.msra.mxu0 0.0
        %939 = vmatprep.subr.mxu0 0.0
        %940 = vmatpush1.xpose.msra.mxu0 0.0
        %941 = vmatprep.subr.mxu0 0.0
        %942 = vmatpush1.xpose.msra.mxu0 0.0
        %943 = vmatprep.subr.mxu0 0.0
        %944 = vmatpush1.xpose.msra.mxu0 0.0
        %945 = vmatprep.subr.mxu0 0.0
        %946 = vmatpush1.xpose.msra.mxu0 0.0
        %947 = vmatprep.subr.mxu0 0.0
        %948 = vmatpush1.xpose.msra.mxu0 0.0
        %949 = vmatprep.subr.mxu0 0.0
        %950 = vmatpush1.xpose.msra.mxu0 0.0
        %951 = vmatprep.subr.mxu0 0.0
        %952 = vmatpush1.xpose.msra.mxu0 0.0
        %953 = vmatprep.subr.mxu0 0.0
        %954 = vmatpush1.xpose.msra.mxu0 0.0
        %955 = vmatprep.subr.mxu0 0.0
        %956 = vmatpush1.xpose.msra.mxu0 0.0
        %957 = vmatprep.subr.mxu0 0.0
        %958 = vmatpush1.xpose.msra.mxu0 0.0
        %959 = vmatprep.subr.mxu0 0.0
        %960 = vmatpush1.xpose.msra.mxu0 0.0
        %961 = vmatprep.subr.mxu0 0.0
        %962 = vmatpush1.xpose.msra.mxu0 0.0
        %963 = vmatprep.subr.mxu0 0.0
        %964 = vmatpush1.xpose.msra.mxu0 0.0
        %965 = vmatprep.subr.mxu0 0.0
        %966 = vmatpush1.xpose.msra.mxu0 0.0
        %967 = vmatprep.subr.mxu0 0.0
        %968 = vmatpush1.xpose.msra.mxu0 0.0
        %969 = vmatprep.subr.mxu0 0.0
        %970 = vmatpush1.xpose.msra.mxu0 0.0
        %971 = vmatprep.subr.mxu0 0.0
        %972 = vmatpush1.xpose.msra.mxu0 0.0
        %973 = vmatprep.subr.mxu0 0.0
        %974 = vmatpush1.xpose.msra.mxu0 0.0
        %975 = vmatprep.subr.mxu0 0.0
        %976 = vmatpush1.xpose.msra.mxu0 0.0
        %977 = vmatprep.subr.mxu0 0.0
        %978 = vmatpush1.xpose.msra.mxu0 0.0
        %979 = vmatprep.subr.mxu0 0.0
        %980 = vmatpush1.xpose.msra.mxu0 0.0
        %981 = vmatprep.subr.mxu0 0.0
        %982 = vmatpush1.xpose.msra.mxu0 0.0
        %983 = vmatprep.subr.mxu0 0.0
        %984 = vmatpush1.xpose.msra.mxu0 0.0
        %985 = vmatprep.mubr.f32.mxu0 0.0
        %986 = vmatmul.mubr.f32.gmra.mrb[0].mxu0 %v913
        %v987 = vpop.f32.mrb[0].mxu0
        %v988 = vadd.f32 %v709, %v987
        %v989 = vpop.f32.mrb[0].mxu0
        %990 = vmatprep.mubr.f32.mxu0 0.0
        %991 = vmatmul.mubr.f32.gmra.mrb[0].mxu0 %v915
        %v992 = vpop.f32.mrb[0].mxu0
        %v993 = vadd.f32 %v709, %v992
        %v994 = vpop.f32.mrb[0].mxu0
        %995 = vdwg.mxu0
        %v996 = vsel %vm799, %v988, -inf
        %997 = vmax.xlane.f32.xlu0 %v996
        %v998 = vpop.xlane.xlu0 %997
        %v999 = vsel %vm799, %v993, -inf
        %1000 = vmax.xlane.f32.xlu0 %v999
        %v1001 = vpop.xlane.xlu0 %1000
        %v1002 = vsub.f32 %v988, %v998
        %v1003 = vsub.f32 %v993, %v1001
        %v1004 = vmul.f32 %v1002, 1.442695
        %v1005 = vpow.pop %v1004
        %v1006 = vmul.f32 %v1003, 1.442695
        %v1007 = vpow.pop %v1006
        %v1008 = vsel %vm799, %v1005, 0.0
        %1009 = vadd.xlane.f32.xlu0 %v1008
        %v1010 = vpop.xlane.xlu0 %1009
        %v1011 = vsel %vm799, %v1007, 0.0
        %1012 = vadd.xlane.f32.xlu0 %v1011
        %v1013 = vpop.xlane.xlu0 %1012
        %v1014 = vrcp.pop %v1010
        %v1015 = vrcp.pop %v1013
        %v1016 = vmul.f32 %v1005, %v1014
        %v1017 = vmul.f32 %v1007, %v1015
        %1020 = vrot.lane.b32.xlu0 %v702, 120
        %v1021 = vpop.permute.xlu0 %1020
        %1022 = vrot.lane.b32.xlu0 %v703, 120
        %v1023 = vpop.permute.xlu0 %1022
        %v1027 = vsel %vm799, %v1016, 0
        %v1030 = vsel %vm799, %v1017, 0
        %1032 = vmatprep.subr.mxu0 0.0
        %1033 = vmatpush1.msra.mxu0 %v1021
        %1034 = vmatprep.subr.mxu0 0.0
        %1035 = vmatpush1.msra.mxu0 %v1023
        %1036 = vmatprep.subr.mxu0 0.0
        %1037 = vmatpush1.msra.mxu0 0.0
        %1038 = vmatprep.subr.mxu0 0.0
        %1039 = vmatpush1.msra.mxu0 0.0
        %1040 = vmatprep.subr.mxu0 0.0
        %1041 = vmatpush1.msra.mxu0 0.0
        %1042 = vmatprep.subr.mxu0 0.0
        %1043 = vmatpush1.msra.mxu0 0.0
        %1044 = vmatprep.subr.mxu0 0.0
        %1045 = vmatpush1.msra.mxu0 0.0
        %1046 = vmatprep.subr.mxu0 0.0
        %1047 = vmatpush1.msra.mxu0 0.0
        %1048 = vmatprep.subr.mxu0 0.0
        %1049 = vmatpush1.msra.mxu0 0.0
        %1050 = vmatprep.subr.mxu0 0.0
        %1051 = vmatpush1.msra.mxu0 0.0
        %1052 = vmatprep.subr.mxu0 0.0
        %1053 = vmatpush1.msra.mxu0 0.0
        %1054 = vmatprep.subr.mxu0 0.0
        %1055 = vmatpush1.msra.mxu0 0.0
        %1056 = vmatprep.subr.mxu0 0.0
        %1057 = vmatpush1.msra.mxu0 0.0
        %1058 = vmatprep.subr.mxu0 0.0
        %1059 = vmatpush1.msra.mxu0 0.0
        %1060 = vmatprep.subr.mxu0 0.0
        %1061 = vmatpush1.msra.mxu0 0.0
        %1062 = vmatprep.subr.mxu0 0.0
        %1063 = vmatpush1.msra.mxu0 0.0
        %1064 = vmatprep.subr.mxu0 0.0
        %1065 = vmatpush1.msra.mxu0 0.0
        %1066 = vmatprep.subr.mxu0 0.0
        %1067 = vmatpush1.msra.mxu0 0.0
        %1068 = vmatprep.subr.mxu0 0.0
        %1069 = vmatpush1.msra.mxu0 0.0
        %1070 = vmatprep.subr.mxu0 0.0
        %1071 = vmatpush1.msra.mxu0 0.0
        %1072 = vmatprep.subr.mxu0 0.0
        %1073 = vmatpush1.msra.mxu0 0.0
        %1074 = vmatprep.subr.mxu0 0.0
        %1075 = vmatpush1.msra.mxu0 0.0
        %1076 = vmatprep.subr.mxu0 0.0
        %1077 = vmatpush1.msra.mxu0 0.0
        %1078 = vmatprep.subr.mxu0 0.0
        %1079 = vmatpush1.msra.mxu0 0.0
        %1080 = vmatprep.subr.mxu0 0.0
        %1081 = vmatpush1.msra.mxu0 0.0
        %1082 = vmatprep.subr.mxu0 0.0
        %1083 = vmatpush1.msra.mxu0 0.0
        %1084 = vmatprep.subr.mxu0 0.0
        %1085 = vmatpush1.msra.mxu0 0.0
        %1086 = vmatprep.subr.mxu0 0.0
        %1087 = vmatpush1.msra.mxu0 0.0
        %1088 = vmatprep.subr.mxu0 0.0
        %1089 = vmatpush1.msra.mxu0 0.0
        %1090 = vmatprep.subr.mxu0 0.0
        %1091 = vmatpush1.msra.mxu0 0.0
        %1092 = vmatprep.subr.mxu0 0.0
        %1093 = vmatpush1.msra.mxu0 0.0
        %1094 = vmatprep.subr.mxu0 0.0
        %1095 = vmatpush1.msra.mxu0 0.0
        %1096 = vmatprep.mubr.f32.mxu0 0.0
        %1097 = vmatmul.mubr.f32.gmra.mrb[0].mxu0 %v1027
        %v1098 = vpop.f32.mrb[0].mxu0
        %v1099 = vadd.f32 0.0, %v1098
        %v1100 = vpop.f32.mrb[0].mxu0
        %1101 = vmatprep.mubr.f32.mxu0 0.0
        %1102 = vmatmul.mubr.f32.gmra.mrb[0].mxu0 %v1030
        %v1103 = vpop.f32.mrb[0].mxu0
        %v1104 = vadd.f32 0.0, %v1103
        %v1105 = vpop.f32.mrb[0].mxu0
        %1106 = vdwg.mxu0
        %1109 = vrot.lane.b32.xlu0 %v1099, 8
        %v1110 = vpop.permute.xlu0 %1109
        %1111 = vrot.lane.b32.xlu0 %v1104, 8
        %v1112 = vpop.permute.xlu0 %1111
        %vm1115 = vcmask 130112
        %1116 = vst.msk [vmem:[#allocation4] sm:$0xff] %vm1115, %v1110
        %1117 = vst.msk [vmem:[#allocation4 + $0x8] sm:$0xff] %vm1115, %v1112
        %1118 = vrot.lane.b32.xlu0 %v692, 112
        %v1119 = vpop.permute.xlu0 %1118
        %1120 = vrot.lane.b32.xlu0 %v697, 112
        %v1121 = vpop.permute.xlu0 %1120
        %1122 = vrot.lane.b32.xlu0 %v700, 112
        %v1123 = vpop.permute.xlu0 %1122
        %1124 = vrot.lane.b32.xlu0 %v701, 112
        %v1125 = vpop.permute.xlu0 %1124
        %v1126 = vsel %vm711, %v1119, 0
        %v1128 = vsel %vm711, %v1121, 0
        %v1130 = vsel %vm711, %v1123, 0
        %v1132 = vsel %vm711, %v1125, 0
        %1134 = vmatprep.subr.mxu0 0.0
        %1135 = vmatpush1.xpose.msra.mxu0 %v1130
        %1136 = vmatprep.subr.mxu0 0.0
        %1137 = vmatpush1.xpose.msra.mxu0 %v1132
        %1138 = vmatprep.subr.mxu0 0.0
        %1139 = vmatpush1.xpose.msra.mxu0 0.0
        %1140 = vmatprep.subr.mxu0 0.0
        %1141 = vmatpush1.xpose.msra.mxu0 0.0
        %1142 = vmatprep.subr.mxu0 0.0
        %1143 = vmatpush1.xpose.msra.mxu0 0.0
        %1144 = vmatprep.subr.mxu0 0.0
        %1145 = vmatpush1.xpose.msra.mxu0 0.0
        %1146 = vmatprep.subr.mxu0 0.0
        %1147 = vmatpush1.xpose.msra.mxu0 0.0
        %1148 = vmatprep.subr.mxu0 0.0
        %1149 = vmatpush1.xpose.msra.mxu0 0.0
        %1150 = vmatprep.subr.mxu0 0.0
        %1151 = vmatpush1.xpose.msra.mxu0 0.0
        %1152 = vmatprep.subr.mxu0 0.0
        %1153 = vmatpush1.xpose.msra.mxu0 0.0
        %1154 = vmatprep.subr.mxu0 0.0
        %1155 = vmatpush1.xpose.msra.mxu0 0.0
        %1156 = vmatprep.subr.mxu0 0.0
        %1157 = vmatpush1.xpose.msra.mxu0 0.0
        %1158 = vmatprep.subr.mxu0 0.0
        %1159 = vmatpush1.xpose.msra.mxu0 0.0
        %1160 = vmatprep.subr.mxu0 0.0
        %1161 = vmatpush1.xpose.msra.mxu0 0.0
        %1162 = vmatprep.subr.mxu0 0.0
        %1163 = vmatpush1.xpose.msra.mxu0 0.0
        %1164 = vmatprep.subr.mxu0 0.0
        %1165 = vmatpush1.xpose.msra.mxu0 0.0
        %1166 = vmatprep.subr.mxu0 0.0
        %1167 = vmatpush1.xpose.msra.mxu0 0.0
        %1168 = vmatprep.subr.mxu0 0.0
        %1169 = vmatpush1.xpose.msra.mxu0 0.0
        %1170 = vmatprep.subr.mxu0 0.0
        %1171 = vmatpush1.xpose.msra.mxu0 0.0
        %1172 = vmatprep.subr.mxu0 0.0
        %1173 = vmatpush1.xpose.msra.mxu0 0.0
        %1174 = vmatprep.subr.mxu0 0.0
        %1175 = vmatpush1.xpose.msra.mxu0 0.0
        %1176 = vmatprep.subr.mxu0 0.0
        %1177 = vmatpush1.xpose.msra.mxu0 0.0
        %1178 = vmatprep.subr.mxu0 0.0
        %1179 = vmatpush1.xpose.msra.mxu0 0.0
        %1180 = vmatprep.subr.mxu0 0.0
        %1181 = vmatpush1.xpose.msra.mxu0 0.0
        %1182 = vmatprep.subr.mxu0 0.0
        %1183 = vmatpush1.xpose.msra.mxu0 0.0
        %1184 = vmatprep.subr.mxu0 0.0
        %1185 = vmatpush1.xpose.msra.mxu0 0.0
        %1186 = vmatprep.subr.mxu0 0.0
        %1187 = vmatpush1.xpose.msra.mxu0 0.0
        %1188 = vmatprep.subr.mxu0 0.0
        %1189 = vmatpush1.xpose.msra.mxu0 0.0
        %1190 = vmatprep.subr.mxu0 0.0
        %1191 = vmatpush1.xpose.msra.mxu0 0.0
        %1192 = vmatprep.subr.mxu0 0.0
        %1193 = vmatpush1.xpose.msra.mxu0 0.0
        %1194 = vmatprep.subr.mxu0 0.0
        %1195 = vmatpush1.xpose.msra.mxu0 0.0
        %1196 = vmatprep.subr.mxu0 0.0
        %1197 = vmatpush1.xpose.msra.mxu0 0.0
        %1198 = vmatprep.mubr.f32.mxu0 0.0
        %1199 = vmatmul.mubr.f32.gmra.mrb[0].mxu0 %v1126
        %v1200 = vpop.f32.mrb[0].mxu0
        %v1201 = vadd.f32 %v709, %v1200
        %v1202 = vpop.f32.mrb[0].mxu0
        %1203 = vmatprep.mubr.f32.mxu0 0.0
        %1204 = vmatmul.mubr.f32.gmra.mrb[0].mxu0 %v1128
        %v1205 = vpop.f32.mrb[0].mxu0
        %v1206 = vadd.f32 %v709, %v1205
        %v1207 = vpop.f32.mrb[0].mxu0
        %1208 = vdwg.mxu0
        %v1209 = vsel %vm799, %v1201, -inf
        %1210 = vmax.xlane.f32.xlu0 %v1209
        %v1211 = vpop.xlane.xlu0 %1210
        %v1212 = vsel %vm799, %v1206, -inf
        %1213 = vmax.xlane.f32.xlu0 %v1212
        %v1214 = vpop.xlane.xlu0 %1213
        %v1215 = vsub.f32 %v1201, %v1211
        %v1216 = vsub.f32 %v1206, %v1214
        %v1217 = vmul.f32 %v1215, 1.442695
        %v1218 = vpow.pop %v1217
        %v1219 = vmul.f32 %v1216, 1.442695
        %v1220 = vpow.pop %v1219
        %v1221 = vsel %vm799, %v1218, 0.0
        %1222 = vadd.xlane.f32.xlu0 %v1221
        %v1223 = vpop.xlane.xlu0 %1222
        %v1224 = vsel %vm799, %v1220, 0.0
        %1225 = vadd.xlane.f32.xlu0 %v1224
        %v1226 = vpop.xlane.xlu0 %1225
        %v1227 = vrcp.pop %v1223
        %v1228 = vrcp.pop %v1226
        %v1229 = vmul.f32 %v1218, %v1227
        %v1230 = vmul.f32 %v1220, %v1228
        %1231 = vrot.lane.b32.xlu0 %v702, 112
        %v1232 = vpop.permute.xlu0 %1231
        %1233 = vrot.lane.b32.xlu0 %v703, 112
        %v1234 = vpop.permute.xlu0 %1233
        %v1238 = vsel %vm799, %v1229, 0
        %v1241 = vsel %vm799, %v1230, 0
        %1243 = vmatprep.subr.mxu0 0.0
        %1244 = vmatpush1.msra.mxu0 %v1232
        %1245 = vmatprep.subr.mxu0 0.0
        %1246 = vmatpush1.msra.mxu0 %v1234
        %1247 = vmatprep.subr.mxu0 0.0
        %1248 = vmatpush1.msra.mxu0 0.0
        %1249 = vmatprep.subr.mxu0 0.0
        %1250 = vmatpush1.msra.mxu0 0.0
        %1251 = vmatprep.subr.mxu0 0.0
        %1252 = vmatpush1.msra.mxu0 0.0
        %1253 = vmatprep.subr.mxu0 0.0
        %1254 = vmatpush1.msra.mxu0 0.0
        %1255 = vmatprep.subr.mxu0 0.0
        %1256 = vmatpush1.msra.mxu0 0.0
        %1257 = vmatprep.subr.mxu0 0.0
        %1258 = vmatpush1.msra.mxu0 0.0
        %1259 = vmatprep.subr.mxu0 0.0
        %1260 = vmatpush1.msra.mxu0 0.0
        %1261 = vmatprep.subr.mxu0 0.0
        %1262 = vmatpush1.msra.mxu0 0.0
        %1263 = vmatprep.subr.mxu0 0.0
        %1264 = vmatpush1.msra.mxu0 0.0
        %1265 = vmatprep.subr.mxu0 0.0
        %1266 = vmatpush1.msra.mxu0 0.0
        %1267 = vmatprep.subr.mxu0 0.0
        %1268 = vmatpush1.msra.mxu0 0.0
        %1269 = vmatprep.subr.mxu0 0.0
        %1270 = vmatpush1.msra.mxu0 0.0
        %1271 = vmatprep.subr.mxu0 0.0
        %1272 = vmatpush1.msra.mxu0 0.0
        %1273 = vmatprep.subr.mxu0 0.0
        %1274 = vmatpush1.msra.mxu0 0.0
        %1275 = vmatprep.subr.mxu0 0.0
        %1276 = vmatpush1.msra.mxu0 0.0
        %1277 = vmatprep.subr.mxu0 0.0
        %1278 = vmatpush1.msra.mxu0 0.0
        %1279 = vmatprep.subr.mxu0 0.0
        %1280 = vmatpush1.msra.mxu0 0.0
        %1281 = vmatprep.subr.mxu0 0.0
        %1282 = vmatpush1.msra.mxu0 0.0
        %1283 = vmatprep.subr.mxu0 0.0
        %1284 = vmatpush1.msra.mxu0 0.0
        %1285 = vmatprep.subr.mxu0 0.0
        %1286 = vmatpush1.msra.mxu0 0.0
        %1287 = vmatprep.subr.mxu0 0.0
        %1288 = vmatpush1.msra.mxu0 0.0
        %1289 = vmatprep.subr.mxu0 0.0
        %1290 = vmatpush1.msra.mxu0 0.0
        %1291 = vmatprep.subr.mxu0 0.0
        %1292 = vmatpush1.msra.mxu0 0.0
        %1293 = vmatprep.subr.mxu0 0.0
        %1294 = vmatpush1.msra.mxu0 0.0
        %1295 = vmatprep.subr.mxu0 0.0
        %1296 = vmatpush1.msra.mxu0 0.0
        %1297 = vmatprep.subr.mxu0 0.0
        %1298 = vmatpush1.msra.mxu0 0.0
        %1299 = vmatprep.subr.mxu0 0.0
        %1300 = vmatpush1.msra.mxu0 0.0
        %1301 = vmatprep.subr.mxu0 0.0
        %1302 = vmatpush1.msra.mxu0 0.0
        %1303 = vmatprep.subr.mxu0 0.0
        %1304 = vmatpush1.msra.mxu0 0.0
        %1305 = vmatprep.subr.mxu0 0.0
        %1306 = vmatpush1.msra.mxu0 0.0
        %1307 = vmatprep.mubr.f32.mxu0 0.0
        %1308 = vmatmul.mubr.f32.gmra.mrb[0].mxu0 %v1238
        %v1309 = vpop.f32.mrb[0].mxu0
        %v1310 = vadd.f32 0.0, %v1309
        %v1311 = vpop.f32.mrb[0].mxu0
        %1312 = vmatprep.mubr.f32.mxu0 0.0
        %1313 = vmatmul.mubr.f32.gmra.mrb[0].mxu0 %v1241
        %v1314 = vpop.f32.mrb[0].mxu0
        %v1315 = vadd.f32 0.0, %v1314
        %v1316 = vpop.f32.mrb[0].mxu0
        %1317 = vdwg.mxu0
        %1320 = vrot.lane.b32.xlu0 %v1310, 16
        %v1321 = vpop.permute.xlu0 %1320
        %1322 = vrot.lane.b32.xlu0 %v1315, 16
        %v1323 = vpop.permute.xlu0 %1322
        %vm1326 = vcmask 195712
        %1327 = vst.msk [vmem:[#allocation4] sm:$0xff] %vm1326, %v1321
        %1328 = vst.msk [vmem:[#allocation4 + $0x8] sm:$0xff] %vm1326, %v1323
        %1329 = vrot.lane.b32.xlu0 %v692, 104
        %v1330 = vpop.permute.xlu0 %1329
        %1331 = vrot.lane.b32.xlu0 %v697, 104
        %v1332 = vpop.permute.xlu0 %1331
        %1333 = vrot.lane.b32.xlu0 %v700, 104
        %v1334 = vpop.permute.xlu0 %1333
        %1335 = vrot.lane.b32.xlu0 %v701, 104
        %v1336 = vpop.permute.xlu0 %1335
        %v1337 = vsel %vm711, %v1330, 0
        %v1339 = vsel %vm711, %v1332, 0
        %v1341 = vsel %vm711, %v1334, 0
        %v1343 = vsel %vm711, %v1336, 0
        %1345 = vmatprep.subr.mxu0 0.0
        %1346 = vmatpush1.xpose.msra.mxu0 %v1341
        %1347 = vmatprep.subr.mxu0 0.0
        %1348 = vmatpush1.xpose.msra.mxu0 %v1343
        %1349 = vmatprep.subr.mxu0 0.0
        %1350 = vmatpush1.xpose.msra.mxu0 0.0
        %1351 = vmatprep.subr.mxu0 0.0
        %1352 = vmatpush1.xpose.msra.mxu0 0.0
        %1353 = vmatprep.subr.mxu0 0.0
        %1354 = vmatpush1.xpose.msra.mxu0 0.0
        %1355 = vmatprep.subr.mxu0 0.0
        %1356 = vmatpush1.xpose.msra.mxu0 0.0
        %1357 = vmatprep.subr.mxu0 0.0
        %1358 = vmatpush1.xpose.msra.mxu0 0.0
        %1359 = vmatprep.subr.mxu0 0.0
        %1360 = vmatpush1.xpose.msra.mxu0 0.0
        %1361 = vmatprep.subr.mxu0 0.0
        %1362 = vmatpush1.xpose.msra.mxu0 0.0
        %1363 = vmatprep.subr.mxu0 0.0
        %1364 = vmatpush1.xpose.msra.mxu0 0.0
        %1365 = vmatprep.subr.mxu0 0.0
        %1366 = vmatpush1.xpose.msra.mxu0 0.0
        %1367 = vmatprep.subr.mxu0 0.0
        %1368 = vmatpush1.xpose.msra.mxu0 0.0
        %1369 = vmatprep.subr.mxu0 0.0
        %1370 = vmatpush1.xpose.msra.mxu0 0.0
        %1371 = vmatprep.subr.mxu0 0.0
        %1372 = vmatpush1.xpose.msra.mxu0 0.0
        %1373 = vmatprep.subr.mxu0 0.0
        %1374 = vmatpush1.xpose.msra.mxu0 0.0
        %1375 = vmatprep.subr.mxu0 0.0
        %1376 = vmatpush1.xpose.msra.mxu0 0.0
        %1377 = vmatprep.subr.mxu0 0.0
        %1378 = vmatpush1.xpose.msra.mxu0 0.0
        %1379 = vmatprep.subr.mxu0 0.0
        %1380 = vmatpush1.xpose.msra.mxu0 0.0
        %1381 = vmatprep.subr.mxu0 0.0
        %1382 = vmatpush1.xpose.msra.mxu0 0.0
        %1383 = vmatprep.subr.mxu0 0.0
        %1384 = vmatpush1.xpose.msra.mxu0 0.0
        %1385 = vmatprep.subr.mxu0 0.0
        %1386 = vmatpush1.xpose.msra.mxu0 0.0
        %1387 = vmatprep.subr.mxu0 0.0
        %1388 = vmatpush1.xpose.msra.mxu0 0.0
        %1389 = vmatprep.subr.mxu0 0.0
        %1390 = vmatpush1.xpose.msra.mxu0 0.0
        %1391 = vmatprep.subr.mxu0 0.0
        %1392 = vmatpush1.xpose.msra.mxu0 0.0
        %1393 = vmatprep.subr.mxu0 0.0
        %1394 = vmatpush1.xpose.msra.mxu0 0.0
        %1395 = vmatprep.subr.mxu0 0.0
        %1396 = vmatpush1.xpose.msra.mxu0 0.0
        %1397 = vmatprep.subr.mxu0 0.0
        %1398 = vmatpush1.xpose.msra.mxu0 0.0
        %1399 = vmatprep.subr.mxu0 0.0
        %1400 = vmatpush1.xpose.msra.mxu0 0.0
        %1401 = vmatprep.subr.mxu0 0.0
        %1402 = vmatpush1.xpose.msra.mxu0 0.0
        %1403 = vmatprep.subr.mxu0 0.0
        %1404 = vmatpush1.xpose.msra.mxu0 0.0
        %1405 = vmatprep.subr.mxu0 0.0
        %1406 = vmatpush1.xpose.msra.mxu0 0.0
        %1407 = vmatprep.subr.mxu0 0.0
        %1408 = vmatpush1.xpose.msra.mxu0 0.0
        %1409 = vmatprep.mubr.f32.mxu0 0.0
        %1410 = vmatmul.mubr.f32.gmra.mrb[0].mxu0 %v1337
        %v1411 = vpop.f32.mrb[0].mxu0
        %v1412 = vadd.f32 %v709, %v1411
        %v1413 = vpop.f32.mrb[0].mxu0
        %1414 = vmatprep.mubr.f32.mxu0 0.0
        %1415 = vmatmul.mubr.f32.gmra.mrb[0].mxu0 %v1339
        %v1416 = vpop.f32.mrb[0].mxu0
        %v1417 = vadd.f32 %v709, %v1416
        %v1418 = vpop.f32.mrb[0].mxu0
        %1419 = vdwg.mxu0
        %v1420 = vsel %vm799, %v1412, -inf
        %1421 = vmax.xlane.f32.xlu0 %v1420
        %v1422 = vpop.xlane.xlu0 %1421
        %v1423 = vsel %vm799, %v1417, -inf
        %1424 = vmax.xlane.f32.xlu0 %v1423
        %v1425 = vpop.xlane.xlu0 %1424
        %v1426 = vsub.f32 %v1412, %v1422
        %v1427 = vsub.f32 %v1417, %v1425
        %v1428 = vmul.f32 %v1426, 1.442695
        %v1429 = vpow.pop %v1428
        %v1430 = vmul.f32 %v1427, 1.442695
        %v1431 = vpow.pop %v1430
        %v1432 = vsel %vm799, %v1429, 0.0
        %1433 = vadd.xlane.f32.xlu0 %v1432
        %v1434 = vpop.xlane.xlu0 %1433
        %v1435 = vsel %vm799, %v1431, 0.0
        %1436 = vadd.xlane.f32.xlu0 %v1435
        %v1437 = vpop.xlane.xlu0 %1436
        %v1438 = vrcp.pop %v1434
        %v1439 = vrcp.pop %v1437
        %v1440 = vmul.f32 %v1429, %v1438
        %v1441 = vmul.f32 %v1431, %v1439
        %1442 = vrot.lane.b32.xlu0 %v702, 104
        %v1443 = vpop.permute.xlu0 %1442
        %1444 = vrot.lane.b32.xlu0 %v703, 104
        %v1445 = vpop.permute.xlu0 %1444
        %v1449 = vsel %vm799, %v1440, 0
        %v1452 = vsel %vm799, %v1441, 0
        %1454 = vmatprep.subr.mxu0 0.0
        %1455 = vmatpush1.msra.mxu0 %v1443
        %1456 = vmatprep.subr.mxu0 0.0
        %1457 = vmatpush1.msra.mxu0 %v1445
        %1458 = vmatprep.subr.mxu0 0.0
        %1459 = vmatpush1.msra.mxu0 0.0
        %1460 = vmatprep.subr.mxu0 0.0
        %1461 = vmatpush1.msra.mxu0 0.0
        %1462 = vmatprep.subr.mxu0 0.0
        %1463 = vmatpush1.msra.mxu0 0.0
        %1464 = vmatprep.subr.mxu0 0.0
        %1465 = vmatpush1.msra.mxu0 0.0
        %1466 = vmatprep.subr.mxu0 0.0
        %1467 = vmatpush1.msra.mxu0 0.0
        %1468 = vmatprep.subr.mxu0 0.0
        %1469 = vmatpush1.msra.mxu0 0.0
        %1470 = vmatprep.subr.mxu0 0.0
        %1471 = vmatpush1.msra.mxu0 0.0
        %1472 = vmatprep.subr.mxu0 0.0
        %1473 = vmatpush1.msra.mxu0 0.0
        %1474 = vmatprep.subr.mxu0 0.0
        %1475 = vmatpush1.msra.mxu0 0.0
        %1476 = vmatprep.subr.mxu0 0.0
        %1477 = vmatpush1.msra.mxu0 0.0
        %1478 = vmatprep.subr.mxu0 0.0
        %1479 = vmatpush1.msra.mxu0 0.0
        %1480 = vmatprep.subr.mxu0 0.0
        %1481 = vmatpush1.msra.mxu0 0.0
        %1482 = vmatprep.subr.mxu0 0.0
        %1483 = vmatpush1.msra.mxu0 0.0
        %1484 = vmatprep.subr.mxu0 0.0
        %1485 = vmatpush1.msra.mxu0 0.0
        %1486 = vmatprep.subr.mxu0 0.0
        %1487 = vmatpush1.msra.mxu0 0.0
        %1488 = vmatprep.subr.mxu0 0.0
        %1489 = vmatpush1.msra.mxu0 0.0
        %1490 = vmatprep.subr.mxu0 0.0
        %1491 = vmatpush1.msra.mxu0 0.0
        %1492 = vmatprep.subr.mxu0 0.0
        %1493 = vmatpush1.msra.mxu0 0.0
        %1494 = vmatprep.subr.mxu0 0.0
        %1495 = vmatpush1.msra.mxu0 0.0
        %1496 = vmatprep.subr.mxu0 0.0
        %1497 = vmatpush1.msra.mxu0 0.0
        %1498 = vmatprep.subr.mxu0 0.0
        %1499 = vmatpush1.msra.mxu0 0.0
        %1500 = vmatprep.subr.mxu0 0.0
        %1501 = vmatpush1.msra.mxu0 0.0
        %1502 = vmatprep.subr.mxu0 0.0
        %1503 = vmatpush1.msra.mxu0 0.0
        %1504 = vmatprep.subr.mxu0 0.0
        %1505 = vmatpush1.msra.mxu0 0.0
        %1506 = vmatprep.subr.mxu0 0.0
        %1507 = vmatpush1.msra.mxu0 0.0
        %1508 = vmatprep.subr.mxu0 0.0
        %1509 = vmatpush1.msra.mxu0 0.0
        %1510 = vmatprep.subr.mxu0 0.0
        %1511 = vmatpush1.msra.mxu0 0.0
        %1512 = vmatprep.subr.mxu0 0.0
        %1513 = vmatpush1.msra.mxu0 0.0
        %1514 = vmatprep.subr.mxu0 0.0
        %1515 = vmatpush1.msra.mxu0 0.0
        %1516 = vmatprep.subr.mxu0 0.0
        %1517 = vmatpush1.msra.mxu0 0.0
        %1518 = vmatprep.mubr.f32.mxu0 0.0
        %1519 = vmatmul.mubr.f32.gmra.mrb[0].mxu0 %v1449
        %v1520 = vpop.f32.mrb[0].mxu0
        %v1521 = vadd.f32 0.0, %v1520
        %v1522 = vpop.f32.mrb[0].mxu0
        %1523 = vmatprep.mubr.f32.mxu0 0.0
        %1524 = vmatmul.mubr.f32.gmra.mrb[0].mxu0 %v1452
        %v1525 = vpop.f32.mrb[0].mxu0
        %v1526 = vadd.f32 0.0, %v1525
        %v1527 = vpop.f32.mrb[0].mxu0
        %1528 = vdwg.mxu0
        %1531 = vrot.lane.b32.xlu0 %v1521, 24
        %v1532 = vpop.permute.xlu0 %1531
        %1533 = vrot.lane.b32.xlu0 %v1526, 24
        %v1534 = vpop.permute.xlu0 %1533
        %vm1537 = vcmask 261312
        %1538 = vst.msk [vmem:[#allocation4] sm:$0xff] %vm1537, %v1532
        %1539 = vst.msk [vmem:[#allocation4 + $0x8] sm:$0xff] %vm1537, %v1534
        %v1540 = vld [vmem:[#allocation4] sm:$0xff]
        %v1541 = vld [vmem:[#allocation4 + $0x8] sm:$0xff]
        %1542 = vst.msk [vmem:[%s401] sm:$0xff] %vm618, %v1540
        %1543 = vst.msk [vmem:[%s401 + $0x8] sm:$0xff] %vm618, %v1541
        %s1544 = sand.u32 %s236, 1
        %s1545 = scalar_lea.sflag [#allocation7], %s1544
        %s1546 = sand.u32 %s236, 1
        %s1547 = smul.addr %s1546, 16
        %s1548 = scalar_lea.vmem [#allocation13], %s1547
        // Predicated region
        $region73: #{tpu_custom_call.1} parent=51 // pred_check
          %p1549 = pneg %p246
        $region74: #{tpu_custom_call.1} parent=51 // pred_check_branch
          %1551 = sbr.rel (%p1549) target = $region76
        $region75: #{tpu_custom_call.1} parent=51 // pred_region
          %s1552 = smul.u32 2, %s34
          %s1554 = ssub.s32 256, 256
          %1555 = vsyncadd %s1545, %s1554
          %s1556 = sadd.s32 %s33, %s1552
          %s1557 = smul.addr %s32, 2
          %s1558 = sadd.s32 %s1556, %s1557
          %s1559 = smul.addr %s1558, 128
          %s1560 = scalar_lea.hbm %s8, %s1559
          %s1561 = sshll.u32 %s1548, 4
          %s1562 = int_to_ptr.vmem [resolvable:$true] %s1561
          %1567 = dma.vmem_to_hbm [thread:$0]  %s1562, 256, %s1560, %s1545, 128, 128, 8
        $region76: #{tpu_custom_call.1} parent=51 // pred_fallthru
          _
      $region52: #{tpu_custom_call.1} parent=5 // pred_fallthru
        _
      %p1568 = scmp.le.s32.totalorder 2, %s22
      // Predicated region
      $region77: #{tpu_custom_call.1} parent=5 // pred_check
        %p1569 = pneg %p1568
      $region78: #{tpu_custom_call.1} parent=5 // pred_check_branch
        %1571 = sbr.rel (%p1569) target = $region80
      $region79: #{tpu_custom_call.1} parent=5 // pred_region
        %s1572 = ssub.s32 %s22, 2
        // Predicated region
        $region81: #{tpu_custom_call.1} parent=79 // pred_check
          %p1573 = pneg %p252
        $region82: #{tpu_custom_call.1} parent=79 // pred_check_branch
          %1575 = sbr.rel (%p1573) target = $region84
        $region83: #{tpu_custom_call.1} parent=79 // pred_region
          %s1576 = sand.u32 %s237, 1
          %s1577 = scalar_lea.sflag [#allocation7], %s1576
          %s1578 = sand.u32 %s237, 1
          %s1579 = smul.addr %s1578, 16
          %s1580 = scalar_lea.vmem [#allocation13], %s1579
          %1581 = dma.done %s1577, 256
        $region84: #{tpu_custom_call.1} parent=79 // pred_fallthru
          _
      $region80: #{tpu_custom_call.1} parent=5 // pred_fallthru
        _
    $region6: #{tpu_custom_call.1} parent=1 // loop_footer
      %s26 = sadd.s32 1, %s22
    $region7: #{tpu_custom_call.1} parent=1 // loop_footer_branch
      %21 = sbr.rel target = $region3
    $region8: #{tpu_custom_call.1} parent=1 // loop_exit
      _
    %1582 = vsyncpa [#allocation6], 1
    %s1583 = scalar_lea.sflag [#allocation6], 1
    %1584 = vsyncpa %s1583, 1
    %1585 = vsyncpa [#allocation9], 1
    %1586 = vsyncpa [#allocation12], 1
    %1587 = vsyncpa [#allocation7], 1
    %s1588 = scalar_lea.sflag [#allocation7], 1
    %1589 = vsyncpa %s1588, 1

</llo_original>
